<compile_context>
chip_gen: v7x
topology: tpu7x:2x2x1
jax: 0.10.0
libtpu: 0.0.40
codegen_flags: <defaults>
</compile_context>

<pallas_src>
import math

import jax
import jax.numpy as jnp
from jax.experimental import pallas as pl
from jax.experimental.pallas import tpu as pltpu

# ----------------------------- problem sizes -----------------------------
B = 2          # batch
S = 8          # sequence length
D_MODEL = 32   # d_model
H = 4          # heads
D_K = D_MODEL // H


def mha_kernel(x_ref, mask_ref, wqkv_ref, wo_ref, out_ref):
    """Multi-head attention forward.  All operands live fully in VMEM.

    x_ref    : (3, B, S, D)       stacked [q, k, v] inputs
    mask_ref : (B, S, S)          1.0 = attend, 0.0 = masked
    wqkv_ref : (3, H, D+1, D_K)   per-head projection weights, last row = bias
                                  (q slab pre-scaled by 1/sqrt(d_k))
    wo_ref   : (H+1, D_K, D)      per-head output-projection row blocks; slab H
                                  holds b_o in its first row
    out_ref  : (B, S, D)
    """
    x = x_ref[...]                                   # (3, B, S, D)
    wqkv = wqkv_ref[...]                             # (3, H, D+1, D_K)

    def project(x_in, w_slab):
        # x_in: (B, S, D); w_slab: (H, D+1, D_K) -> (H*B, S, D_K) head-major.
        # Broadcasts / reshapes touch leading dims only (no relayout).
        xb = jnp.broadcast_to(x_in[None], (H, B, S, D_MODEL))
        xb = xb.reshape(H * B, S, D_MODEL)
        wb = jnp.broadcast_to(w_slab[:, None, :D_MODEL, :],
                              (H, B, D_MODEL, D_K))
        wb = wb.reshape(H * B, D_MODEL, D_K)
        y = jnp.einsum("nsd,nde->nse", xb, wb,
                       preferred_element_type=jnp.float32)   # (H*B, S, D_K)
        bias = w_slab[:, D_MODEL:, :]                         # (H, 1, D_K)
        y = y.reshape(H, B, S, D_K) + bias[:, None]           # (H, B, S, D_K)
        return y.reshape(H * B, S, D_K)

    qh = project(x[0], wqkv[0])        # already scaled by 1/sqrt(d_k)
    kh = project(x[1], wqkv[1])
    vh = project(x[2], wqkv[2])

    # Scores for every (head, batch) pair: (H*B, S, S).
    s = jnp.einsum("nqd,nkd->nqk", qh, kh, preferred_element_type=jnp.float32)

    # masked_fill(mask == 0, -1e9), exactly as in the PyTorch module; the user
    # mask broadcasts over heads.  Fully-masked rows -> uniform 1/S softmax.
    s = s.reshape(H, B, S, S)
    keep = jnp.broadcast_to(mask_ref[...][None], s.shape) != 0
    s = jnp.where(keep, s, jnp.float32(-1e9))

    # Numerically stable softmax along the key axis.
    s = s - jnp.max(s, axis=-1, keepdims=True)
    p = jnp.exp(s)
    denom = jnp.sum(p, axis=-1, keepdims=True)
    r = pl.reciprocal(denom, approx=True)          # EUP slot
    r = r * (2.0 - denom * r)                      # one Newton step -> f32 accuracy
    p = (p * r).reshape(H * B, S, S)

    # Weighted values: (H*B, S, D_K).
    ctx = jnp.einsum("nqk,nkd->nqd", p, vh, preferred_element_type=jnp.float32)

    # Output projection with the head merge folded into Wo's per-head row
    # blocks: out = sum_h ctx_h @ Wo[h*D_K:(h+1)*D_K, :] + b_o.
    wo = wo_ref[...]                                           # (H+1, D_K, D)
    wo_b = jnp.broadcast_to(wo[:H, None], (H, B, D_K, D_MODEL))
    wo_b = wo_b.reshape(H * B, D_K, D_MODEL)
    o_parts = jnp.einsum("nsd,nde->nse", ctx, wo_b,
                         preferred_element_type=jnp.float32)   # (H*B, S, D)
    o = jnp.sum(o_parts.reshape(H, B, S, D_MODEL), axis=0)     # (B, S, D)
    o = o + wo[H, 0:1, :]                                      # + b_o
    out_ref[...] = o.astype(out_ref.dtype)


@jax.jit
def mha_forward(q, k, v, mask, w_qkv, w_o):
    b, s, d = q.shape
    x3 = jnp.stack([q, k, v], axis=0)                 # (3, B, S, D)  - one operand
    mask3 = mask[:, 0].astype(jnp.float32)            # (B, S, S)     - small mask

    flops = int(3 * 2 * b * s * d * d                 # q/k/v projections
                + 4 * b * H * s * s * D_K             # QK^T and PV
                + 2 * b * s * d * d)                  # output projection
    transcendentals = int(b * H * s * s + b * H * s)
    bytes_accessed = int(4 * (x3.size + mask3.size + w_qkv.size + w_o.size
                              + b * s * d))

    return pl.pallas_call(
        mha_kernel,
        out_shape=jax.ShapeDtypeStruct((b, s, d), jnp.float32),
        grid=(1,),
        in_specs=[
            pl.BlockSpec((3, b, s, d), lambda i: (0, 0, 0, 0)),        # x3
            pl.BlockSpec((b, s, s), lambda i: (0, 0, 0)),              # mask
            pl.BlockSpec((3, H, d + 1, D_K), lambda i: (0, 0, 0, 0)),  # Wq/Wk/Wv + biases
            pl.BlockSpec((H + 1, D_K, d), lambda i: (0, 0, 0)),        # Wo + bias
        ],
        out_specs=pl.BlockSpec((b, s, d), lambda i: (0, 0, 0)),
        # Single grid step: the whole problem fits comfortably in VMEM.  For
        # larger B*S (and to use both v7x TensorCores) shard a leading
        # "parallel" grid axis over batch / query blocks instead.
        compiler_params=pltpu.CompilerParams(
            dimension_semantics=("arbitrary",)),
        cost_estimate=pl.CostEstimate(
            flops=flops, transcendentals=transcendentals,
            bytes_accessed=bytes_accessed),
    )(x3, mask3, w_qkv, w_o)


def _torch_linear_init(key, fan_in, fan_out):
    """Deterministic init matching nn.Linear's U(-1/sqrt(in), 1/sqrt(in))."""
    kw, kb = jax.random.split(key)
    bound = 1.0 / math.sqrt(fan_in)
    # Stored as (in, out): the kernel computes x @ W + b.
    w = jax.random.uniform(kw, (fan_in, fan_out), jnp.float32, -bound, bound)
    b = jax.random.uniform(kb, (1, fan_out), jnp.float32, -bound, bound)
    return w, b


def pack_qkv_params(wq, bq, wk, bk, wv, bv):
    """Per-head (H, D+1, D_K) slabs for q/k/v, bias in the last row.

    The 1/sqrt(d_k) score scale is folded into the q slab.
    """
    scale = 1.0 / math.sqrt(D_K)

    def per_head(w, b):
        wh = w.reshape(D_MODEL, H, D_K).transpose(1, 0, 2)   # (H, D, D_K)
        bh = b.reshape(H, 1, D_K)                            # (H, 1, D_K)
        return jnp.concatenate([wh, bh], axis=1)             # (H, D+1, D_K)

    return jnp.stack([per_head(wq * scale, bq * scale),
                      per_head(wk, bk),
                      per_head(wv, bv)], axis=0)             # (3, H, D+1, D_K)


def pack_out_params(wo, bo):
    """Per-head (D_K, D) row blocks of Wo plus a trailing slab holding b_o."""
    wo_h = wo.reshape(H, D_K, D_MODEL)                       # (H, D_K, D)
    bo_slab = jnp.zeros((1, D_K, D_MODEL), jnp.float32).at[0, 0, :].set(bo[0])
    return jnp.concatenate([wo_h, bo_slab], axis=0)          # (H+1, D_K, D)


def reference_mha(q, k, v, mask, wq, bq, wk, bk, wv, bv, wo, bo):
    """Pure-JAX reference mirroring the PyTorch forward (original weights)."""
    qp = q @ wq + bq
    kp = k @ wk + bk
    vp = v @ wv + bv

    def split(x):  # (B,S,D) -> (B,H,S,d_k)
        return x.reshape(B, S, H, D_K).transpose(0, 2, 1, 3)

    qh, kh, vh = split(qp), split(kp), split(vp)
    scores = jnp.einsum("bhqd,bhkd->bhqk", qh, kh) / math.sqrt(D_K)
    scores = jnp.where(mask == 0, -1.0e9, scores)
    p = jax.nn.softmax(scores, axis=-1)
    ctx = jnp.einsum("bhqk,bhkd->bhqd", p, vh)
    ctx = ctx.transpose(0, 2, 1, 3).reshape(B, S, D_MODEL)
    return ctx @ wo + bo


if __name__ == "__main__":
    key = jax.random.PRNGKey(0)
    kq, kk, kv, kwq, kwk, kwv, kwo = jax.random.split(key, 7)

    q = jax.random.normal(kq, (B, S, D_MODEL), jnp.float32)
    k = jax.random.normal(kk, (B, S, D_MODEL), jnp.float32)
    v = jax.random.normal(kv, (B, S, D_MODEL), jnp.float32)

    # Causal mask (B, 1, S, S): 1 = attend, 0 = masked.
    mask = jnp.broadcast_to(
        jnp.tril(jnp.ones((S, S), jnp.float32))[None, None], (B, 1, S, S))

    wq, bq = _torch_linear_init(kwq, D_MODEL, D_MODEL)
    wk, bk = _torch_linear_init(kwk, D_MODEL, D_MODEL)
    wv, bv = _torch_linear_init(kwv, D_MODEL, D_MODEL)
    wo, bo = _torch_linear_init(kwo, D_MODEL, D_MODEL)

    w_qkv = pack_qkv_params(wq, bq, wk, bk, wv, bv)
    w_o = pack_out_params(wo, bo)

    out = mha_forward(q, k, v, mask, w_qkv, w_o)
    out = jax.block_until_ready(out)

    ref = reference_mha(q, k, v, mask, wq, bq, wk, bk, wv, bv, wo, bo)
    assert out.shape == (B, S, D_MODEL)
    # Slightly relaxed vs 1e-4: the scale folded into the q weights, per-head
    # partial sums in the output projection, and the Newton-refined approx
    # reciprocal reassociate a few f32 roundings.
    assert jnp.allclose(out, ref, atol=2e-4, rtol=2e-4), "mismatch vs reference"

    print("KERNEL_OK")
</pallas_src>

<mosaic_0001>
module attributes {stable_mosaic.version = 11 : i64} {
  func.func @mha_kernel(%arg0: i32, %arg1: memref<3x2x8x32xf32, #tpu.memory_space<vmem>>, %arg2: memref<2x8x8xf32, #tpu.memory_space<vmem>>, %arg3: memref<3x4x33x8xf32, #tpu.memory_space<vmem>>, %arg4: memref<5x8x32xf32, #tpu.memory_space<vmem>>, %arg5: memref<2x8x32xf32, #tpu.memory_space<vmem>>) attributes {dimension_semantics = [#tpu.dimension_semantics<arbitrary>], iteration_bounds = array<i64: 1>, scalar_prefetch = 0 : i64, scratch_operands = 0 : i64, tpu.core_type = #tpu.core_type<tc>, window_params = [{pipeline_mode = #tpu.pipeline_mode<synchronous>, transform_indices = @transform_0, window_bounds = array<i64: 3, 2, 8, 32>}, {pipeline_mode = #tpu.pipeline_mode<synchronous>, transform_indices = @transform_1, window_bounds = array<i64: 2, 8, 8>}, {pipeline_mode = #tpu.pipeline_mode<synchronous>, transform_indices = @transform_2, window_bounds = array<i64: 3, 4, 33, 8>}, {pipeline_mode = #tpu.pipeline_mode<synchronous>, transform_indices = @transform_3, window_bounds = array<i64: 5, 8, 32>}, {pipeline_mode = #tpu.pipeline_mode<synchronous>, transform_indices = @transform_4, window_bounds = array<i64: 2, 8, 32>}]} {
    %c0 = arith.constant 0 : index
    %c0_0 = arith.constant 0 : index
    %c0_1 = arith.constant 0 : index
    %c0_2 = arith.constant 0 : index
    %0 = vector.load %arg1[%c0, %c0_0, %c0_1, %c0_2] : memref<3x2x8x32xf32, #tpu.memory_space<vmem>>, vector<3x2x8x32xf32>
    %c0_3 = arith.constant 0 : index
    %c0_4 = arith.constant 0 : index
    %c0_5 = arith.constant 0 : index
    %c0_6 = arith.constant 0 : index
    %1 = vector.load %arg3[%c0_3, %c0_4, %c0_5, %c0_6] : memref<3x4x33x8xf32, #tpu.memory_space<vmem>>, vector<3x4x33x8xf32>
    %2 = vector.extract_strided_slice %0 {offsets = [0, 0, 0, 0], sizes = [1, 2, 8, 32], strides = [1, 1, 1, 1]} : vector<3x2x8x32xf32> to vector<1x2x8x32xf32>
    %3 = vector.shape_cast %2 : vector<1x2x8x32xf32> to vector<2x8x32xf32>
    %4 = vector.extract_strided_slice %1 {offsets = [0, 0, 0, 0], sizes = [1, 4, 33, 8], strides = [1, 1, 1, 1]} : vector<3x4x33x8xf32> to vector<1x4x33x8xf32>
    %5 = vector.shape_cast %4 : vector<1x4x33x8xf32> to vector<4x33x8xf32>
    %6 = vector.shape_cast %3 : vector<2x8x32xf32> to vector<1x2x8x32xf32>
    %7 = vector.shape_cast %6 : vector<1x2x8x32xf32> to vector<1x2x8x32xf32>
    %8 = vector.broadcast %7 : vector<1x2x8x32xf32> to vector<4x2x8x32xf32>
    %9 = vector.shape_cast %8 : vector<4x2x8x32xf32> to vector<8x8x32xf32>
    %10 = vector.extract_strided_slice %5 {offsets = [0, 0, 0], sizes = [4, 32, 8], strides = [1, 1, 1]} : vector<4x33x8xf32> to vector<4x32x8xf32>
    %11 = vector.shape_cast %10 : vector<4x32x8xf32> to vector<4x1x32x8xf32>
    %12 = vector.shape_cast %11 : vector<4x1x32x8xf32> to vector<4x1x32x8xf32>
    %13 = vector.broadcast %12 : vector<4x1x32x8xf32> to vector<4x2x32x8xf32>
    %14 = vector.shape_cast %13 : vector<4x2x32x8xf32> to vector<8x32x8xf32>
    "tpu.trace_start"() <{level = 10 : i32, message = "nsd,nde->nse"}> : () -> ()
    %cst = arith.constant dense<0.000000e+00> : vector<8x8x8xf32>
    %15 = tpu.matmul %9, %14, %cst {dimension_numbers = #tpu.dot_dimension_numbers<[2], [1], [1], [2], [0, 0, 0, 1, 1, 2], [0], [0]>} : vector<8x8x32xf32>, vector<8x32x8xf32>, vector<8x8x8xf32> -> vector<8x8x8xf32>
    "tpu.trace_stop"() : () -> ()
    %16 = vector.extract_strided_slice %5 {offsets = [0, 32, 0], sizes = [4, 1, 8], strides = [1, 1, 1]} : vector<4x33x8xf32> to vector<4x1x8xf32>
    %17 = vector.shape_cast %15 : vector<8x8x8xf32> to vector<4x2x8x8xf32>
    %18 = vector.shape_cast %16 : vector<4x1x8xf32> to vector<4x1x1x8xf32>
    %19 = vector.broadcast %18 : vector<4x1x1x8xf32> to vector<4x2x8x8xf32>
    %20 = arith.addf %17, %19 : vector<4x2x8x8xf32>
    %21 = vector.shape_cast %20 : vector<4x2x8x8xf32> to vector<8x8x8xf32>
    %22 = vector.extract_strided_slice %0 {offsets = [1, 0, 0, 0], sizes = [1, 2, 8, 32], strides = [1, 1, 1, 1]} : vector<3x2x8x32xf32> to vector<1x2x8x32xf32>
    %23 = vector.shape_cast %22 : vector<1x2x8x32xf32> to vector<2x8x32xf32>
    %24 = vector.extract_strided_slice %1 {offsets = [1, 0, 0, 0], sizes = [1, 4, 33, 8], strides = [1, 1, 1, 1]} : vector<3x4x33x8xf32> to vector<1x4x33x8xf32>
    %25 = vector.shape_cast %24 : vector<1x4x33x8xf32> to vector<4x33x8xf32>
    %26 = vector.shape_cast %23 : vector<2x8x32xf32> to vector<1x2x8x32xf32>
    %27 = vector.shape_cast %26 : vector<1x2x8x32xf32> to vector<1x2x8x32xf32>
    %28 = vector.broadcast %27 : vector<1x2x8x32xf32> to vector<4x2x8x32xf32>
    %29 = vector.shape_cast %28 : vector<4x2x8x32xf32> to vector<8x8x32xf32>
    %30 = vector.extract_strided_slice %25 {offsets = [0, 0, 0], sizes = [4, 32, 8], strides = [1, 1, 1]} : vector<4x33x8xf32> to vector<4x32x8xf32>
    %31 = vector.shape_cast %30 : vector<4x32x8xf32> to vector<4x1x32x8xf32>
    %32 = vector.shape_cast %31 : vector<4x1x32x8xf32> to vector<4x1x32x8xf32>
    %33 = vector.broadcast %32 : vector<4x1x32x8xf32> to vector<4x2x32x8xf32>
    %34 = vector.shape_cast %33 : vector<4x2x32x8xf32> to vector<8x32x8xf32>
    "tpu.trace_start"() <{level = 10 : i32, message = "nsd,nde->nse"}> : () -> ()
    %cst_7 = arith.constant dense<0.000000e+00> : vector<8x8x8xf32>
    %35 = tpu.matmul %29, %34, %cst_7 {dimension_numbers = #tpu.dot_dimension_numbers<[2], [1], [1], [2], [0, 0, 0, 1, 1, 2], [0], [0]>} : vector<8x8x32xf32>, vector<8x32x8xf32>, vector<8x8x8xf32> -> vector<8x8x8xf32>
    "tpu.trace_stop"() : () -> ()
    %36 = vector.extract_strided_slice %25 {offsets = [0, 32, 0], sizes = [4, 1, 8], strides = [1, 1, 1]} : vector<4x33x8xf32> to vector<4x1x8xf32>
    %37 = vector.shape_cast %35 : vector<8x8x8xf32> to vector<4x2x8x8xf32>
    %38 = vector.shape_cast %36 : vector<4x1x8xf32> to vector<4x1x1x8xf32>
    %39 = vector.broadcast %38 : vector<4x1x1x8xf32> to vector<4x2x8x8xf32>
    %40 = arith.addf %37, %39 : vector<4x2x8x8xf32>
    %41 = vector.shape_cast %40 : vector<4x2x8x8xf32> to vector<8x8x8xf32>
    %42 = vector.extract_strided_slice %0 {offsets = [2, 0, 0, 0], sizes = [1, 2, 8, 32], strides = [1, 1, 1, 1]} : vector<3x2x8x32xf32> to vector<1x2x8x32xf32>
    %43 = vector.shape_cast %42 : vector<1x2x8x32xf32> to vector<2x8x32xf32>
    %44 = vector.extract_strided_slice %1 {offsets = [2, 0, 0, 0], sizes = [1, 4, 33, 8], strides = [1, 1, 1, 1]} : vector<3x4x33x8xf32> to vector<1x4x33x8xf32>
    %45 = vector.shape_cast %44 : vector<1x4x33x8xf32> to vector<4x33x8xf32>
    %46 = vector.shape_cast %43 : vector<2x8x32xf32> to vector<1x2x8x32xf32>
    %47 = vector.shape_cast %46 : vector<1x2x8x32xf32> to vector<1x2x8x32xf32>
    %48 = vector.broadcast %47 : vector<1x2x8x32xf32> to vector<4x2x8x32xf32>
    %49 = vector.shape_cast %48 : vector<4x2x8x32xf32> to vector<8x8x32xf32>
    %50 = vector.extract_strided_slice %45 {offsets = [0, 0, 0], sizes = [4, 32, 8], strides = [1, 1, 1]} : vector<4x33x8xf32> to vector<4x32x8xf32>
    %51 = vector.shape_cast %50 : vector<4x32x8xf32> to vector<4x1x32x8xf32>
    %52 = vector.shape_cast %51 : vector<4x1x32x8xf32> to vector<4x1x32x8xf32>
    %53 = vector.broadcast %52 : vector<4x1x32x8xf32> to vector<4x2x32x8xf32>
    %54 = vector.shape_cast %53 : vector<4x2x32x8xf32> to vector<8x32x8xf32>
    "tpu.trace_start"() <{level = 10 : i32, message = "nsd,nde->nse"}> : () -> ()
    %cst_8 = arith.constant dense<0.000000e+00> : vector<8x8x8xf32>
    %55 = tpu.matmul %49, %54, %cst_8 {dimension_numbers = #tpu.dot_dimension_numbers<[2], [1], [1], [2], [0, 0, 0, 1, 1, 2], [0], [0]>} : vector<8x8x32xf32>, vector<8x32x8xf32>, vector<8x8x8xf32> -> vector<8x8x8xf32>
    "tpu.trace_stop"() : () -> ()
    %56 = vector.extract_strided_slice %45 {offsets = [0, 32, 0], sizes = [4, 1, 8], strides = [1, 1, 1]} : vector<4x33x8xf32> to vector<4x1x8xf32>
    %57 = vector.shape_cast %55 : vector<8x8x8xf32> to vector<4x2x8x8xf32>
    %58 = vector.shape_cast %56 : vector<4x1x8xf32> to vector<4x1x1x8xf32>
    %59 = vector.broadcast %58 : vector<4x1x1x8xf32> to vector<4x2x8x8xf32>
    %60 = arith.addf %57, %59 : vector<4x2x8x8xf32>
    %61 = vector.shape_cast %60 : vector<4x2x8x8xf32> to vector<8x8x8xf32>
    "tpu.trace_start"() <{level = 10 : i32, message = "nqd,nkd->nqk"}> : () -> ()
    %cst_9 = arith.constant dense<0.000000e+00> : vector<8x8x8xf32>
    %62 = tpu.matmul %21, %41, %cst_9 {dimension_numbers = #tpu.dot_dimension_numbers<[2], [2], [1], [1], [0, 0, 0, 1, 1, 1], [0], [0]>} : vector<8x8x8xf32>, vector<8x8x8xf32>, vector<8x8x8xf32> -> vector<8x8x8xf32>
    "tpu.trace_stop"() : () -> ()
    %63 = vector.shape_cast %62 : vector<8x8x8xf32> to vector<4x2x8x8xf32>
    %c0_10 = arith.constant 0 : index
    %c0_11 = arith.constant 0 : index
    %c0_12 = arith.constant 0 : index
    %64 = vector.load %arg2[%c0_10, %c0_11, %c0_12] : memref<2x8x8xf32, #tpu.memory_space<vmem>>, vector<2x8x8xf32>
    %65 = vector.shape_cast %64 : vector<2x8x8xf32> to vector<1x2x8x8xf32>
    %66 = vector.shape_cast %65 : vector<1x2x8x8xf32> to vector<1x2x8x8xf32>
    %67 = vector.broadcast %66 : vector<1x2x8x8xf32> to vector<4x2x8x8xf32>
    %cst_13 = arith.constant 0.000000e+00 : f32
    %68 = vector.broadcast %cst_13 : f32 to vector<4x2x8x8xf32>
    %69 = arith.cmpf one, %67, %68 : vector<4x2x8x8xf32>
    %cst_14 = arith.constant -1.000000e+09 : f32
    %70 = vector.broadcast %cst_14 : f32 to vector<4x2x8x8xf32>
    %71 = arith.select %69, %63, %70 : vector<4x2x8x8xi1>, vector<4x2x8x8xf32>
    %cst_15 = arith.constant dense<0xFF800000> : vector<4x2x8xf32>
    %72 = vector.multi_reduction <maximumf>, %71, %cst_15 [3] : vector<4x2x8x8xf32> to vector<4x2x8xf32>
    %73 = vector.shape_cast %72 : vector<4x2x8xf32> to vector<4x2x8x1xf32>
    %74 = vector.broadcast %73 : vector<4x2x8x1xf32> to vector<4x2x8x8xf32>
    %75 = arith.subf %71, %74 : vector<4x2x8x8xf32>
    %76 = math.exp %75 : vector<4x2x8x8xf32>
    %cst_16 = arith.constant dense<0.000000e+00> : vector<4x2x8xf32>
    %77 = vector.multi_reduction <add>, %76, %cst_16 [3] : vector<4x2x8x8xf32> to vector<4x2x8xf32>
    %78 = vector.shape_cast %77 : vector<4x2x8xf32> to vector<4x2x8x1xf32>
    %79 = tpu.reciprocal %78 {approx = true} : vector<4x2x8x1xf32> -> vector<4x2x8x1xf32>
    %80 = arith.mulf %78, %79 : vector<4x2x8x1xf32>
    %cst_17 = arith.constant 2.000000e+00 : f32
    %81 = vector.broadcast %cst_17 : f32 to vector<4x2x8x1xf32>
    %82 = arith.subf %81, %80 : vector<4x2x8x1xf32>
    %83 = arith.mulf %79, %82 : vector<4x2x8x1xf32>
    %84 = vector.broadcast %83 : vector<4x2x8x1xf32> to vector<4x2x8x8xf32>
    %85 = arith.mulf %76, %84 : vector<4x2x8x8xf32>
    %86 = vector.shape_cast %85 : vector<4x2x8x8xf32> to vector<8x8x8xf32>
    "tpu.trace_start"() <{level = 10 : i32, message = "nqk,nkd->nqd"}> : () -> ()
    %cst_18 = arith.constant dense<0.000000e+00> : vector<8x8x8xf32>
    %87 = tpu.matmul %86, %61, %cst_18 {dimension_numbers = #tpu.dot_dimension_numbers<[2], [1], [1], [2], [0, 0, 0, 1, 1, 2], [0], [0]>} : vector<8x8x8xf32>, vector<8x8x8xf32>, vector<8x8x8xf32> -> vector<8x8x8xf32>
    "tpu.trace_stop"() : () -> ()
    %c0_19 = arith.constant 0 : index
    %c0_20 = arith.constant 0 : index
    %c0_21 = arith.constant 0 : index
    %88 = vector.load %arg4[%c0_19, %c0_20, %c0_21] : memref<5x8x32xf32, #tpu.memory_space<vmem>>, vector<5x8x32xf32>
    %89 = vector.extract_strided_slice %88 {offsets = [0, 0, 0], sizes = [4, 8, 32], strides = [1, 1, 1]} : vector<5x8x32xf32> to vector<4x8x32xf32>
    %90 = vector.shape_cast %89 : vector<4x8x32xf32> to vector<4x1x8x32xf32>
    %91 = vector.shape_cast %90 : vector<4x1x8x32xf32> to vector<4x1x8x32xf32>
    %92 = vector.broadcast %91 : vector<4x1x8x32xf32> to vector<4x2x8x32xf32>
    %93 = vector.shape_cast %92 : vector<4x2x8x32xf32> to vector<8x8x32xf32>
    "tpu.trace_start"() <{level = 10 : i32, message = "nsd,nde->nse"}> : () -> ()
    %cst_22 = arith.constant dense<0.000000e+00> : vector<8x8x32xf32>
    %94 = tpu.matmul %87, %93, %cst_22 {dimension_numbers = #tpu.dot_dimension_numbers<[2], [1], [1], [2], [0, 0, 0, 1, 1, 2], [0], [0]>} : vector<8x8x8xf32>, vector<8x8x32xf32>, vector<8x8x32xf32> -> vector<8x8x32xf32>
    "tpu.trace_stop"() : () -> ()
    %95 = vector.shape_cast %94 : vector<8x8x32xf32> to vector<4x2x8x32xf32>
    %cst_23 = arith.constant dense<0.000000e+00> : vector<2x8x32xf32>
    %96 = vector.multi_reduction <add>, %95, %cst_23 [0] : vector<4x2x8x32xf32> to vector<2x8x32xf32>
    %97 = vector.extract_strided_slice %88 {offsets = [4, 0, 0], sizes = [1, 1, 32], strides = [1, 1, 1]} : vector<5x8x32xf32> to vector<1x1x32xf32>
    %98 = vector.shape_cast %97 : vector<1x1x32xf32> to vector<1x32xf32>
    %99 = vector.shape_cast %98 : vector<1x32xf32> to vector<1x1x32xf32>
    %100 = vector.broadcast %99 : vector<1x1x32xf32> to vector<2x8x32xf32>
    %101 = arith.addf %96, %100 : vector<2x8x32xf32>
    %c0_24 = arith.constant 0 : index
    %c0_25 = arith.constant 0 : index
    %c0_26 = arith.constant 0 : index
    %102 = vector.load %arg5[%c0_24, %c0_25, %c0_26] : memref<2x8x32xf32, #tpu.memory_space<vmem>>, vector<2x8x32xf32>
    tpu.vector_store %arg5[%c0_24, %c0_25, %c0_26], %101 {strides = array<i32>} : memref<2x8x32xf32, #tpu.memory_space<vmem>>, vector<2x8x32xf32>,
    return
  }
  func.func @transform_0(%arg0: i32) -> (i32, i32, i32, i32) {
    %c0_i32 = arith.constant 0 : i32
    %c0_i32_0 = arith.constant 0 : i32
    %c0_i32_1 = arith.constant 0 : i32
    %c0_i32_2 = arith.constant 0 : i32
    %c0_i32_3 = arith.constant 0 : i32
    return %c0_i32, %c0_i32_0, %c0_i32_1, %c0_i32_2 : i32, i32, i32, i32
  }
  func.func @transform_1(%arg0: i32) -> (i32, i32, i32) {
    %c0_i32 = arith.constant 0 : i32
    %c0_i32_0 = arith.constant 0 : i32
    %c0_i32_1 = arith.constant 0 : i32
    %c0_i32_2 = arith.constant 0 : i32
    return %c0_i32, %c0_i32_0, %c0_i32_1 : i32, i32, i32
  }
  func.func @transform_2(%arg0: i32) -> (i32, i32, i32, i32) {
    %c0_i32 = arith.constant 0 : i32
    %c0_i32_0 = arith.constant 0 : i32
    %c0_i32_1 = arith.constant 0 : i32
    %c0_i32_2 = arith.constant 0 : i32
    %c0_i32_3 = arith.constant 0 : i32
    return %c0_i32, %c0_i32_0, %c0_i32_1, %c0_i32_2 : i32, i32, i32, i32
  }
  func.func @transform_3(%arg0: i32) -> (i32, i32, i32) {
    %c0_i32 = arith.constant 0 : i32
    %c0_i32_0 = arith.constant 0 : i32
    %c0_i32_1 = arith.constant 0 : i32
    %c0_i32_2 = arith.constant 0 : i32
    return %c0_i32, %c0_i32_0, %c0_i32_1 : i32, i32, i32
  }
  func.func @transform_4(%arg0: i32) -> (i32, i32, i32) {
    %c0_i32 = arith.constant 0 : i32
    %c0_i32_0 = arith.constant 0 : i32
    %c0_i32_1 = arith.constant 0 : i32
    %c0_i32_2 = arith.constant 0 : i32
    return %c0_i32, %c0_i32_0, %c0_i32_1 : i32, i32, i32
  }
}

</mosaic_0001>

<llo_original>
// kernel: mha_forward.1
$region0: #{mha_forward.1}
  #allocation0 [shape = 'u32[]', space=smem, size = 0x4, offset = 0x4, fixed_abs, tag = 'smem constant byte address 0x4 - core index']
  #allocation1 [shape = 'u32[144,128]{1,0:T(1,128)}', space=vmem, size = 0x12000, scoped, tag = 'internal scratch']
  %s0 = inlined_call_operand.vmem [shape: f32[3,2,8,32], index: 0, kind: input, shape index: {}]
  %s1 = inlined_call_operand.vmem [shape: f32[2,8,8], index: 1, kind: input, shape index: {}]
  %s2 = inlined_call_operand.vmem [shape: f32[3,4,33,8], index: 2, kind: input, shape index: {}]
  %s3 = inlined_call_operand.vmem [shape: f32[5,8,32], index: 3, kind: input, shape index: {}]
  %s4 = inlined_call_operand.hbm [shape: f32[2,8,32], index: 4, kind: output, shape index: {}]
  %s5 = sld [smem:[#allocation0]]
  $region26: #{mha_forward.1} parent=0
    _
  %s7 = ssub.s32 1, %s5
  %s8 = scalar_select 0, %s7, %s5
  $region1: #{mha_forward.1} parent=0
    #allocation2 [shape = 'u8[8192]{0}', space=vmem, size = 0x2000, scoped, tag = 'output window, operand 0, single buffered']
    #allocation3 [shape = 's32[1]{0}', space=sflag, size = 0x4, scoped, tag = 'scoped memory for mha_forward.1']
    %9 = vsyncpa [#allocation3], 0
    // Predicated region
    $region2: #{mha_forward.1} parent=1 // pred_check
      _
    $region3: #{mha_forward.1} parent=1 // pred_check_branch
      %11 = sbr.rel (0) target = $region5
    $region4: #{mha_forward.1} parent=1 // pred_region
      _
    $region5: #{mha_forward.1} parent=1 // pred_fallthru
      _
    // Predicated region
    $region6: #{mha_forward.1} parent=1 // pred_check
      _
    $region7: #{mha_forward.1} parent=1 // pred_check_branch
      %13 = sbr.rel (0) target = $region9
    $region8: #{mha_forward.1} parent=1 // pred_region
      _
    $region9: #{mha_forward.1} parent=1 // pred_fallthru
      _
    // Predicated region
    $region10: #{mha_forward.1} parent=1 // pred_check
      _
    $region11: #{mha_forward.1} parent=1 // pred_check_branch
      %15 = sbr.rel (0) target = $region13
    $region12: #{mha_forward.1} parent=1 // pred_region
      _
    $region13: #{mha_forward.1} parent=1 // pred_fallthru
      _
    // Predicated region
    $region14: #{mha_forward.1} parent=1 // pred_check
      _
    $region15: #{mha_forward.1} parent=1 // pred_check_branch
      %17 = sbr.rel (0) target = $region17
    $region16: #{mha_forward.1} parent=1 // pred_region
      _
    $region17: #{mha_forward.1} parent=1 // pred_fallthru
      _
    %v18 = vld [vmem:[%s0] sm:$0xff]
    %v19 = vld [vmem:[%s0 + $0x8] sm:$0xff]
    %v20 = vld [vmem:[%s0 + $0x10] sm:$0xff]
    %v21 = vld [vmem:[%s0 + $0x18] sm:$0xff]
    %v22 = vld [vmem:[%s0 + $0x20] sm:$0xff]
    %v23 = vld [vmem:[%s0 + $0x28] sm:$0xff]
    %v24 = vld [vmem:[%s2] sm:$0xff]
    %v25 = vld [vmem:[%s2 + $0x8] sm:$0xff]
    %v26 = vld [vmem:[%s2 + $0x10] sm:$0xff]
    %v27 = vld [vmem:[%s2 + $0x18] sm:$0xff]
    %v28 = vld [vmem:[%s2 + $0x20] sm:$0x1]
    %v29 = vld [vmem:[%s2 + $0x28] sm:$0xff]
    %v30 = vld [vmem:[%s2 + $0x30] sm:$0xff]
    %v31 = vld [vmem:[%s2 + $0x38] sm:$0xff]
    %v32 = vld [vmem:[%s2 + $0x40] sm:$0xff]
    %v33 = vld [vmem:[%s2 + $0x48] sm:$0x1]
    %v34 = vld [vmem:[%s2 + $0x50] sm:$0xff]
    %v35 = vld [vmem:[%s2 + $0x58] sm:$0xff]
    %v36 = vld [vmem:[%s2 + $0x60] sm:$0xff]
    %v37 = vld [vmem:[%s2 + $0x68] sm:$0xff]
    %v38 = vld [vmem:[%s2 + $0x70] sm:$0x1]
    %v39 = vld [vmem:[%s2 + $0x78] sm:$0xff]
    %v40 = vld [vmem:[%s2 + $0x80] sm:$0xff]
    %v41 = vld [vmem:[%s2 + $0x88] sm:$0xff]
    %v42 = vld [vmem:[%s2 + $0x90] sm:$0xff]
    %v43 = vld [vmem:[%s2 + $0x98] sm:$0x1]
    %v44 = vld [vmem:[%s2 + $0xa0] sm:$0xff]
    %v45 = vld [vmem:[%s2 + $0xa8] sm:$0xff]
    %v46 = vld [vmem:[%s2 + $0xb0] sm:$0xff]
    %v47 = vld [vmem:[%s2 + $0xb8] sm:$0xff]
    %v48 = vld [vmem:[%s2 + $0xc0] sm:$0x1]
    %v49 = vld [vmem:[%s2 + $0xc8] sm:$0xff]
    %v50 = vld [vmem:[%s2 + $0xd0] sm:$0xff]
    %v51 = vld [vmem:[%s2 + $0xd8] sm:$0xff]
    %v52 = vld [vmem:[%s2 + $0xe0] sm:$0xff]
    %v53 = vld [vmem:[%s2 + $0xe8] sm:$0x1]
    %v54 = vld [vmem:[%s2 + $0xf0] sm:$0xff]
    %v55 = vld [vmem:[%s2 + $0xf8] sm:$0xff]
    %v56 = vld [vmem:[%s2 + $0x100] sm:$0xff]
    %v57 = vld [vmem:[%s2 + $0x108] sm:$0xff]
    %v58 = vld [vmem:[%s2 + $0x110] sm:$0x1]
    %v59 = vld [vmem:[%s2 + $0x118] sm:$0xff]
    %v60 = vld [vmem:[%s2 + $0x120] sm:$0xff]
    %v61 = vld [vmem:[%s2 + $0x128] sm:$0xff]
    %v62 = vld [vmem:[%s2 + $0x130] sm:$0xff]
    %v63 = vld [vmem:[%s2 + $0x138] sm:$0x1]
    %v64 = vld [vmem:[%s2 + $0x140] sm:$0xff]
    %v65 = vld [vmem:[%s2 + $0x148] sm:$0xff]
    %v66 = vld [vmem:[%s2 + $0x150] sm:$0xff]
    %v67 = vld [vmem:[%s2 + $0x158] sm:$0xff]
    %v68 = vld [vmem:[%s2 + $0x160] sm:$0x1]
    %v69 = vld [vmem:[%s2 + $0x168] sm:$0xff]
    %v70 = vld [vmem:[%s2 + $0x170] sm:$0xff]
    %v71 = vld [vmem:[%s2 + $0x178] sm:$0xff]
    %v72 = vld [vmem:[%s2 + $0x180] sm:$0xff]
    %v73 = vld [vmem:[%s2 + $0x188] sm:$0x1]
    %v74 = vld [vmem:[%s2 + $0x190] sm:$0xff]
    %v75 = vld [vmem:[%s2 + $0x198] sm:$0xff]
    %v76 = vld [vmem:[%s2 + $0x1a0] sm:$0xff]
    %v77 = vld [vmem:[%s2 + $0x1a8] sm:$0xff]
    %v78 = vld [vmem:[%s2 + $0x1b0] sm:$0x1]
    %v79 = vld [vmem:[%s2 + $0x1b8] sm:$0xff]
    %v80 = vld [vmem:[%s2 + $0x1c0] sm:$0xff]
    %v81 = vld [vmem:[%s2 + $0x1c8] sm:$0xff]
    %v82 = vld [vmem:[%s2 + $0x1d0] sm:$0xff]
    %v83 = vld [vmem:[%s2 + $0x1d8] sm:$0x1]
    %vm84 = vcmask 261120
    %v86 = vsel %vm84, %v18, 0
    %88 = vmatprep.subr.mxu0 0.0
    %89 = vmatpush1.msra.mxu0 %v24
    %90 = vmatprep.subr.mxu0 0.0
    %91 = vmatpush1.msra.mxu0 %v25
    %92 = vmatprep.subr.mxu0 0.0
    %93 = vmatpush1.msra.mxu0 %v26
    %94 = vmatprep.subr.mxu0 0.0
    %95 = vmatpush1.msra.mxu0 %v27
    %96 = vmatprep.subr.mxu0 0.0
    %97 = vmatpush1.msra.mxu0 0.0
    %98 = vmatprep.subr.mxu0 0.0
    %99 = vmatpush1.msra.mxu0 0.0
    %100 = vmatprep.subr.mxu0 0.0
    %101 = vmatpush1.msra.mxu0 0.0
    %102 = vmatprep.subr.mxu0 0.0
    %103 = vmatpush1.msra.mxu0 0.0
    %104 = vmatprep.subr.mxu0 0.0
    %105 = vmatpush1.msra.mxu0 0.0
    %106 = vmatprep.subr.mxu0 0.0
    %107 = vmatpush1.msra.mxu0 0.0
    %108 = vmatprep.subr.mxu0 0.0
    %109 = vmatpush1.msra.mxu0 0.0
    %110 = vmatprep.subr.mxu0 0.0
    %111 = vmatpush1.msra.mxu0 0.0
    %112 = vmatprep.subr.mxu0 0.0
    %113 = vmatpush1.msra.mxu0 0.0
    %114 = vmatprep.subr.mxu0 0.0
    %115 = vmatpush1.msra.mxu0 0.0
    %116 = vmatprep.subr.mxu0 0.0
    %117 = vmatpush1.msra.mxu0 0.0
    %118 = vmatprep.subr.mxu0 0.0
    %119 = vmatpush1.msra.mxu0 0.0
    %120 = vmatprep.subr.mxu0 0.0
    %121 = vmatpush1.msra.mxu0 0.0
    %122 = vmatprep.subr.mxu0 0.0
    %123 = vmatpush1.msra.mxu0 0.0
    %124 = vmatprep.subr.mxu0 0.0
    %125 = vmatpush1.msra.mxu0 0.0
    %126 = vmatprep.subr.mxu0 0.0
    %127 = vmatpush1.msra.mxu0 0.0
    %128 = vmatprep.subr.mxu0 0.0
    %129 = vmatpush1.msra.mxu0 0.0
    %130 = vmatprep.subr.mxu0 0.0
    %131 = vmatpush1.msra.mxu0 0.0
    %132 = vmatprep.subr.mxu0 0.0
    %133 = vmatpush1.msra.mxu0 0.0
    %134 = vmatprep.subr.mxu0 0.0
    %135 = vmatpush1.msra.mxu0 0.0
    %136 = vmatprep.subr.mxu0 0.0
    %137 = vmatpush1.msra.mxu0 0.0
    %138 = vmatprep.subr.mxu0 0.0
    %139 = vmatpush1.msra.mxu0 0.0
    %140 = vmatprep.subr.mxu0 0.0
    %141 = vmatpush1.msra.mxu0 0.0
    %142 = vmatprep.subr.mxu0 0.0
    %143 = vmatpush1.msra.mxu0 0.0
    %144 = vmatprep.subr.mxu0 0.0
    %145 = vmatpush1.msra.mxu0 0.0
    %146 = vmatprep.subr.mxu0 0.0
    %147 = vmatpush1.msra.mxu0 0.0
    %148 = vmatprep.subr.mxu0 0.0
    %149 = vmatpush1.msra.mxu0 0.0
    %150 = vmatprep.subr.mxu0 0.0
    %151 = vmatpush1.msra.mxu0 0.0
    %152 = vmatprep.mubr.f32.mxu0 0.0
    %153 = vmatmul.mubr.f32.gmra.mrb[0].mxu0 %v86
    %v154 = vpop.f32.mrb[0].mxu0
    %v155 = vadd.f32 0.0, %v154
    %v156 = vpop.f32.mrb[0].mxu0
    %157 = vdwg.mxu0
    %v159 = vsel %vm84, %v19, 0
    %161 = vmatprep.subr.mxu0 0.0
    %162 = vmatpush1.msra.mxu0 %v24
    %163 = vmatprep.subr.mxu0 0.0
    %164 = vmatpush1.msra.mxu0 %v25
    %165 = vmatprep.subr.mxu0 0.0
    %166 = vmatpush1.msra.mxu0 %v26
    %167 = vmatprep.subr.mxu0 0.0
    %168 = vmatpush1.msra.mxu0 %v27
    %169 = vmatprep.subr.mxu0 0.0
    %170 = vmatpush1.msra.mxu0 0.0
    %171 = vmatprep.subr.mxu0 0.0
    %172 = vmatpush1.msra.mxu0 0.0
    %173 = vmatprep.subr.mxu0 0.0
    %174 = vmatpush1.msra.mxu0 0.0
    %175 = vmatprep.subr.mxu0 0.0
    %176 = vmatpush1.msra.mxu0 0.0
    %177 = vmatprep.subr.mxu0 0.0
    %178 = vmatpush1.msra.mxu0 0.0
    %179 = vmatprep.subr.mxu0 0.0
    %180 = vmatpush1.msra.mxu0 0.0
    %181 = vmatprep.subr.mxu0 0.0
    %182 = vmatpush1.msra.mxu0 0.0
    %183 = vmatprep.subr.mxu0 0.0
    %184 = vmatpush1.msra.mxu0 0.0
    %185 = vmatprep.subr.mxu0 0.0
    %186 = vmatpush1.msra.mxu0 0.0
    %187 = vmatprep.subr.mxu0 0.0
    %188 = vmatpush1.msra.mxu0 0.0
    %189 = vmatprep.subr.mxu0 0.0
    %190 = vmatpush1.msra.mxu0 0.0
    %191 = vmatprep.subr.mxu0 0.0
    %192 = vmatpush1.msra.mxu0 0.0
    %193 = vmatprep.subr.mxu0 0.0
    %194 = vmatpush1.msra.mxu0 0.0
    %195 = vmatprep.subr.mxu0 0.0
    %196 = vmatpush1.msra.mxu0 0.0
    %197 = vmatprep.subr.mxu0 0.0
    %198 = vmatpush1.msra.mxu0 0.0
    %199 = vmatprep.subr.mxu0 0.0
    %200 = vmatpush1.msra.mxu0 0.0
    %201 = vmatprep.subr.mxu0 0.0
    %202 = vmatpush1.msra.mxu0 0.0
    %203 = vmatprep.subr.mxu0 0.0
    %204 = vmatpush1.msra.mxu0 0.0
    %205 = vmatprep.subr.mxu0 0.0
    %206 = vmatpush1.msra.mxu0 0.0
    %207 = vmatprep.subr.mxu0 0.0
    %208 = vmatpush1.msra.mxu0 0.0
    %209 = vmatprep.subr.mxu0 0.0
    %210 = vmatpush1.msra.mxu0 0.0
    %211 = vmatprep.subr.mxu0 0.0
    %212 = vmatpush1.msra.mxu0 0.0
    %213 = vmatprep.subr.mxu0 0.0
    %214 = vmatpush1.msra.mxu0 0.0
    %215 = vmatprep.subr.mxu0 0.0
    %216 = vmatpush1.msra.mxu0 0.0
    %217 = vmatprep.subr.mxu0 0.0
    %218 = vmatpush1.msra.mxu0 0.0
    %219 = vmatprep.subr.mxu0 0.0
    %220 = vmatpush1.msra.mxu0 0.0
    %221 = vmatprep.subr.mxu0 0.0
    %222 = vmatpush1.msra.mxu0 0.0
    %223 = vmatprep.subr.mxu0 0.0
    %224 = vmatpush1.msra.mxu0 0.0
    %225 = vmatprep.mubr.f32.mxu0 0.0
    %226 = vmatmul.mubr.f32.gmra.mrb[0].mxu0 %v159
    %v227 = vpop.f32.mrb[0].mxu0
    %v228 = vadd.f32 0.0, %v227
    %v229 = vpop.f32.mrb[0].mxu0
    %230 = vdwg.mxu0
    %231 = vmatprep.subr.mxu0 0.0
    %232 = vmatpush1.msra.mxu0 %v29
    %233 = vmatprep.subr.mxu0 0.0
    %234 = vmatpush1.msra.mxu0 %v30
    %235 = vmatprep.subr.mxu0 0.0
    %236 = vmatpush1.msra.mxu0 %v31
    %237 = vmatprep.subr.mxu0 0.0
    %238 = vmatpush1.msra.mxu0 %v32
    %239 = vmatprep.subr.mxu0 0.0
    %240 = vmatpush1.msra.mxu0 0.0
    %241 = vmatprep.subr.mxu0 0.0
    %242 = vmatpush1.msra.mxu0 0.0
    %243 = vmatprep.subr.mxu0 0.0
    %244 = vmatpush1.msra.mxu0 0.0
    %245 = vmatprep.subr.mxu0 0.0
    %246 = vmatpush1.msra.mxu0 0.0
    %247 = vmatprep.subr.mxu0 0.0
    %248 = vmatpush1.msra.mxu0 0.0
    %249 = vmatprep.subr.mxu0 0.0
    %250 = vmatpush1.msra.mxu0 0.0
    %251 = vmatprep.subr.mxu0 0.0
    %252 = vmatpush1.msra.mxu0 0.0
    %253 = vmatprep.subr.mxu0 0.0
    %254 = vmatpush1.msra.mxu0 0.0
    %255 = vmatprep.subr.mxu0 0.0
    %256 = vmatpush1.msra.mxu0 0.0
    %257 = vmatprep.subr.mxu0 0.0
    %258 = vmatpush1.msra.mxu0 0.0
    %259 = vmatprep.subr.mxu0 0.0
    %260 = vmatpush1.msra.mxu0 0.0
    %261 = vmatprep.subr.mxu0 0.0
    %262 = vmatpush1.msra.mxu0 0.0
    %263 = vmatprep.subr.mxu0 0.0
    %264 = vmatpush1.msra.mxu0 0.0
    %265 = vmatprep.subr.mxu0 0.0
    %266 = vmatpush1.msra.mxu0 0.0
    %267 = vmatprep.subr.mxu0 0.0
    %268 = vmatpush1.msra.mxu0 0.0
    %269 = vmatprep.subr.mxu0 0.0
    %270 = vmatpush1.msra.mxu0 0.0
    %271 = vmatprep.subr.mxu0 0.0
    %272 = vmatpush1.msra.mxu0 0.0
    %273 = vmatprep.subr.mxu0 0.0
    %274 = vmatpush1.msra.mxu0 0.0
    %275 = vmatprep.subr.mxu0 0.0
    %276 = vmatpush1.msra.mxu0 0.0
    %277 = vmatprep.subr.mxu0 0.0
    %278 = vmatpush1.msra.mxu0 0.0
    %279 = vmatprep.subr.mxu0 0.0
    %280 = vmatpush1.msra.mxu0 0.0
    %281 = vmatprep.subr.mxu0 0.0
    %282 = vmatpush1.msra.mxu0 0.0
    %283 = vmatprep.subr.mxu0 0.0
    %284 = vmatpush1.msra.mxu0 0.0
    %285 = vmatprep.subr.mxu0 0.0
    %286 = vmatpush1.msra.mxu0 0.0
    %287 = vmatprep.subr.mxu0 0.0
    %288 = vmatpush1.msra.mxu0 0.0
    %289 = vmatprep.subr.mxu0 0.0
    %290 = vmatpush1.msra.mxu0 0.0
    %291 = vmatprep.subr.mxu0 0.0
    %292 = vmatpush1.msra.mxu0 0.0
    %293 = vmatprep.subr.mxu0 0.0
    %294 = vmatpush1.msra.mxu0 0.0
    %295 = vmatprep.mubr.f32.mxu0 0.0
    %296 = vmatmul.mubr.f32.gmra.mrb[0].mxu0 %v86
    %v297 = vpop.f32.mrb[0].mxu0
    %v298 = vadd.f32 0.0, %v297
    %v299 = vpop.f32.mrb[0].mxu0
    %300 = vdwg.mxu0
    %301 = vmatprep.subr.mxu0 0.0
    %302 = vmatpush1.msra.mxu0 %v29
    %303 = vmatprep.subr.mxu0 0.0
    %304 = vmatpush1.msra.mxu0 %v30
    %305 = vmatprep.subr.mxu0 0.0
    %306 = vmatpush1.msra.mxu0 %v31
    %307 = vmatprep.subr.mxu0 0.0
    %308 = vmatpush1.msra.mxu0 %v32
    %309 = vmatprep.subr.mxu0 0.0
    %310 = vmatpush1.msra.mxu0 0.0
    %311 = vmatprep.subr.mxu0 0.0
    %312 = vmatpush1.msra.mxu0 0.0
    %313 = vmatprep.subr.mxu0 0.0
    %314 = vmatpush1.msra.mxu0 0.0
    %315 = vmatprep.subr.mxu0 0.0
    %316 = vmatpush1.msra.mxu0 0.0
    %317 = vmatprep.subr.mxu0 0.0
    %318 = vmatpush1.msra.mxu0 0.0
    %319 = vmatprep.subr.mxu0 0.0
    %320 = vmatpush1.msra.mxu0 0.0
    %321 = vmatprep.subr.mxu0 0.0
    %322 = vmatpush1.msra.mxu0 0.0
    %323 = vmatprep.subr.mxu0 0.0
    %324 = vmatpush1.msra.mxu0 0.0
    %325 = vmatprep.subr.mxu0 0.0
    %326 = vmatpush1.msra.mxu0 0.0
    %327 = vmatprep.subr.mxu0 0.0
    %328 = vmatpush1.msra.mxu0 0.0
    %329 = vmatprep.subr.mxu0 0.0
    %330 = vmatpush1.msra.mxu0 0.0
    %331 = vmatprep.subr.mxu0 0.0
    %332 = vmatpush1.msra.mxu0 0.0
    %333 = vmatprep.subr.mxu0 0.0
    %334 = vmatpush1.msra.mxu0 0.0
    %335 = vmatprep.subr.mxu0 0.0
    %336 = vmatpush1.msra.mxu0 0.0
    %337 = vmatprep.subr.mxu0 0.0
    %338 = vmatpush1.msra.mxu0 0.0
    %339 = vmatprep.subr.mxu0 0.0
    %340 = vmatpush1.msra.mxu0 0.0
    %341 = vmatprep.subr.mxu0 0.0
    %342 = vmatpush1.msra.mxu0 0.0
    %343 = vmatprep.subr.mxu0 0.0
    %344 = vmatpush1.msra.mxu0 0.0
    %345 = vmatprep.subr.mxu0 0.0
    %346 = vmatpush1.msra.mxu0 0.0
    %347 = vmatprep.subr.mxu0 0.0
    %348 = vmatpush1.msra.mxu0 0.0
    %349 = vmatprep.subr.mxu0 0.0
    %350 = vmatpush1.msra.mxu0 0.0
    %351 = vmatprep.subr.mxu0 0.0
    %352 = vmatpush1.msra.mxu0 0.0
    %353 = vmatprep.subr.mxu0 0.0
    %354 = vmatpush1.msra.mxu0 0.0
    %355 = vmatprep.subr.mxu0 0.0
    %356 = vmatpush1.msra.mxu0 0.0
    %357 = vmatprep.subr.mxu0 0.0
    %358 = vmatpush1.msra.mxu0 0.0
    %359 = vmatprep.subr.mxu0 0.0
    %360 = vmatpush1.msra.mxu0 0.0
    %361 = vmatprep.subr.mxu0 0.0
    %362 = vmatpush1.msra.mxu0 0.0
    %363 = vmatprep.subr.mxu0 0.0
    %364 = vmatpush1.msra.mxu0 0.0
    %365 = vmatprep.mubr.f32.mxu0 0.0
    %366 = vmatmul.mubr.f32.gmra.mrb[0].mxu0 %v159
    %v367 = vpop.f32.mrb[0].mxu0
    %v368 = vadd.f32 0.0, %v367
    %v369 = vpop.f32.mrb[0].mxu0
    %370 = vdwg.mxu0
    %371 = vmatprep.subr.mxu0 0.0
    %372 = vmatpush1.msra.mxu0 %v34
    %373 = vmatprep.subr.mxu0 0.0
    %374 = vmatpush1.msra.mxu0 %v35
    %375 = vmatprep.subr.mxu0 0.0
    %376 = vmatpush1.msra.mxu0 %v36
    %377 = vmatprep.subr.mxu0 0.0
    %378 = vmatpush1.msra.mxu0 %v37
    %379 = vmatprep.subr.mxu0 0.0
    %380 = vmatpush1.msra.mxu0 0.0
    %381 = vmatprep.subr.mxu0 0.0
    %382 = vmatpush1.msra.mxu0 0.0
    %383 = vmatprep.subr.mxu0 0.0
    %384 = vmatpush1.msra.mxu0 0.0
    %385 = vmatprep.subr.mxu0 0.0
    %386 = vmatpush1.msra.mxu0 0.0
    %387 = vmatprep.subr.mxu0 0.0
    %388 = vmatpush1.msra.mxu0 0.0
    %389 = vmatprep.subr.mxu0 0.0
    %390 = vmatpush1.msra.mxu0 0.0
    %391 = vmatprep.subr.mxu0 0.0
    %392 = vmatpush1.msra.mxu0 0.0
    %393 = vmatprep.subr.mxu0 0.0
    %394 = vmatpush1.msra.mxu0 0.0
    %395 = vmatprep.subr.mxu0 0.0
    %396 = vmatpush1.msra.mxu0 0.0
    %397 = vmatprep.subr.mxu0 0.0
    %398 = vmatpush1.msra.mxu0 0.0
    %399 = vmatprep.subr.mxu0 0.0
    %400 = vmatpush1.msra.mxu0 0.0
    %401 = vmatprep.subr.mxu0 0.0
    %402 = vmatpush1.msra.mxu0 0.0
    %403 = vmatprep.subr.mxu0 0.0
    %404 = vmatpush1.msra.mxu0 0.0
    %405 = vmatprep.subr.mxu0 0.0
    %406 = vmatpush1.msra.mxu0 0.0
    %407 = vmatprep.subr.mxu0 0.0
    %408 = vmatpush1.msra.mxu0 0.0
    %409 = vmatprep.subr.mxu0 0.0
    %410 = vmatpush1.msra.mxu0 0.0
    %411 = vmatprep.subr.mxu0 0.0
    %412 = vmatpush1.msra.mxu0 0.0
    %413 = vmatprep.subr.mxu0 0.0
    %414 = vmatpush1.msra.mxu0 0.0
    %415 = vmatprep.subr.mxu0 0.0
    %416 = vmatpush1.msra.mxu0 0.0
    %417 = vmatprep.subr.mxu0 0.0
    %418 = vmatpush1.msra.mxu0 0.0
    %419 = vmatprep.subr.mxu0 0.0
    %420 = vmatpush1.msra.mxu0 0.0
    %421 = vmatprep.subr.mxu0 0.0
    %422 = vmatpush1.msra.mxu0 0.0
    %423 = vmatprep.subr.mxu0 0.0
    %424 = vmatpush1.msra.mxu0 0.0
    %425 = vmatprep.subr.mxu0 0.0
    %426 = vmatpush1.msra.mxu0 0.0
    %427 = vmatprep.subr.mxu0 0.0
    %428 = vmatpush1.msra.mxu0 0.0
    %429 = vmatprep.subr.mxu0 0.0
    %430 = vmatpush1.msra.mxu0 0.0
    %431 = vmatprep.subr.mxu0 0.0
    %432 = vmatpush1.msra.mxu0 0.0
    %433 = vmatprep.subr.mxu0 0.0
    %434 = vmatpush1.msra.mxu0 0.0
    %435 = vmatprep.mubr.f32.mxu0 0.0
    %436 = vmatmul.mubr.f32.gmra.mrb[0].mxu0 %v86
    %v437 = vpop.f32.mrb[0].mxu0
    %v438 = vadd.f32 0.0, %v437
    %v439 = vpop.f32.mrb[0].mxu0
    %440 = vdwg.mxu0
    %441 = vmatprep.subr.mxu0 0.0
    %442 = vmatpush1.msra.mxu0 %v34
    %443 = vmatprep.subr.mxu0 0.0
    %444 = vmatpush1.msra.mxu0 %v35
    %445 = vmatprep.subr.mxu0 0.0
    %446 = vmatpush1.msra.mxu0 %v36
    %447 = vmatprep.subr.mxu0 0.0
    %448 = vmatpush1.msra.mxu0 %v37
    %449 = vmatprep.subr.mxu0 0.0
    %450 = vmatpush1.msra.mxu0 0.0
    %451 = vmatprep.subr.mxu0 0.0
    %452 = vmatpush1.msra.mxu0 0.0
    %453 = vmatprep.subr.mxu0 0.0
    %454 = vmatpush1.msra.mxu0 0.0
    %455 = vmatprep.subr.mxu0 0.0
    %456 = vmatpush1.msra.mxu0 0.0
    %457 = vmatprep.subr.mxu0 0.0
    %458 = vmatpush1.msra.mxu0 0.0
    %459 = vmatprep.subr.mxu0 0.0
    %460 = vmatpush1.msra.mxu0 0.0
    %461 = vmatprep.subr.mxu0 0.0
    %462 = vmatpush1.msra.mxu0 0.0
    %463 = vmatprep.subr.mxu0 0.0
    %464 = vmatpush1.msra.mxu0 0.0
    %465 = vmatprep.subr.mxu0 0.0
    %466 = vmatpush1.msra.mxu0 0.0
    %467 = vmatprep.subr.mxu0 0.0
    %468 = vmatpush1.msra.mxu0 0.0
    %469 = vmatprep.subr.mxu0 0.0
    %470 = vmatpush1.msra.mxu0 0.0
    %471 = vmatprep.subr.mxu0 0.0
    %472 = vmatpush1.msra.mxu0 0.0
    %473 = vmatprep.subr.mxu0 0.0
    %474 = vmatpush1.msra.mxu0 0.0
    %475 = vmatprep.subr.mxu0 0.0
    %476 = vmatpush1.msra.mxu0 0.0
    %477 = vmatprep.subr.mxu0 0.0
    %478 = vmatpush1.msra.mxu0 0.0
    %479 = vmatprep.subr.mxu0 0.0
    %480 = vmatpush1.msra.mxu0 0.0
    %481 = vmatprep.subr.mxu0 0.0
    %482 = vmatpush1.msra.mxu0 0.0
    %483 = vmatprep.subr.mxu0 0.0
    %484 = vmatpush1.msra.mxu0 0.0
    %485 = vmatprep.subr.mxu0 0.0
    %486 = vmatpush1.msra.mxu0 0.0
    %487 = vmatprep.subr.mxu0 0.0
    %488 = vmatpush1.msra.mxu0 0.0
    %489 = vmatprep.subr.mxu0 0.0
    %490 = vmatpush1.msra.mxu0 0.0
    %491 = vmatprep.subr.mxu0 0.0
    %492 = vmatpush1.msra.mxu0 0.0
    %493 = vmatprep.subr.mxu0 0.0
    %494 = vmatpush1.msra.mxu0 0.0
    %495 = vmatprep.subr.mxu0 0.0
    %496 = vmatpush1.msra.mxu0 0.0
    %497 = vmatprep.subr.mxu0 0.0
    %498 = vmatpush1.msra.mxu0 0.0
    %499 = vmatprep.subr.mxu0 0.0
    %500 = vmatpush1.msra.mxu0 0.0
    %501 = vmatprep.subr.mxu0 0.0
    %502 = vmatpush1.msra.mxu0 0.0
    %503 = vmatprep.subr.mxu0 0.0
    %504 = vmatpush1.msra.mxu0 0.0
    %505 = vmatprep.mubr.f32.mxu0 0.0
    %506 = vmatmul.mubr.f32.gmra.mrb[0].mxu0 %v159
    %v507 = vpop.f32.mrb[0].mxu0
    %v508 = vadd.f32 0.0, %v507
    %v509 = vpop.f32.mrb[0].mxu0
    %510 = vdwg.mxu0
    %511 = vmatprep.subr.mxu0 0.0
    %512 = vmatpush1.msra.mxu0 %v39
    %513 = vmatprep.subr.mxu0 0.0
    %514 = vmatpush1.msra.mxu0 %v40
    %515 = vmatprep.subr.mxu0 0.0
    %516 = vmatpush1.msra.mxu0 %v41
    %517 = vmatprep.subr.mxu0 0.0
    %518 = vmatpush1.msra.mxu0 %v42
    %519 = vmatprep.subr.mxu0 0.0
    %520 = vmatpush1.msra.mxu0 0.0
    %521 = vmatprep.subr.mxu0 0.0
    %522 = vmatpush1.msra.mxu0 0.0
    %523 = vmatprep.subr.mxu0 0.0
    %524 = vmatpush1.msra.mxu0 0.0
    %525 = vmatprep.subr.mxu0 0.0
    %526 = vmatpush1.msra.mxu0 0.0
    %527 = vmatprep.subr.mxu0 0.0
    %528 = vmatpush1.msra.mxu0 0.0
    %529 = vmatprep.subr.mxu0 0.0
    %530 = vmatpush1.msra.mxu0 0.0
    %531 = vmatprep.subr.mxu0 0.0
    %532 = vmatpush1.msra.mxu0 0.0
    %533 = vmatprep.subr.mxu0 0.0
    %534 = vmatpush1.msra.mxu0 0.0
    %535 = vmatprep.subr.mxu0 0.0
    %536 = vmatpush1.msra.mxu0 0.0
    %537 = vmatprep.subr.mxu0 0.0
    %538 = vmatpush1.msra.mxu0 0.0
    %539 = vmatprep.subr.mxu0 0.0
    %540 = vmatpush1.msra.mxu0 0.0
    %541 = vmatprep.subr.mxu0 0.0
    %542 = vmatpush1.msra.mxu0 0.0
    %543 = vmatprep.subr.mxu0 0.0
    %544 = vmatpush1.msra.mxu0 0.0
    %545 = vmatprep.subr.mxu0 0.0
    %546 = vmatpush1.msra.mxu0 0.0
    %547 = vmatprep.subr.mxu0 0.0
    %548 = vmatpush1.msra.mxu0 0.0
    %549 = vmatprep.subr.mxu0 0.0
    %550 = vmatpush1.msra.mxu0 0.0
    %551 = vmatprep.subr.mxu0 0.0
    %552 = vmatpush1.msra.mxu0 0.0
    %553 = vmatprep.subr.mxu0 0.0
    %554 = vmatpush1.msra.mxu0 0.0
    %555 = vmatprep.subr.mxu0 0.0
    %556 = vmatpush1.msra.mxu0 0.0
    %557 = vmatprep.subr.mxu0 0.0
    %558 = vmatpush1.msra.mxu0 0.0
    %559 = vmatprep.subr.mxu0 0.0
    %560 = vmatpush1.msra.mxu0 0.0
    %561 = vmatprep.subr.mxu0 0.0
    %562 = vmatpush1.msra.mxu0 0.0
    %563 = vmatprep.subr.mxu0 0.0
    %564 = vmatpush1.msra.mxu0 0.0
    %565 = vmatprep.subr.mxu0 0.0
    %566 = vmatpush1.msra.mxu0 0.0
    %567 = vmatprep.subr.mxu0 0.0
    %568 = vmatpush1.msra.mxu0 0.0
    %569 = vmatprep.subr.mxu0 0.0
    %570 = vmatpush1.msra.mxu0 0.0
    %571 = vmatprep.subr.mxu0 0.0
    %572 = vmatpush1.msra.mxu0 0.0
    %573 = vmatprep.subr.mxu0 0.0
    %574 = vmatpush1.msra.mxu0 0.0
    %575 = vmatprep.mubr.f32.mxu0 0.0
    %576 = vmatmul.mubr.f32.gmra.mrb[0].mxu0 %v86
    %v577 = vpop.f32.mrb[0].mxu0
    %v578 = vadd.f32 0.0, %v577
    %v579 = vpop.f32.mrb[0].mxu0
    %580 = vdwg.mxu0
    %581 = vmatprep.subr.mxu0 0.0
    %582 = vmatpush1.msra.mxu0 %v39
    %583 = vmatprep.subr.mxu0 0.0
    %584 = vmatpush1.msra.mxu0 %v40
    %585 = vmatprep.subr.mxu0 0.0
    %586 = vmatpush1.msra.mxu0 %v41
    %587 = vmatprep.subr.mxu0 0.0
    %588 = vmatpush1.msra.mxu0 %v42
    %589 = vmatprep.subr.mxu0 0.0
    %590 = vmatpush1.msra.mxu0 0.0
    %591 = vmatprep.subr.mxu0 0.0
    %592 = vmatpush1.msra.mxu0 0.0
    %593 = vmatprep.subr.mxu0 0.0
    %594 = vmatpush1.msra.mxu0 0.0
    %595 = vmatprep.subr.mxu0 0.0
    %596 = vmatpush1.msra.mxu0 0.0
    %597 = vmatprep.subr.mxu0 0.0
    %598 = vmatpush1.msra.mxu0 0.0
    %599 = vmatprep.subr.mxu0 0.0
    %600 = vmatpush1.msra.mxu0 0.0
    %601 = vmatprep.subr.mxu0 0.0
    %602 = vmatpush1.msra.mxu0 0.0
    %603 = vmatprep.subr.mxu0 0.0
    %604 = vmatpush1.msra.mxu0 0.0
    %605 = vmatprep.subr.mxu0 0.0
    %606 = vmatpush1.msra.mxu0 0.0
    %607 = vmatprep.subr.mxu0 0.0
    %608 = vmatpush1.msra.mxu0 0.0
    %609 = vmatprep.subr.mxu0 0.0
    %610 = vmatpush1.msra.mxu0 0.0
    %611 = vmatprep.subr.mxu0 0.0
    %612 = vmatpush1.msra.mxu0 0.0
    %613 = vmatprep.subr.mxu0 0.0
    %614 = vmatpush1.msra.mxu0 0.0
    %615 = vmatprep.subr.mxu0 0.0
    %616 = vmatpush1.msra.mxu0 0.0
    %617 = vmatprep.subr.mxu0 0.0
    %618 = vmatpush1.msra.mxu0 0.0
    %619 = vmatprep.subr.mxu0 0.0
    %620 = vmatpush1.msra.mxu0 0.0
    %621 = vmatprep.subr.mxu0 0.0
    %622 = vmatpush1.msra.mxu0 0.0
    %623 = vmatprep.subr.mxu0 0.0
    %624 = vmatpush1.msra.mxu0 0.0
    %625 = vmatprep.subr.mxu0 0.0
    %626 = vmatpush1.msra.mxu0 0.0
    %627 = vmatprep.subr.mxu0 0.0
    %628 = vmatpush1.msra.mxu0 0.0
    %629 = vmatprep.subr.mxu0 0.0
    %630 = vmatpush1.msra.mxu0 0.0
    %631 = vmatprep.subr.mxu0 0.0
    %632 = vmatpush1.msra.mxu0 0.0
    %633 = vmatprep.subr.mxu0 0.0
    %634 = vmatpush1.msra.mxu0 0.0
    %635 = vmatprep.subr.mxu0 0.0
    %636 = vmatpush1.msra.mxu0 0.0
    %637 = vmatprep.subr.mxu0 0.0
    %638 = vmatpush1.msra.mxu0 0.0
    %639 = vmatprep.subr.mxu0 0.0
    %640 = vmatpush1.msra.mxu0 0.0
    %641 = vmatprep.subr.mxu0 0.0
    %642 = vmatpush1.msra.mxu0 0.0
    %643 = vmatprep.subr.mxu0 0.0
    %644 = vmatpush1.msra.mxu0 0.0
    %645 = vmatprep.mubr.f32.mxu0 0.0
    %646 = vmatmul.mubr.f32.gmra.mrb[0].mxu0 %v159
    %v647 = vpop.f32.mrb[0].mxu0
    %v648 = vadd.f32 0.0, %v647
    %v649 = vpop.f32.mrb[0].mxu0
    %650 = vdwg.mxu0
    %v651 = vlaneseq
    %v652 = vshrl.u32 %v651, 7
    %v653 = vsub.s32 0, %v652
    %v654 = vrot.slane %v28, %v653
    %v655 = vlaneseq
    %v656 = vshrl.u32 %v655, 7
    %v657 = vsub.s32 0, %v656
    %v658 = vrot.slane %v33, %v657
    %v659 = vlaneseq
    %v660 = vshrl.u32 %v659, 7
    %v661 = vsub.s32 0, %v660
    %v662 = vrot.slane %v38, %v661
    %v663 = vlaneseq
    %v664 = vshrl.u32 %v663, 7
    %v665 = vsub.s32 0, %v664
    %v666 = vrot.slane %v43, %v665
    %v667 = vadd.f32 %v155, %v654
    %v668 = vadd.f32 %v228, %v654
    %v669 = vadd.f32 %v298, %v658
    %v670 = vadd.f32 %v368, %v658
    %v671 = vadd.f32 %v438, %v662
    %v672 = vadd.f32 %v508, %v662
    %v673 = vadd.f32 %v578, %v666
    %v674 = vadd.f32 %v648, %v666
    %v676 = vsel %vm84, %v20, 0
    %678 = vmatprep.subr.mxu0 0.0
    %679 = vmatpush1.msra.mxu0 %v44
    %680 = vmatprep.subr.mxu0 0.0
    %681 = vmatpush1.msra.mxu0 %v45
    %682 = vmatprep.subr.mxu0 0.0
    %683 = vmatpush1.msra.mxu0 %v46
    %684 = vmatprep.subr.mxu0 0.0
    %685 = vmatpush1.msra.mxu0 %v47
    %686 = vmatprep.subr.mxu0 0.0
    %687 = vmatpush1.msra.mxu0 0.0
    %688 = vmatprep.subr.mxu0 0.0
    %689 = vmatpush1.msra.mxu0 0.0
    %690 = vmatprep.subr.mxu0 0.0
    %691 = vmatpush1.msra.mxu0 0.0
    %692 = vmatprep.subr.mxu0 0.0
    %693 = vmatpush1.msra.mxu0 0.0
    %694 = vmatprep.subr.mxu0 0.0
    %695 = vmatpush1.msra.mxu0 0.0
    %696 = vmatprep.subr.mxu0 0.0
    %697 = vmatpush1.msra.mxu0 0.0
    %698 = vmatprep.subr.mxu0 0.0
    %699 = vmatpush1.msra.mxu0 0.0
    %700 = vmatprep.subr.mxu0 0.0
    %701 = vmatpush1.msra.mxu0 0.0
    %702 = vmatprep.subr.mxu0 0.0
    %703 = vmatpush1.msra.mxu0 0.0
    %704 = vmatprep.subr.mxu0 0.0
    %705 = vmatpush1.msra.mxu0 0.0
    %706 = vmatprep.subr.mxu0 0.0
    %707 = vmatpush1.msra.mxu0 0.0
    %708 = vmatprep.subr.mxu0 0.0
    %709 = vmatpush1.msra.mxu0 0.0
    %710 = vmatprep.subr.mxu0 0.0
    %711 = vmatpush1.msra.mxu0 0.0
    %712 = vmatprep.subr.mxu0 0.0
    %713 = vmatpush1.msra.mxu0 0.0
    %714 = vmatprep.subr.mxu0 0.0
    %715 = vmatpush1.msra.mxu0 0.0
    %716 = vmatprep.subr.mxu0 0.0
    %717 = vmatpush1.msra.mxu0 0.0
    %718 = vmatprep.subr.mxu0 0.0
    %719 = vmatpush1.msra.mxu0 0.0
    %720 = vmatprep.subr.mxu0 0.0
    %721 = vmatpush1.msra.mxu0 0.0
    %722 = vmatprep.subr.mxu0 0.0
    %723 = vmatpush1.msra.mxu0 0.0
    %724 = vmatprep.subr.mxu0 0.0
    %725 = vmatpush1.msra.mxu0 0.0
    %726 = vmatprep.subr.mxu0 0.0
    %727 = vmatpush1.msra.mxu0 0.0
    %728 = vmatprep.subr.mxu0 0.0
    %729 = vmatpush1.msra.mxu0 0.0
    %730 = vmatprep.subr.mxu0 0.0
    %731 = vmatpush1.msra.mxu0 0.0
    %732 = vmatprep.subr.mxu0 0.0
    %733 = vmatpush1.msra.mxu0 0.0
    %734 = vmatprep.subr.mxu0 0.0
    %735 = vmatpush1.msra.mxu0 0.0
    %736 = vmatprep.subr.mxu0 0.0
    %737 = vmatpush1.msra.mxu0 0.0
    %738 = vmatprep.subr.mxu0 0.0
    %739 = vmatpush1.msra.mxu0 0.0
    %740 = vmatprep.subr.mxu0 0.0
    %741 = vmatpush1.msra.mxu0 0.0
    %742 = vmatprep.mubr.f32.mxu0 0.0
    %743 = vmatmul.mubr.f32.gmra.mrb[0].mxu0 %v676
    %v744 = vpop.f32.mrb[0].mxu0
    %v745 = vadd.f32 0.0, %v744
    %v746 = vpop.f32.mrb[0].mxu0
    %747 = vdwg.mxu0
    %v749 = vsel %vm84, %v21, 0
    %751 = vmatprep.subr.mxu0 0.0
    %752 = vmatpush1.msra.mxu0 %v44
    %753 = vmatprep.subr.mxu0 0.0
    %754 = vmatpush1.msra.mxu0 %v45
    %755 = vmatprep.subr.mxu0 0.0
    %756 = vmatpush1.msra.mxu0 %v46
    %757 = vmatprep.subr.mxu0 0.0
    %758 = vmatpush1.msra.mxu0 %v47
    %759 = vmatprep.subr.mxu0 0.0
    %760 = vmatpush1.msra.mxu0 0.0
    %761 = vmatprep.subr.mxu0 0.0
    %762 = vmatpush1.msra.mxu0 0.0
    %763 = vmatprep.subr.mxu0 0.0
    %764 = vmatpush1.msra.mxu0 0.0
    %765 = vmatprep.subr.mxu0 0.0
    %766 = vmatpush1.msra.mxu0 0.0
    %767 = vmatprep.subr.mxu0 0.0
    %768 = vmatpush1.msra.mxu0 0.0
    %769 = vmatprep.subr.mxu0 0.0
    %770 = vmatpush1.msra.mxu0 0.0
    %771 = vmatprep.subr.mxu0 0.0
    %772 = vmatpush1.msra.mxu0 0.0
    %773 = vmatprep.subr.mxu0 0.0
    %774 = vmatpush1.msra.mxu0 0.0
    %775 = vmatprep.subr.mxu0 0.0
    %776 = vmatpush1.msra.mxu0 0.0
    %777 = vmatprep.subr.mxu0 0.0
    %778 = vmatpush1.msra.mxu0 0.0
    %779 = vmatprep.subr.mxu0 0.0
    %780 = vmatpush1.msra.mxu0 0.0
    %781 = vmatprep.subr.mxu0 0.0
    %782 = vmatpush1.msra.mxu0 0.0
    %783 = vmatprep.subr.mxu0 0.0
    %784 = vmatpush1.msra.mxu0 0.0
    %785 = vmatprep.subr.mxu0 0.0
    %786 = vmatpush1.msra.mxu0 0.0
    %787 = vmatprep.subr.mxu0 0.0
    %788 = vmatpush1.msra.mxu0 0.0
    %789 = vmatprep.subr.mxu0 0.0
    %790 = vmatpush1.msra.mxu0 0.0
    %791 = vmatprep.subr.mxu0 0.0
    %792 = vmatpush1.msra.mxu0 0.0
    %793 = vmatprep.subr.mxu0 0.0
    %794 = vmatpush1.msra.mxu0 0.0
    %795 = vmatprep.subr.mxu0 0.0
    %796 = vmatpush1.msra.mxu0 0.0
    %797 = vmatprep.subr.mxu0 0.0
    %798 = vmatpush1.msra.mxu0 0.0
    %799 = vmatprep.subr.mxu0 0.0
    %800 = vmatpush1.msra.mxu0 0.0
    %801 = vmatprep.subr.mxu0 0.0
    %802 = vmatpush1.msra.mxu0 0.0
    %803 = vmatprep.subr.mxu0 0.0
    %804 = vmatpush1.msra.mxu0 0.0
    %805 = vmatprep.subr.mxu0 0.0
    %806 = vmatpush1.msra.mxu0 0.0
    %807 = vmatprep.subr.mxu0 0.0
    %808 = vmatpush1.msra.mxu0 0.0
    %809 = vmatprep.subr.mxu0 0.0
    %810 = vmatpush1.msra.mxu0 0.0
    %811 = vmatprep.subr.mxu0 0.0
    %812 = vmatpush1.msra.mxu0 0.0
    %813 = vmatprep.subr.mxu0 0.0
    %814 = vmatpush1.msra.mxu0 0.0
    %815 = vmatprep.mubr.f32.mxu0 0.0
    %816 = vmatmul.mubr.f32.gmra.mrb[0].mxu0 %v749
    %v817 = vpop.f32.mrb[0].mxu0
    %v818 = vadd.f32 0.0, %v817
    %v819 = vpop.f32.mrb[0].mxu0
    %820 = vdwg.mxu0
    %821 = vmatprep.subr.mxu0 0.0
    %822 = vmatpush1.msra.mxu0 %v49
    %823 = vmatprep.subr.mxu0 0.0
    %824 = vmatpush1.msra.mxu0 %v50
    %825 = vmatprep.subr.mxu0 0.0
    %826 = vmatpush1.msra.mxu0 %v51
    %827 = vmatprep.subr.mxu0 0.0
    %828 = vmatpush1.msra.mxu0 %v52
    %829 = vmatprep.subr.mxu0 0.0
    %830 = vmatpush1.msra.mxu0 0.0
    %831 = vmatprep.subr.mxu0 0.0
    %832 = vmatpush1.msra.mxu0 0.0
    %833 = vmatprep.subr.mxu0 0.0
    %834 = vmatpush1.msra.mxu0 0.0
    %835 = vmatprep.subr.mxu0 0.0
    %836 = vmatpush1.msra.mxu0 0.0
    %837 = vmatprep.subr.mxu0 0.0
    %838 = vmatpush1.msra.mxu0 0.0
    %839 = vmatprep.subr.mxu0 0.0
    %840 = vmatpush1.msra.mxu0 0.0
    %841 = vmatprep.subr.mxu0 0.0
    %842 = vmatpush1.msra.mxu0 0.0
    %843 = vmatprep.subr.mxu0 0.0
    %844 = vmatpush1.msra.mxu0 0.0
    %845 = vmatprep.subr.mxu0 0.0
    %846 = vmatpush1.msra.mxu0 0.0
    %847 = vmatprep.subr.mxu0 0.0
    %848 = vmatpush1.msra.mxu0 0.0
    %849 = vmatprep.subr.mxu0 0.0
    %850 = vmatpush1.msra.mxu0 0.0
    %851 = vmatprep.subr.mxu0 0.0
    %852 = vmatpush1.msra.mxu0 0.0
    %853 = vmatprep.subr.mxu0 0.0
    %854 = vmatpush1.msra.mxu0 0.0
    %855 = vmatprep.subr.mxu0 0.0
    %856 = vmatpush1.msra.mxu0 0.0
    %857 = vmatprep.subr.mxu0 0.0
    %858 = vmatpush1.msra.mxu0 0.0
    %859 = vmatprep.subr.mxu0 0.0
    %860 = vmatpush1.msra.mxu0 0.0
    %861 = vmatprep.subr.mxu0 0.0
    %862 = vmatpush1.msra.mxu0 0.0
    %863 = vmatprep.subr.mxu0 0.0
    %864 = vmatpush1.msra.mxu0 0.0
    %865 = vmatprep.subr.mxu0 0.0
    %866 = vmatpush1.msra.mxu0 0.0
    %867 = vmatprep.subr.mxu0 0.0
    %868 = vmatpush1.msra.mxu0 0.0
    %869 = vmatprep.subr.mxu0 0.0
    %870 = vmatpush1.msra.mxu0 0.0
    %871 = vmatprep.subr.mxu0 0.0
    %872 = vmatpush1.msra.mxu0 0.0
    %873 = vmatprep.subr.mxu0 0.0
    %874 = vmatpush1.msra.mxu0 0.0
    %875 = vmatprep.subr.mxu0 0.0
    %876 = vmatpush1.msra.mxu0 0.0
    %877 = vmatprep.subr.mxu0 0.0
    %878 = vmatpush1.msra.mxu0 0.0
    %879 = vmatprep.subr.mxu0 0.0
    %880 = vmatpush1.msra.mxu0 0.0
    %881 = vmatprep.subr.mxu0 0.0
    %882 = vmatpush1.msra.mxu0 0.0
    %883 = vmatprep.subr.mxu0 0.0
    %884 = vmatpush1.msra.mxu0 0.0
    %885 = vmatprep.mubr.f32.mxu0 0.0
    %886 = vmatmul.mubr.f32.gmra.mrb[0].mxu0 %v676
    %v887 = vpop.f32.mrb[0].mxu0
    %v888 = vadd.f32 0.0, %v887
    %v889 = vpop.f32.mrb[0].mxu0
    %890 = vdwg.mxu0
    %891 = vmatprep.subr.mxu0 0.0
    %892 = vmatpush1.msra.mxu0 %v49
    %893 = vmatprep.subr.mxu0 0.0
    %894 = vmatpush1.msra.mxu0 %v50
    %895 = vmatprep.subr.mxu0 0.0
    %896 = vmatpush1.msra.mxu0 %v51
    %897 = vmatprep.subr.mxu0 0.0
    %898 = vmatpush1.msra.mxu0 %v52
    %899 = vmatprep.subr.mxu0 0.0
    %900 = vmatpush1.msra.mxu0 0.0
    %901 = vmatprep.subr.mxu0 0.0
    %902 = vmatpush1.msra.mxu0 0.0
    %903 = vmatprep.subr.mxu0 0.0
    %904 = vmatpush1.msra.mxu0 0.0
    %905 = vmatprep.subr.mxu0 0.0
    %906 = vmatpush1.msra.mxu0 0.0
    %907 = vmatprep.subr.mxu0 0.0
    %908 = vmatpush1.msra.mxu0 0.0
    %909 = vmatprep.subr.mxu0 0.0
    %910 = vmatpush1.msra.mxu0 0.0
    %911 = vmatprep.subr.mxu0 0.0
    %912 = vmatpush1.msra.mxu0 0.0
    %913 = vmatprep.subr.mxu0 0.0
    %914 = vmatpush1.msra.mxu0 0.0
    %915 = vmatprep.subr.mxu0 0.0
    %916 = vmatpush1.msra.mxu0 0.0
    %917 = vmatprep.subr.mxu0 0.0
    %918 = vmatpush1.msra.mxu0 0.0
    %919 = vmatprep.subr.mxu0 0.0
    %920 = vmatpush1.msra.mxu0 0.0
    %921 = vmatprep.subr.mxu0 0.0
    %922 = vmatpush1.msra.mxu0 0.0
    %923 = vmatprep.subr.mxu0 0.0
    %924 = vmatpush1.msra.mxu0 0.0
    %925 = vmatprep.subr.mxu0 0.0
    %926 = vmatpush1.msra.mxu0 0.0
    %927 = vmatprep.subr.mxu0 0.0
    %928 = vmatpush1.msra.mxu0 0.0
    %929 = vmatprep.subr.mxu0 0.0
    %930 = vmatpush1.msra.mxu0 0.0
    %931 = vmatprep.subr.mxu0 0.0
    %932 = vmatpush1.msra.mxu0 0.0
    %933 = vmatprep.subr.mxu0 0.0
    %934 = vmatpush1.msra.mxu0 0.0
    %935 = vmatprep.subr.mxu0 0.0
    %936 = vmatpush1.msra.mxu0 0.0
    %937 = vmatprep.subr.mxu0 0.0
    %938 = vmatpush1.msra.mxu0 0.0
    %939 = vmatprep.subr.mxu0 0.0
    %940 = vmatpush1.msra.mxu0 0.0
    %941 = vmatprep.subr.mxu0 0.0
    %942 = vmatpush1.msra.mxu0 0.0
    %943 = vmatprep.subr.mxu0 0.0
    %944 = vmatpush1.msra.mxu0 0.0
    %945 = vmatprep.subr.mxu0 0.0
    %946 = vmatpush1.msra.mxu0 0.0
    %947 = vmatprep.subr.mxu0 0.0
    %948 = vmatpush1.msra.mxu0 0.0
    %949 = vmatprep.subr.mxu0 0.0
    %950 = vmatpush1.msra.mxu0 0.0
    %951 = vmatprep.subr.mxu0 0.0
    %952 = vmatpush1.msra.mxu0 0.0
    %953 = vmatprep.subr.mxu0 0.0
    %954 = vmatpush1.msra.mxu0 0.0
    %955 = vmatprep.mubr.f32.mxu0 0.0
    %956 = vmatmul.mubr.f32.gmra.mrb[0].mxu0 %v749
    %v957 = vpop.f32.mrb[0].mxu0
    %v958 = vadd.f32 0.0, %v957
    %v959 = vpop.f32.mrb[0].mxu0
    %960 = vdwg.mxu0
    %961 = vmatprep.subr.mxu0 0.0
    %962 = vmatpush1.msra.mxu0 %v54
    %963 = vmatprep.subr.mxu0 0.0
    %964 = vmatpush1.msra.mxu0 %v55
    %965 = vmatprep.subr.mxu0 0.0
    %966 = vmatpush1.msra.mxu0 %v56
    %967 = vmatprep.subr.mxu0 0.0
    %968 = vmatpush1.msra.mxu0 %v57
    %969 = vmatprep.subr.mxu0 0.0
    %970 = vmatpush1.msra.mxu0 0.0
    %971 = vmatprep.subr.mxu0 0.0
    %972 = vmatpush1.msra.mxu0 0.0
    %973 = vmatprep.subr.mxu0 0.0
    %974 = vmatpush1.msra.mxu0 0.0
    %975 = vmatprep.subr.mxu0 0.0
    %976 = vmatpush1.msra.mxu0 0.0
    %977 = vmatprep.subr.mxu0 0.0
    %978 = vmatpush1.msra.mxu0 0.0
    %979 = vmatprep.subr.mxu0 0.0
    %980 = vmatpush1.msra.mxu0 0.0
    %981 = vmatprep.subr.mxu0 0.0
    %982 = vmatpush1.msra.mxu0 0.0
    %983 = vmatprep.subr.mxu0 0.0
    %984 = vmatpush1.msra.mxu0 0.0
    %985 = vmatprep.subr.mxu0 0.0
    %986 = vmatpush1.msra.mxu0 0.0
    %987 = vmatprep.subr.mxu0 0.0
    %988 = vmatpush1.msra.mxu0 0.0
    %989 = vmatprep.subr.mxu0 0.0
    %990 = vmatpush1.msra.mxu0 0.0
    %991 = vmatprep.subr.mxu0 0.0
    %992 = vmatpush1.msra.mxu0 0.0
    %993 = vmatprep.subr.mxu0 0.0
    %994 = vmatpush1.msra.mxu0 0.0
    %995 = vmatprep.subr.mxu0 0.0
    %996 = vmatpush1.msra.mxu0 0.0
    %997 = vmatprep.subr.mxu0 0.0
    %998 = vmatpush1.msra.mxu0 0.0
    %999 = vmatprep.subr.mxu0 0.0
    %1000 = vmatpush1.msra.mxu0 0.0
    %1001 = vmatprep.subr.mxu0 0.0
    %1002 = vmatpush1.msra.mxu0 0.0
    %1003 = vmatprep.subr.mxu0 0.0
    %1004 = vmatpush1.msra.mxu0 0.0
    %1005 = vmatprep.subr.mxu0 0.0
    %1006 = vmatpush1.msra.mxu0 0.0
    %1007 = vmatprep.subr.mxu0 0.0
    %1008 = vmatpush1.msra.mxu0 0.0
    %1009 = vmatprep.subr.mxu0 0.0
    %1010 = vmatpush1.msra.mxu0 0.0
    %1011 = vmatprep.subr.mxu0 0.0
    %1012 = vmatpush1.msra.mxu0 0.0
    %1013 = vmatprep.subr.mxu0 0.0
    %1014 = vmatpush1.msra.mxu0 0.0
    %1015 = vmatprep.subr.mxu0 0.0
    %1016 = vmatpush1.msra.mxu0 0.0
    %1017 = vmatprep.subr.mxu0 0.0
    %1018 = vmatpush1.msra.mxu0 0.0
    %1019 = vmatprep.subr.mxu0 0.0
    %1020 = vmatpush1.msra.mxu0 0.0
    %1021 = vmatprep.subr.mxu0 0.0
    %1022 = vmatpush1.msra.mxu0 0.0
    %1023 = vmatprep.subr.mxu0 0.0
    %1024 = vmatpush1.msra.mxu0 0.0
    %1025 = vmatprep.mubr.f32.mxu0 0.0
    %1026 = vmatmul.mubr.f32.gmra.mrb[0].mxu0 %v676
    %v1027 = vpop.f32.mrb[0].mxu0
    %v1028 = vadd.f32 0.0, %v1027
    %v1029 = vpop.f32.mrb[0].mxu0
    %1030 = vdwg.mxu0
    %1031 = vmatprep.subr.mxu0 0.0
    %1032 = vmatpush1.msra.mxu0 %v54
    %1033 = vmatprep.subr.mxu0 0.0
    %1034 = vmatpush1.msra.mxu0 %v55
    %1035 = vmatprep.subr.mxu0 0.0
    %1036 = vmatpush1.msra.mxu0 %v56
    %1037 = vmatprep.subr.mxu0 0.0
    %1038 = vmatpush1.msra.mxu0 %v57
    %1039 = vmatprep.subr.mxu0 0.0
    %1040 = vmatpush1.msra.mxu0 0.0
    %1041 = vmatprep.subr.mxu0 0.0
    %1042 = vmatpush1.msra.mxu0 0.0
    %1043 = vmatprep.subr.mxu0 0.0
    %1044 = vmatpush1.msra.mxu0 0.0
    %1045 = vmatprep.subr.mxu0 0.0
    %1046 = vmatpush1.msra.mxu0 0.0
    %1047 = vmatprep.subr.mxu0 0.0
    %1048 = vmatpush1.msra.mxu0 0.0
    %1049 = vmatprep.subr.mxu0 0.0
    %1050 = vmatpush1.msra.mxu0 0.0
    %1051 = vmatprep.subr.mxu0 0.0
    %1052 = vmatpush1.msra.mxu0 0.0
    %1053 = vmatprep.subr.mxu0 0.0
    %1054 = vmatpush1.msra.mxu0 0.0
    %1055 = vmatprep.subr.mxu0 0.0
    %1056 = vmatpush1.msra.mxu0 0.0
    %1057 = vmatprep.subr.mxu0 0.0
    %1058 = vmatpush1.msra.mxu0 0.0
    %1059 = vmatprep.subr.mxu0 0.0
    %1060 = vmatpush1.msra.mxu0 0.0
    %1061 = vmatprep.subr.mxu0 0.0
    %1062 = vmatpush1.msra.mxu0 0.0
    %1063 = vmatprep.subr.mxu0 0.0
    %1064 = vmatpush1.msra.mxu0 0.0
    %1065 = vmatprep.subr.mxu0 0.0
    %1066 = vmatpush1.msra.mxu0 0.0
    %1067 = vmatprep.subr.mxu0 0.0
    %1068 = vmatpush1.msra.mxu0 0.0
    %1069 = vmatprep.subr.mxu0 0.0
    %1070 = vmatpush1.msra.mxu0 0.0
    %1071 = vmatprep.subr.mxu0 0.0
    %1072 = vmatpush1.msra.mxu0 0.0
    %1073 = vmatprep.subr.mxu0 0.0
    %1074 = vmatpush1.msra.mxu0 0.0
    %1075 = vmatprep.subr.mxu0 0.0
    %1076 = vmatpush1.msra.mxu0 0.0
    %1077 = vmatprep.subr.mxu0 0.0
    %1078 = vmatpush1.msra.mxu0 0.0
    %1079 = vmatprep.subr.mxu0 0.0
    %1080 = vmatpush1.msra.mxu0 0.0
    %1081 = vmatprep.subr.mxu0 0.0
    %1082 = vmatpush1.msra.mxu0 0.0
    %1083 = vmatprep.subr.mxu0 0.0
    %1084 = vmatpush1.msra.mxu0 0.0
    %1085 = vmatprep.subr.mxu0 0.0
    %1086 = vmatpush1.msra.mxu0 0.0
    %1087 = vmatprep.subr.mxu0 0.0
    %1088 = vmatpush1.msra.mxu0 0.0
    %1089 = vmatprep.subr.mxu0 0.0
    %1090 = vmatpush1.msra.mxu0 0.0
    %1091 = vmatprep.subr.mxu0 0.0
    %1092 = vmatpush1.msra.mxu0 0.0
    %1093 = vmatprep.subr.mxu0 0.0
    %1094 = vmatpush1.msra.mxu0 0.0
    %1095 = vmatprep.mubr.f32.mxu0 0.0
    %1096 = vmatmul.mubr.f32.gmra.mrb[0].mxu0 %v749
    %v1097 = vpop.f32.mrb[0].mxu0
    %v1098 = vadd.f32 0.0, %v1097
    %v1099 = vpop.f32.mrb[0].mxu0
    %1100 = vdwg.mxu0
    %1101 = vmatprep.subr.mxu0 0.0
    %1102 = vmatpush1.msra.mxu0 %v59
    %1103 = vmatprep.subr.mxu0 0.0
    %1104 = vmatpush1.msra.mxu0 %v60
    %1105 = vmatprep.subr.mxu0 0.0
    %1106 = vmatpush1.msra.mxu0 %v61
    %1107 = vmatprep.subr.mxu0 0.0
    %1108 = vmatpush1.msra.mxu0 %v62
    %1109 = vmatprep.subr.mxu0 0.0
    %1110 = vmatpush1.msra.mxu0 0.0
    %1111 = vmatprep.subr.mxu0 0.0
    %1112 = vmatpush1.msra.mxu0 0.0
    %1113 = vmatprep.subr.mxu0 0.0
    %1114 = vmatpush1.msra.mxu0 0.0
    %1115 = vmatprep.subr.mxu0 0.0
    %1116 = vmatpush1.msra.mxu0 0.0
    %1117 = vmatprep.subr.mxu0 0.0
    %1118 = vmatpush1.msra.mxu0 0.0
    %1119 = vmatprep.subr.mxu0 0.0
    %1120 = vmatpush1.msra.mxu0 0.0
    %1121 = vmatprep.subr.mxu0 0.0
    %1122 = vmatpush1.msra.mxu0 0.0
    %1123 = vmatprep.subr.mxu0 0.0
    %1124 = vmatpush1.msra.mxu0 0.0
    %1125 = vmatprep.subr.mxu0 0.0
    %1126 = vmatpush1.msra.mxu0 0.0
    %1127 = vmatprep.subr.mxu0 0.0
    %1128 = vmatpush1.msra.mxu0 0.0
    %1129 = vmatprep.subr.mxu0 0.0
    %1130 = vmatpush1.msra.mxu0 0.0
    %1131 = vmatprep.subr.mxu0 0.0
    %1132 = vmatpush1.msra.mxu0 0.0
    %1133 = vmatprep.subr.mxu0 0.0
    %1134 = vmatpush1.msra.mxu0 0.0
    %1135 = vmatprep.subr.mxu0 0.0
    %1136 = vmatpush1.msra.mxu0 0.0
    %1137 = vmatprep.subr.mxu0 0.0
    %1138 = vmatpush1.msra.mxu0 0.0
    %1139 = vmatprep.subr.mxu0 0.0
    %1140 = vmatpush1.msra.mxu0 0.0
    %1141 = vmatprep.subr.mxu0 0.0
    %1142 = vmatpush1.msra.mxu0 0.0
    %1143 = vmatprep.subr.mxu0 0.0
    %1144 = vmatpush1.msra.mxu0 0.0
    %1145 = vmatprep.subr.mxu0 0.0
    %1146 = vmatpush1.msra.mxu0 0.0
    %1147 = vmatprep.subr.mxu0 0.0
    %1148 = vmatpush1.msra.mxu0 0.0
    %1149 = vmatprep.subr.mxu0 0.0
    %1150 = vmatpush1.msra.mxu0 0.0
    %1151 = vmatprep.subr.mxu0 0.0
    %1152 = vmatpush1.msra.mxu0 0.0
    %1153 = vmatprep.subr.mxu0 0.0
    %1154 = vmatpush1.msra.mxu0 0.0
    %1155 = vmatprep.subr.mxu0 0.0
    %1156 = vmatpush1.msra.mxu0 0.0
    %1157 = vmatprep.subr.mxu0 0.0
    %1158 = vmatpush1.msra.mxu0 0.0
    %1159 = vmatprep.subr.mxu0 0.0
    %1160 = vmatpush1.msra.mxu0 0.0
    %1161 = vmatprep.subr.mxu0 0.0
    %1162 = vmatpush1.msra.mxu0 0.0
    %1163 = vmatprep.subr.mxu0 0.0
    %1164 = vmatpush1.msra.mxu0 0.0
    %1165 = vmatprep.mubr.f32.mxu0 0.0
    %1166 = vmatmul.mubr.f32.gmra.mrb[0].mxu0 %v676
    %v1167 = vpop.f32.mrb[0].mxu0
    %v1168 = vadd.f32 0.0, %v1167
    %v1169 = vpop.f32.mrb[0].mxu0
    %1170 = vdwg.mxu0
    %1171 = vmatprep.subr.mxu0 0.0
    %1172 = vmatpush1.msra.mxu0 %v59
    %1173 = vmatprep.subr.mxu0 0.0
    %1174 = vmatpush1.msra.mxu0 %v60
    %1175 = vmatprep.subr.mxu0 0.0
    %1176 = vmatpush1.msra.mxu0 %v61
    %1177 = vmatprep.subr.mxu0 0.0
    %1178 = vmatpush1.msra.mxu0 %v62
    %1179 = vmatprep.subr.mxu0 0.0
    %1180 = vmatpush1.msra.mxu0 0.0
    %1181 = vmatprep.subr.mxu0 0.0
    %1182 = vmatpush1.msra.mxu0 0.0
    %1183 = vmatprep.subr.mxu0 0.0
    %1184 = vmatpush1.msra.mxu0 0.0
    %1185 = vmatprep.subr.mxu0 0.0
    %1186 = vmatpush1.msra.mxu0 0.0
    %1187 = vmatprep.subr.mxu0 0.0
    %1188 = vmatpush1.msra.mxu0 0.0
    %1189 = vmatprep.subr.mxu0 0.0
    %1190 = vmatpush1.msra.mxu0 0.0
    %1191 = vmatprep.subr.mxu0 0.0
    %1192 = vmatpush1.msra.mxu0 0.0
    %1193 = vmatprep.subr.mxu0 0.0
    %1194 = vmatpush1.msra.mxu0 0.0
    %1195 = vmatprep.subr.mxu0 0.0
    %1196 = vmatpush1.msra.mxu0 0.0
    %1197 = vmatprep.subr.mxu0 0.0
    %1198 = vmatpush1.msra.mxu0 0.0
    %1199 = vmatprep.subr.mxu0 0.0
    %1200 = vmatpush1.msra.mxu0 0.0
    %1201 = vmatprep.subr.mxu0 0.0
    %1202 = vmatpush1.msra.mxu0 0.0
    %1203 = vmatprep.subr.mxu0 0.0
    %1204 = vmatpush1.msra.mxu0 0.0
    %1205 = vmatprep.subr.mxu0 0.0
    %1206 = vmatpush1.msra.mxu0 0.0
    %1207 = vmatprep.subr.mxu0 0.0
    %1208 = vmatpush1.msra.mxu0 0.0
    %1209 = vmatprep.subr.mxu0 0.0
    %1210 = vmatpush1.msra.mxu0 0.0
    %1211 = vmatprep.subr.mxu0 0.0
    %1212 = vmatpush1.msra.mxu0 0.0
    %1213 = vmatprep.subr.mxu0 0.0
    %1214 = vmatpush1.msra.mxu0 0.0
    %1215 = vmatprep.subr.mxu0 0.0
    %1216 = vmatpush1.msra.mxu0 0.0
    %1217 = vmatprep.subr.mxu0 0.0
    %1218 = vmatpush1.msra.mxu0 0.0
    %1219 = vmatprep.subr.mxu0 0.0
    %1220 = vmatpush1.msra.mxu0 0.0
    %1221 = vmatprep.subr.mxu0 0.0
    %1222 = vmatpush1.msra.mxu0 0.0
    %1223 = vmatprep.subr.mxu0 0.0
    %1224 = vmatpush1.msra.mxu0 0.0
    %1225 = vmatprep.subr.mxu0 0.0
    %1226 = vmatpush1.msra.mxu0 0.0
    %1227 = vmatprep.subr.mxu0 0.0
    %1228 = vmatpush1.msra.mxu0 0.0
    %1229 = vmatprep.subr.mxu0 0.0
    %1230 = vmatpush1.msra.mxu0 0.0
    %1231 = vmatprep.subr.mxu0 0.0
    %1232 = vmatpush1.msra.mxu0 0.0
    %1233 = vmatprep.subr.mxu0 0.0
    %1234 = vmatpush1.msra.mxu0 0.0
    %1235 = vmatprep.mubr.f32.mxu0 0.0
    %1236 = vmatmul.mubr.f32.gmra.mrb[0].mxu0 %v749
    %v1237 = vpop.f32.mrb[0].mxu0
    %v1238 = vadd.f32 0.0, %v1237
    %v1239 = vpop.f32.mrb[0].mxu0
    %1240 = vdwg.mxu0
    %v1241 = vlaneseq
    %v1242 = vshrl.u32 %v1241, 7
    %v1243 = vsub.s32 0, %v1242
    %v1244 = vrot.slane %v48, %v1243
    %v1245 = vlaneseq
    %v1246 = vshrl.u32 %v1245, 7
    %v1247 = vsub.s32 0, %v1246
    %v1248 = vrot.slane %v53, %v1247
    %v1249 = vlaneseq
    %v1250 = vshrl.u32 %v1249, 7
    %v1251 = vsub.s32 0, %v1250
    %v1252 = vrot.slane %v58, %v1251
    %v1253 = vlaneseq
    %v1254 = vshrl.u32 %v1253, 7
    %v1255 = vsub.s32 0, %v1254
    %v1256 = vrot.slane %v63, %v1255
    %v1257 = vadd.f32 %v745, %v1244
    %v1258 = vadd.f32 %v818, %v1244
    %v1259 = vadd.f32 %v888, %v1248
    %v1260 = vadd.f32 %v958, %v1248
    %v1261 = vadd.f32 %v1028, %v1252
    %v1262 = vadd.f32 %v1098, %v1252
    %v1263 = vadd.f32 %v1168, %v1256
    %v1264 = vadd.f32 %v1238, %v1256
    %v1266 = vsel %vm84, %v22, 0
    %1268 = vmatprep.subr.mxu0 0.0
    %1269 = vmatpush1.msra.mxu0 %v64
    %1270 = vmatprep.subr.mxu0 0.0
    %1271 = vmatpush1.msra.mxu0 %v65
    %1272 = vmatprep.subr.mxu0 0.0
    %1273 = vmatpush1.msra.mxu0 %v66
    %1274 = vmatprep.subr.mxu0 0.0
    %1275 = vmatpush1.msra.mxu0 %v67
    %1276 = vmatprep.subr.mxu0 0.0
    %1277 = vmatpush1.msra.mxu0 0.0
    %1278 = vmatprep.subr.mxu0 0.0
    %1279 = vmatpush1.msra.mxu0 0.0
    %1280 = vmatprep.subr.mxu0 0.0
    %1281 = vmatpush1.msra.mxu0 0.0
    %1282 = vmatprep.subr.mxu0 0.0
    %1283 = vmatpush1.msra.mxu0 0.0
    %1284 = vmatprep.subr.mxu0 0.0
    %1285 = vmatpush1.msra.mxu0 0.0
    %1286 = vmatprep.subr.mxu0 0.0
    %1287 = vmatpush1.msra.mxu0 0.0
    %1288 = vmatprep.subr.mxu0 0.0
    %1289 = vmatpush1.msra.mxu0 0.0
    %1290 = vmatprep.subr.mxu0 0.0
    %1291 = vmatpush1.msra.mxu0 0.0
    %1292 = vmatprep.subr.mxu0 0.0
    %1293 = vmatpush1.msra.mxu0 0.0
    %1294 = vmatprep.subr.mxu0 0.0
    %1295 = vmatpush1.msra.mxu0 0.0
    %1296 = vmatprep.subr.mxu0 0.0
    %1297 = vmatpush1.msra.mxu0 0.0
    %1298 = vmatprep.subr.mxu0 0.0
    %1299 = vmatpush1.msra.mxu0 0.0
    %1300 = vmatprep.subr.mxu0 0.0
    %1301 = vmatpush1.msra.mxu0 0.0
    %1302 = vmatprep.subr.mxu0 0.0
    %1303 = vmatpush1.msra.mxu0 0.0
    %1304 = vmatprep.subr.mxu0 0.0
    %1305 = vmatpush1.msra.mxu0 0.0
    %1306 = vmatprep.subr.mxu0 0.0
    %1307 = vmatpush1.msra.mxu0 0.0
    %1308 = vmatprep.subr.mxu0 0.0
    %1309 = vmatpush1.msra.mxu0 0.0
    %1310 = vmatprep.subr.mxu0 0.0
    %1311 = vmatpush1.msra.mxu0 0.0
    %1312 = vmatprep.subr.mxu0 0.0
    %1313 = vmatpush1.msra.mxu0 0.0
    %1314 = vmatprep.subr.mxu0 0.0
    %1315 = vmatpush1.msra.mxu0 0.0
    %1316 = vmatprep.subr.mxu0 0.0
    %1317 = vmatpush1.msra.mxu0 0.0
    %1318 = vmatprep.subr.mxu0 0.0
    %1319 = vmatpush1.msra.mxu0 0.0
    %1320 = vmatprep.subr.mxu0 0.0
    %1321 = vmatpush1.msra.mxu0 0.0
    %1322 = vmatprep.subr.mxu0 0.0
    %1323 = vmatpush1.msra.mxu0 0.0
    %1324 = vmatprep.subr.mxu0 0.0
    %1325 = vmatpush1.msra.mxu0 0.0
    %1326 = vmatprep.subr.mxu0 0.0
    %1327 = vmatpush1.msra.mxu0 0.0
    %1328 = vmatprep.subr.mxu0 0.0
    %1329 = vmatpush1.msra.mxu0 0.0
    %1330 = vmatprep.subr.mxu0 0.0
    %1331 = vmatpush1.msra.mxu0 0.0
    %1332 = vmatprep.mubr.f32.mxu0 0.0
    %1333 = vmatmul.mubr.f32.gmra.mrb[0].mxu0 %v1266
    %v1334 = vpop.f32.mrb[0].mxu0
    %v1335 = vadd.f32 0.0, %v1334
    %v1336 = vpop.f32.mrb[0].mxu0
    %1337 = vdwg.mxu0
    %v1339 = vsel %vm84, %v23, 0
    %1341 = vmatprep.subr.mxu0 0.0
    %1342 = vmatpush1.msra.mxu0 %v64
    %1343 = vmatprep.subr.mxu0 0.0
    %1344 = vmatpush1.msra.mxu0 %v65
    %1345 = vmatprep.subr.mxu0 0.0
    %1346 = vmatpush1.msra.mxu0 %v66
    %1347 = vmatprep.subr.mxu0 0.0
    %1348 = vmatpush1.msra.mxu0 %v67
    %1349 = vmatprep.subr.mxu0 0.0
    %1350 = vmatpush1.msra.mxu0 0.0
    %1351 = vmatprep.subr.mxu0 0.0
    %1352 = vmatpush1.msra.mxu0 0.0
    %1353 = vmatprep.subr.mxu0 0.0
    %1354 = vmatpush1.msra.mxu0 0.0
    %1355 = vmatprep.subr.mxu0 0.0
    %1356 = vmatpush1.msra.mxu0 0.0
    %1357 = vmatprep.subr.mxu0 0.0
    %1358 = vmatpush1.msra.mxu0 0.0
    %1359 = vmatprep.subr.mxu0 0.0
    %1360 = vmatpush1.msra.mxu0 0.0
    %1361 = vmatprep.subr.mxu0 0.0
    %1362 = vmatpush1.msra.mxu0 0.0
    %1363 = vmatprep.subr.mxu0 0.0
    %1364 = vmatpush1.msra.mxu0 0.0
    %1365 = vmatprep.subr.mxu0 0.0
    %1366 = vmatpush1.msra.mxu0 0.0
    %1367 = vmatprep.subr.mxu0 0.0
    %1368 = vmatpush1.msra.mxu0 0.0
    %1369 = vmatprep.subr.mxu0 0.0
    %1370 = vmatpush1.msra.mxu0 0.0
    %1371 = vmatprep.subr.mxu0 0.0
    %1372 = vmatpush1.msra.mxu0 0.0
    %1373 = vmatprep.subr.mxu0 0.0
    %1374 = vmatpush1.msra.mxu0 0.0
    %1375 = vmatprep.subr.mxu0 0.0
    %1376 = vmatpush1.msra.mxu0 0.0
    %1377 = vmatprep.subr.mxu0 0.0
    %1378 = vmatpush1.msra.mxu0 0.0
    %1379 = vmatprep.subr.mxu0 0.0
    %1380 = vmatpush1.msra.mxu0 0.0
    %1381 = vmatprep.subr.mxu0 0.0
    %1382 = vmatpush1.msra.mxu0 0.0
    %1383 = vmatprep.subr.mxu0 0.0
    %1384 = vmatpush1.msra.mxu0 0.0
    %1385 = vmatprep.subr.mxu0 0.0
    %1386 = vmatpush1.msra.mxu0 0.0
    %1387 = vmatprep.subr.mxu0 0.0
    %1388 = vmatpush1.msra.mxu0 0.0
    %1389 = vmatprep.subr.mxu0 0.0
    %1390 = vmatpush1.msra.mxu0 0.0
    %1391 = vmatprep.subr.mxu0 0.0
    %1392 = vmatpush1.msra.mxu0 0.0
    %1393 = vmatprep.subr.mxu0 0.0
    %1394 = vmatpush1.msra.mxu0 0.0
    %1395 = vmatprep.subr.mxu0 0.0
    %1396 = vmatpush1.msra.mxu0 0.0
    %1397 = vmatprep.subr.mxu0 0.0
    %1398 = vmatpush1.msra.mxu0 0.0
    %1399 = vmatprep.subr.mxu0 0.0
    %1400 = vmatpush1.msra.mxu0 0.0
    %1401 = vmatprep.subr.mxu0 0.0
    %1402 = vmatpush1.msra.mxu0 0.0
    %1403 = vmatprep.subr.mxu0 0.0
    %1404 = vmatpush1.msra.mxu0 0.0
    %1405 = vmatprep.mubr.f32.mxu0 0.0
    %1406 = vmatmul.mubr.f32.gmra.mrb[0].mxu0 %v1339
    %v1407 = vpop.f32.mrb[0].mxu0
    %v1408 = vadd.f32 0.0, %v1407
    %v1409 = vpop.f32.mrb[0].mxu0
    %1410 = vdwg.mxu0
    %1411 = vmatprep.subr.mxu0 0.0
    %1412 = vmatpush1.msra.mxu0 %v69
    %1413 = vmatprep.subr.mxu0 0.0
    %1414 = vmatpush1.msra.mxu0 %v70
    %1415 = vmatprep.subr.mxu0 0.0
    %1416 = vmatpush1.msra.mxu0 %v71
    %1417 = vmatprep.subr.mxu0 0.0
    %1418 = vmatpush1.msra.mxu0 %v72
    %1419 = vmatprep.subr.mxu0 0.0
    %1420 = vmatpush1.msra.mxu0 0.0
    %1421 = vmatprep.subr.mxu0 0.0
    %1422 = vmatpush1.msra.mxu0 0.0
    %1423 = vmatprep.subr.mxu0 0.0
    %1424 = vmatpush1.msra.mxu0 0.0
    %1425 = vmatprep.subr.mxu0 0.0
    %1426 = vmatpush1.msra.mxu0 0.0
    %1427 = vmatprep.subr.mxu0 0.0
    %1428 = vmatpush1.msra.mxu0 0.0
    %1429 = vmatprep.subr.mxu0 0.0
    %1430 = vmatpush1.msra.mxu0 0.0
    %1431 = vmatprep.subr.mxu0 0.0
    %1432 = vmatpush1.msra.mxu0 0.0
    %1433 = vmatprep.subr.mxu0 0.0
    %1434 = vmatpush1.msra.mxu0 0.0
    %1435 = vmatprep.subr.mxu0 0.0
    %1436 = vmatpush1.msra.mxu0 0.0
    %1437 = vmatprep.subr.mxu0 0.0
    %1438 = vmatpush1.msra.mxu0 0.0
    %1439 = vmatprep.subr.mxu0 0.0
    %1440 = vmatpush1.msra.mxu0 0.0
    %1441 = vmatprep.subr.mxu0 0.0
    %1442 = vmatpush1.msra.mxu0 0.0
    %1443 = vmatprep.subr.mxu0 0.0
    %1444 = vmatpush1.msra.mxu0 0.0
    %1445 = vmatprep.subr.mxu0 0.0
    %1446 = vmatpush1.msra.mxu0 0.0
    %1447 = vmatprep.subr.mxu0 0.0
    %1448 = vmatpush1.msra.mxu0 0.0
    %1449 = vmatprep.subr.mxu0 0.0
    %1450 = vmatpush1.msra.mxu0 0.0
    %1451 = vmatprep.subr.mxu0 0.0
    %1452 = vmatpush1.msra.mxu0 0.0
    %1453 = vmatprep.subr.mxu0 0.0
    %1454 = vmatpush1.msra.mxu0 0.0
    %1455 = vmatprep.subr.mxu0 0.0
    %1456 = vmatpush1.msra.mxu0 0.0
    %1457 = vmatprep.subr.mxu0 0.0
    %1458 = vmatpush1.msra.mxu0 0.0
    %1459 = vmatprep.subr.mxu0 0.0
    %1460 = vmatpush1.msra.mxu0 0.0
    %1461 = vmatprep.subr.mxu0 0.0
    %1462 = vmatpush1.msra.mxu0 0.0
    %1463 = vmatprep.subr.mxu0 0.0
    %1464 = vmatpush1.msra.mxu0 0.0
    %1465 = vmatprep.subr.mxu0 0.0
    %1466 = vmatpush1.msra.mxu0 0.0
    %1467 = vmatprep.subr.mxu0 0.0
    %1468 = vmatpush1.msra.mxu0 0.0
    %1469 = vmatprep.subr.mxu0 0.0
    %1470 = vmatpush1.msra.mxu0 0.0
    %1471 = vmatprep.subr.mxu0 0.0
    %1472 = vmatpush1.msra.mxu0 0.0
    %1473 = vmatprep.subr.mxu0 0.0
    %1474 = vmatpush1.msra.mxu0 0.0
    %1475 = vmatprep.mubr.f32.mxu0 0.0
    %1476 = vmatmul.mubr.f32.gmra.mrb[0].mxu0 %v1266
    %v1477 = vpop.f32.mrb[0].mxu0
    %v1478 = vadd.f32 0.0, %v1477
    %v1479 = vpop.f32.mrb[0].mxu0
    %1480 = vdwg.mxu0
    %1481 = vmatprep.subr.mxu0 0.0
    %1482 = vmatpush1.msra.mxu0 %v69
    %1483 = vmatprep.subr.mxu0 0.0
    %1484 = vmatpush1.msra.mxu0 %v70
    %1485 = vmatprep.subr.mxu0 0.0
    %1486 = vmatpush1.msra.mxu0 %v71
    %1487 = vmatprep.subr.mxu0 0.0
    %1488 = vmatpush1.msra.mxu0 %v72
    %1489 = vmatprep.subr.mxu0 0.0
    %1490 = vmatpush1.msra.mxu0 0.0
    %1491 = vmatprep.subr.mxu0 0.0
    %1492 = vmatpush1.msra.mxu0 0.0
    %1493 = vmatprep.subr.mxu0 0.0
    %1494 = vmatpush1.msra.mxu0 0.0
    %1495 = vmatprep.subr.mxu0 0.0
    %1496 = vmatpush1.msra.mxu0 0.0
    %1497 = vmatprep.subr.mxu0 0.0
    %1498 = vmatpush1.msra.mxu0 0.0
    %1499 = vmatprep.subr.mxu0 0.0
    %1500 = vmatpush1.msra.mxu0 0.0
    %1501 = vmatprep.subr.mxu0 0.0
    %1502 = vmatpush1.msra.mxu0 0.0
    %1503 = vmatprep.subr.mxu0 0.0
    %1504 = vmatpush1.msra.mxu0 0.0
    %1505 = vmatprep.subr.mxu0 0.0
    %1506 = vmatpush1.msra.mxu0 0.0
    %1507 = vmatprep.subr.mxu0 0.0
    %1508 = vmatpush1.msra.mxu0 0.0
    %1509 = vmatprep.subr.mxu0 0.0
    %1510 = vmatpush1.msra.mxu0 0.0
    %1511 = vmatprep.subr.mxu0 0.0
    %1512 = vmatpush1.msra.mxu0 0.0
    %1513 = vmatprep.subr.mxu0 0.0
    %1514 = vmatpush1.msra.mxu0 0.0
    %1515 = vmatprep.subr.mxu0 0.0
    %1516 = vmatpush1.msra.mxu0 0.0
    %1517 = vmatprep.subr.mxu0 0.0
    %1518 = vmatpush1.msra.mxu0 0.0
    %1519 = vmatprep.subr.mxu0 0.0
    %1520 = vmatpush1.msra.mxu0 0.0
    %1521 = vmatprep.subr.mxu0 0.0
    %1522 = vmatpush1.msra.mxu0 0.0
    %1523 = vmatprep.subr.mxu0 0.0
    %1524 = vmatpush1.msra.mxu0 0.0
    %1525 = vmatprep.subr.mxu0 0.0
    %1526 = vmatpush1.msra.mxu0 0.0
    %1527 = vmatprep.subr.mxu0 0.0
    %1528 = vmatpush1.msra.mxu0 0.0
    %1529 = vmatprep.subr.mxu0 0.0
    %1530 = vmatpush1.msra.mxu0 0.0
    %1531 = vmatprep.subr.mxu0 0.0
    %1532 = vmatpush1.msra.mxu0 0.0
    %1533 = vmatprep.subr.mxu0 0.0
    %1534 = vmatpush1.msra.mxu0 0.0
    %1535 = vmatprep.subr.mxu0 0.0
    %1536 = vmatpush1.msra.mxu0 0.0
    %1537 = vmatprep.subr.mxu0 0.0
    %1538 = vmatpush1.msra.mxu0 0.0
    %1539 = vmatprep.subr.mxu0 0.0
    %1540 = vmatpush1.msra.mxu0 0.0
    %1541 = vmatprep.subr.mxu0 0.0
    %1542 = vmatpush1.msra.mxu0 0.0
    %1543 = vmatprep.subr.mxu0 0.0
    %1544 = vmatpush1.msra.mxu0 0.0
    %1545 = vmatprep.mubr.f32.mxu0 0.0
    %1546 = vmatmul.mubr.f32.gmra.mrb[0].mxu0 %v1339
    %v1547 = vpop.f32.mrb[0].mxu0
    %v1548 = vadd.f32 0.0, %v1547
    %v1549 = vpop.f32.mrb[0].mxu0
    %1550 = vdwg.mxu0
    %1551 = vmatprep.subr.mxu0 0.0
    %1552 = vmatpush1.msra.mxu0 %v74
    %1553 = vmatprep.subr.mxu0 0.0
    %1554 = vmatpush1.msra.mxu0 %v75
    %1555 = vmatprep.subr.mxu0 0.0
    %1556 = vmatpush1.msra.mxu0 %v76
    %1557 = vmatprep.subr.mxu0 0.0
    %1558 = vmatpush1.msra.mxu0 %v77
    %1559 = vmatprep.subr.mxu0 0.0
    %1560 = vmatpush1.msra.mxu0 0.0
    %1561 = vmatprep.subr.mxu0 0.0
    %1562 = vmatpush1.msra.mxu0 0.0
    %1563 = vmatprep.subr.mxu0 0.0
    %1564 = vmatpush1.msra.mxu0 0.0
    %1565 = vmatprep.subr.mxu0 0.0
    %1566 = vmatpush1.msra.mxu0 0.0
    %1567 = vmatprep.subr.mxu0 0.0
    %1568 = vmatpush1.msra.mxu0 0.0
    %1569 = vmatprep.subr.mxu0 0.0
    %1570 = vmatpush1.msra.mxu0 0.0
    %1571 = vmatprep.subr.mxu0 0.0
    %1572 = vmatpush1.msra.mxu0 0.0
    %1573 = vmatprep.subr.mxu0 0.0
    %1574 = vmatpush1.msra.mxu0 0.0
    %1575 = vmatprep.subr.mxu0 0.0
    %1576 = vmatpush1.msra.mxu0 0.0
    %1577 = vmatprep.subr.mxu0 0.0
    %1578 = vmatpush1.msra.mxu0 0.0
    %1579 = vmatprep.subr.mxu0 0.0
    %1580 = vmatpush1.msra.mxu0 0.0
    %1581 = vmatprep.subr.mxu0 0.0
    %1582 = vmatpush1.msra.mxu0 0.0
    %1583 = vmatprep.subr.mxu0 0.0
    %1584 = vmatpush1.msra.mxu0 0.0
    %1585 = vmatprep.subr.mxu0 0.0
    %1586 = vmatpush1.msra.mxu0 0.0
    %1587 = vmatprep.subr.mxu0 0.0
    %1588 = vmatpush1.msra.mxu0 0.0
    %1589 = vmatprep.subr.mxu0 0.0
    %1590 = vmatpush1.msra.mxu0 0.0
    %1591 = vmatprep.subr.mxu0 0.0
    %1592 = vmatpush1.msra.mxu0 0.0
    %1593 = vmatprep.subr.mxu0 0.0
    %1594 = vmatpush1.msra.mxu0 0.0
    %1595 = vmatprep.subr.mxu0 0.0
    %1596 = vmatpush1.msra.mxu0 0.0
    %1597 = vmatprep.subr.mxu0 0.0
    %1598 = vmatpush1.msra.mxu0 0.0
    %1599 = vmatprep.subr.mxu0 0.0
    %1600 = vmatpush1.msra.mxu0 0.0
    %1601 = vmatprep.subr.mxu0 0.0
    %1602 = vmatpush1.msra.mxu0 0.0
    %1603 = vmatprep.subr.mxu0 0.0
    %1604 = vmatpush1.msra.mxu0 0.0
    %1605 = vmatprep.subr.mxu0 0.0
    %1606 = vmatpush1.msra.mxu0 0.0
    %1607 = vmatprep.subr.mxu0 0.0
    %1608 = vmatpush1.msra.mxu0 0.0
    %1609 = vmatprep.subr.mxu0 0.0
    %1610 = vmatpush1.msra.mxu0 0.0
    %1611 = vmatprep.subr.mxu0 0.0
    %1612 = vmatpush1.msra.mxu0 0.0
    %1613 = vmatprep.subr.mxu0 0.0
    %1614 = vmatpush1.msra.mxu0 0.0
    %1615 = vmatprep.mubr.f32.mxu0 0.0
    %1616 = vmatmul.mubr.f32.gmra.mrb[0].mxu0 %v1266
    %v1617 = vpop.f32.mrb[0].mxu0
    %v1618 = vadd.f32 0.0, %v1617
    %v1619 = vpop.f32.mrb[0].mxu0
    %1620 = vdwg.mxu0
    %1621 = vmatprep.subr.mxu0 0.0
    %1622 = vmatpush1.msra.mxu0 %v74
    %1623 = vmatprep.subr.mxu0 0.0
    %1624 = vmatpush1.msra.mxu0 %v75
    %1625 = vmatprep.subr.mxu0 0.0
    %1626 = vmatpush1.msra.mxu0 %v76
    %1627 = vmatprep.subr.mxu0 0.0
    %1628 = vmatpush1.msra.mxu0 %v77
    %1629 = vmatprep.subr.mxu0 0.0
    %1630 = vmatpush1.msra.mxu0 0.0
    %1631 = vmatprep.subr.mxu0 0.0
    %1632 = vmatpush1.msra.mxu0 0.0
    %1633 = vmatprep.subr.mxu0 0.0
    %1634 = vmatpush1.msra.mxu0 0.0
    %1635 = vmatprep.subr.mxu0 0.0
    %1636 = vmatpush1.msra.mxu0 0.0
    %1637 = vmatprep.subr.mxu0 0.0
    %1638 = vmatpush1.msra.mxu0 0.0
    %1639 = vmatprep.subr.mxu0 0.0
    %1640 = vmatpush1.msra.mxu0 0.0
    %1641 = vmatprep.subr.mxu0 0.0
    %1642 = vmatpush1.msra.mxu0 0.0
    %1643 = vmatprep.subr.mxu0 0.0
    %1644 = vmatpush1.msra.mxu0 0.0
    %1645 = vmatprep.subr.mxu0 0.0
    %1646 = vmatpush1.msra.mxu0 0.0
    %1647 = vmatprep.subr.mxu0 0.0
    %1648 = vmatpush1.msra.mxu0 0.0
    %1649 = vmatprep.subr.mxu0 0.0
    %1650 = vmatpush1.msra.mxu0 0.0
    %1651 = vmatprep.subr.mxu0 0.0
    %1652 = vmatpush1.msra.mxu0 0.0
    %1653 = vmatprep.subr.mxu0 0.0
    %1654 = vmatpush1.msra.mxu0 0.0
    %1655 = vmatprep.subr.mxu0 0.0
    %1656 = vmatpush1.msra.mxu0 0.0
    %1657 = vmatprep.subr.mxu0 0.0
    %1658 = vmatpush1.msra.mxu0 0.0
    %1659 = vmatprep.subr.mxu0 0.0
    %1660 = vmatpush1.msra.mxu0 0.0
    %1661 = vmatprep.subr.mxu0 0.0
    %1662 = vmatpush1.msra.mxu0 0.0
    %1663 = vmatprep.subr.mxu0 0.0
    %1664 = vmatpush1.msra.mxu0 0.0
    %1665 = vmatprep.subr.mxu0 0.0
    %1666 = vmatpush1.msra.mxu0 0.0
    %1667 = vmatprep.subr.mxu0 0.0
    %1668 = vmatpush1.msra.mxu0 0.0
    %1669 = vmatprep.subr.mxu0 0.0
    %1670 = vmatpush1.msra.mxu0 0.0
    %1671 = vmatprep.subr.mxu0 0.0
    %1672 = vmatpush1.msra.mxu0 0.0
    %1673 = vmatprep.subr.mxu0 0.0
    %1674 = vmatpush1.msra.mxu0 0.0
    %1675 = vmatprep.subr.mxu0 0.0
    %1676 = vmatpush1.msra.mxu0 0.0
    %1677 = vmatprep.subr.mxu0 0.0
    %1678 = vmatpush1.msra.mxu0 0.0
    %1679 = vmatprep.subr.mxu0 0.0
    %1680 = vmatpush1.msra.mxu0 0.0
    %1681 = vmatprep.subr.mxu0 0.0
    %1682 = vmatpush1.msra.mxu0 0.0
    %1683 = vmatprep.subr.mxu0 0.0
    %1684 = vmatpush1.msra.mxu0 0.0
    %1685 = vmatprep.mubr.f32.mxu0 0.0
    %1686 = vmatmul.mubr.f32.gmra.mrb[0].mxu0 %v1339
    %v1687 = vpop.f32.mrb[0].mxu0
    %v1688 = vadd.f32 0.0, %v1687
    %v1689 = vpop.f32.mrb[0].mxu0
    %1690 = vdwg.mxu0
    %1691 = vmatprep.subr.mxu0 0.0
    %1692 = vmatpush1.msra.mxu0 %v79
    %1693 = vmatprep.subr.mxu0 0.0
    %1694 = vmatpush1.msra.mxu0 %v80
    %1695 = vmatprep.subr.mxu0 0.0
    %1696 = vmatpush1.msra.mxu0 %v81
    %1697 = vmatprep.subr.mxu0 0.0
    %1698 = vmatpush1.msra.mxu0 %v82
    %1699 = vmatprep.subr.mxu0 0.0
    %1700 = vmatpush1.msra.mxu0 0.0
    %1701 = vmatprep.subr.mxu0 0.0
    %1702 = vmatpush1.msra.mxu0 0.0
    %1703 = vmatprep.subr.mxu0 0.0
    %1704 = vmatpush1.msra.mxu0 0.0
    %1705 = vmatprep.subr.mxu0 0.0
    %1706 = vmatpush1.msra.mxu0 0.0
    %1707 = vmatprep.subr.mxu0 0.0
    %1708 = vmatpush1.msra.mxu0 0.0
    %1709 = vmatprep.subr.mxu0 0.0
    %1710 = vmatpush1.msra.mxu0 0.0
    %1711 = vmatprep.subr.mxu0 0.0
    %1712 = vmatpush1.msra.mxu0 0.0
    %1713 = vmatprep.subr.mxu0 0.0
    %1714 = vmatpush1.msra.mxu0 0.0
    %1715 = vmatprep.subr.mxu0 0.0
    %1716 = vmatpush1.msra.mxu0 0.0
    %1717 = vmatprep.subr.mxu0 0.0
    %1718 = vmatpush1.msra.mxu0 0.0
    %1719 = vmatprep.subr.mxu0 0.0
    %1720 = vmatpush1.msra.mxu0 0.0
    %1721 = vmatprep.subr.mxu0 0.0
    %1722 = vmatpush1.msra.mxu0 0.0
    %1723 = vmatprep.subr.mxu0 0.0
    %1724 = vmatpush1.msra.mxu0 0.0
    %1725 = vmatprep.subr.mxu0 0.0
    %1726 = vmatpush1.msra.mxu0 0.0
    %1727 = vmatprep.subr.mxu0 0.0
    %1728 = vmatpush1.msra.mxu0 0.0
    %1729 = vmatprep.subr.mxu0 0.0
    %1730 = vmatpush1.msra.mxu0 0.0
    %1731 = vmatprep.subr.mxu0 0.0
    %1732 = vmatpush1.msra.mxu0 0.0
    %1733 = vmatprep.subr.mxu0 0.0
    %1734 = vmatpush1.msra.mxu0 0.0
    %1735 = vmatprep.subr.mxu0 0.0
    %1736 = vmatpush1.msra.mxu0 0.0
    %1737 = vmatprep.subr.mxu0 0.0
    %1738 = vmatpush1.msra.mxu0 0.0
    %1739 = vmatprep.subr.mxu0 0.0
    %1740 = vmatpush1.msra.mxu0 0.0
    %1741 = vmatprep.subr.mxu0 0.0
    %1742 = vmatpush1.msra.mxu0 0.0
    %1743 = vmatprep.subr.mxu0 0.0
    %1744 = vmatpush1.msra.mxu0 0.0
    %1745 = vmatprep.subr.mxu0 0.0
    %1746 = vmatpush1.msra.mxu0 0.0
    %1747 = vmatprep.subr.mxu0 0.0
    %1748 = vmatpush1.msra.mxu0 0.0
    %1749 = vmatprep.subr.mxu0 0.0
    %1750 = vmatpush1.msra.mxu0 0.0
    %1751 = vmatprep.subr.mxu0 0.0
    %1752 = vmatpush1.msra.mxu0 0.0
    %1753 = vmatprep.subr.mxu0 0.0
    %1754 = vmatpush1.msra.mxu0 0.0
    %1755 = vmatprep.mubr.f32.mxu0 0.0
    %1756 = vmatmul.mubr.f32.gmra.mrb[0].mxu0 %v1266
    %v1757 = vpop.f32.mrb[0].mxu0
    %v1758 = vadd.f32 0.0, %v1757
    %v1759 = vpop.f32.mrb[0].mxu0
    %1760 = vdwg.mxu0
    %1761 = vmatprep.subr.mxu0 0.0
    %1762 = vmatpush1.msra.mxu0 %v79
    %1763 = vmatprep.subr.mxu0 0.0
    %1764 = vmatpush1.msra.mxu0 %v80
    %1765 = vmatprep.subr.mxu0 0.0
    %1766 = vmatpush1.msra.mxu0 %v81
    %1767 = vmatprep.subr.mxu0 0.0
    %1768 = vmatpush1.msra.mxu0 %v82
    %1769 = vmatprep.subr.mxu0 0.0
    %1770 = vmatpush1.msra.mxu0 0.0
    %1771 = vmatprep.subr.mxu0 0.0
    %1772 = vmatpush1.msra.mxu0 0.0
    %1773 = vmatprep.subr.mxu0 0.0
    %1774 = vmatpush1.msra.mxu0 0.0
    %1775 = vmatprep.subr.mxu0 0.0
    %1776 = vmatpush1.msra.mxu0 0.0
    %1777 = vmatprep.subr.mxu0 0.0
    %1778 = vmatpush1.msra.mxu0 0.0
    %1779 = vmatprep.subr.mxu0 0.0
    %1780 = vmatpush1.msra.mxu0 0.0
    %1781 = vmatprep.subr.mxu0 0.0
    %1782 = vmatpush1.msra.mxu0 0.0
    %1783 = vmatprep.subr.mxu0 0.0
    %1784 = vmatpush1.msra.mxu0 0.0
    %1785 = vmatprep.subr.mxu0 0.0
    %1786 = vmatpush1.msra.mxu0 0.0
    %1787 = vmatprep.subr.mxu0 0.0
    %1788 = vmatpush1.msra.mxu0 0.0
    %1789 = vmatprep.subr.mxu0 0.0
    %1790 = vmatpush1.msra.mxu0 0.0
    %1791 = vmatprep.subr.mxu0 0.0
    %1792 = vmatpush1.msra.mxu0 0.0
    %1793 = vmatprep.subr.mxu0 0.0
    %1794 = vmatpush1.msra.mxu0 0.0
    %1795 = vmatprep.subr.mxu0 0.0
    %1796 = vmatpush1.msra.mxu0 0.0
    %1797 = vmatprep.subr.mxu0 0.0
    %1798 = vmatpush1.msra.mxu0 0.0
    %1799 = vmatprep.subr.mxu0 0.0
    %1800 = vmatpush1.msra.mxu0 0.0
    %1801 = vmatprep.subr.mxu0 0.0
    %1802 = vmatpush1.msra.mxu0 0.0
    %1803 = vmatprep.subr.mxu0 0.0
    %1804 = vmatpush1.msra.mxu0 0.0
    %1805 = vmatprep.subr.mxu0 0.0
    %1806 = vmatpush1.msra.mxu0 0.0
    %1807 = vmatprep.subr.mxu0 0.0
    %1808 = vmatpush1.msra.mxu0 0.0
    %1809 = vmatprep.subr.mxu0 0.0
    %1810 = vmatpush1.msra.mxu0 0.0
    %1811 = vmatprep.subr.mxu0 0.0
    %1812 = vmatpush1.msra.mxu0 0.0
    %1813 = vmatprep.subr.mxu0 0.0
    %1814 = vmatpush1.msra.mxu0 0.0
    %1815 = vmatprep.subr.mxu0 0.0
    %1816 = vmatpush1.msra.mxu0 0.0
    %1817 = vmatprep.subr.mxu0 0.0
    %1818 = vmatpush1.msra.mxu0 0.0
    %1819 = vmatprep.subr.mxu0 0.0
    %1820 = vmatpush1.msra.mxu0 0.0
    %1821 = vmatprep.subr.mxu0 0.0
    %1822 = vmatpush1.msra.mxu0 0.0
    %1823 = vmatprep.subr.mxu0 0.0
    %1824 = vmatpush1.msra.mxu0 0.0
    %1825 = vmatprep.mubr.f32.mxu0 0.0
    %1826 = vmatmul.mubr.f32.gmra.mrb[0].mxu0 %v1339
    %v1827 = vpop.f32.mrb[0].mxu0
    %v1828 = vadd.f32 0.0, %v1827
    %v1829 = vpop.f32.mrb[0].mxu0
    %1830 = vdwg.mxu0
    %v1831 = vlaneseq
    %v1832 = vshrl.u32 %v1831, 7
    %v1833 = vsub.s32 0, %v1832
    %v1834 = vrot.slane %v68, %v1833
    %v1835 = vlaneseq
    %v1836 = vshrl.u32 %v1835, 7
    %v1837 = vsub.s32 0, %v1836
    %v1838 = vrot.slane %v73, %v1837
    %v1839 = vlaneseq
    %v1840 = vshrl.u32 %v1839, 7
    %v1841 = vsub.s32 0, %v1840
    %v1842 = vrot.slane %v78, %v1841
    %v1843 = vlaneseq
    %v1844 = vshrl.u32 %v1843, 7
    %v1845 = vsub.s32 0, %v1844
    %v1846 = vrot.slane %v83, %v1845
    %v1847 = vadd.f32 %v1335, %v1834
    %v1848 = vadd.f32 %v1408, %v1834
    %v1849 = vadd.f32 %v1478, %v1838
    %v1850 = vadd.f32 %v1548, %v1838
    %v1851 = vadd.f32 %v1618, %v1842
    %v1852 = vadd.f32 %v1688, %v1842
    %v1853 = vadd.f32 %v1758, %v1846
    %v1854 = vadd.f32 %v1828, %v1846
    %vm1855 = vcmask 64512
    %v1857 = vsel %vm1855, %v667, 0
    %v1860 = vsel %vm1855, %v1257, 0
    %1862 = vmatprep.subr.mxu0 0.0
    %1863 = vmatpush1.xpose.msra.mxu0 %v1860
    %1864 = vmatprep.subr.mxu0 0.0
    %1865 = vmatpush1.xpose.msra.mxu0 0.0
    %1866 = vmatprep.subr.mxu0 0.0
    %1867 = vmatpush1.xpose.msra.mxu0 0.0
    %1868 = vmatprep.subr.mxu0 0.0
    %1869 = vmatpush1.xpose.msra.mxu0 0.0
    %1870 = vmatprep.subr.mxu0 0.0
    %1871 = vmatpush1.xpose.msra.mxu0 0.0
    %1872 = vmatprep.subr.mxu0 0.0
    %1873 = vmatpush1.xpose.msra.mxu0 0.0
    %1874 = vmatprep.subr.mxu0 0.0
    %1875 = vmatpush1.xpose.msra.mxu0 0.0
    %1876 = vmatprep.subr.mxu0 0.0
    %1877 = vmatpush1.xpose.msra.mxu0 0.0
    %1878 = vmatprep.subr.mxu0 0.0
    %1879 = vmatpush1.xpose.msra.mxu0 0.0
    %1880 = vmatprep.subr.mxu0 0.0
    %1881 = vmatpush1.xpose.msra.mxu0 0.0
    %1882 = vmatprep.subr.mxu0 0.0
    %1883 = vmatpush1.xpose.msra.mxu0 0.0
    %1884 = vmatprep.subr.mxu0 0.0
    %1885 = vmatpush1.xpose.msra.mxu0 0.0
    %1886 = vmatprep.subr.mxu0 0.0
    %1887 = vmatpush1.xpose.msra.mxu0 0.0
    %1888 = vmatprep.subr.mxu0 0.0
    %1889 = vmatpush1.xpose.msra.mxu0 0.0
    %1890 = vmatprep.subr.mxu0 0.0
    %1891 = vmatpush1.xpose.msra.mxu0 0.0
    %1892 = vmatprep.subr.mxu0 0.0
    %1893 = vmatpush1.xpose.msra.mxu0 0.0
    %1894 = vmatprep.subr.mxu0 0.0
    %1895 = vmatpush1.xpose.msra.mxu0 0.0
    %1896 = vmatprep.subr.mxu0 0.0
    %1897 = vmatpush1.xpose.msra.mxu0 0.0
    %1898 = vmatprep.subr.mxu0 0.0
    %1899 = vmatpush1.xpose.msra.mxu0 0.0
    %1900 = vmatprep.subr.mxu0 0.0
    %1901 = vmatpush1.xpose.msra.mxu0 0.0
    %1902 = vmatprep.subr.mxu0 0.0
    %1903 = vmatpush1.xpose.msra.mxu0 0.0
    %1904 = vmatprep.subr.mxu0 0.0
    %1905 = vmatpush1.xpose.msra.mxu0 0.0
    %1906 = vmatprep.subr.mxu0 0.0
    %1907 = vmatpush1.xpose.msra.mxu0 0.0
    %1908 = vmatprep.subr.mxu0 0.0
    %1909 = vmatpush1.xpose.msra.mxu0 0.0
    %1910 = vmatprep.subr.mxu0 0.0
    %1911 = vmatpush1.xpose.msra.mxu0 0.0
    %1912 = vmatprep.subr.mxu0 0.0
    %1913 = vmatpush1.xpose.msra.mxu0 0.0
    %1914 = vmatprep.subr.mxu0 0.0
    %1915 = vmatpush1.xpose.msra.mxu0 0.0
    %1916 = vmatprep.subr.mxu0 0.0
    %1917 = vmatpush1.xpose.msra.mxu0 0.0
    %1918 = vmatprep.subr.mxu0 0.0
    %1919 = vmatpush1.xpose.msra.mxu0 0.0
    %1920 = vmatprep.subr.mxu0 0.0
    %1921 = vmatpush1.xpose.msra.mxu0 0.0
    %1922 = vmatprep.subr.mxu0 0.0
    %1923 = vmatpush1.xpose.msra.mxu0 0.0
    %1924 = vmatprep.subr.mxu0 0.0
    %1925 = vmatpush1.xpose.msra.mxu0 0.0
    %1926 = vmatprep.mubr.f32.mxu0 0.0
    %1927 = vmatmul.mubr.f32.gmra.mrb[0].mxu0 %v1857
    %v1928 = vpop.f32.mrb[0].mxu0
    %v1929 = vadd.f32 0.0, %v1928
    %v1930 = vpop.f32.mrb[0].mxu0
    %1931 = vdwg.mxu0
    %v1933 = vsel %vm1855, %v668, 0
    %v1936 = vsel %vm1855, %v1258, 0
    %1938 = vmatprep.subr.mxu0 0.0
    %1939 = vmatpush1.xpose.msra.mxu0 %v1936
    %1940 = vmatprep.subr.mxu0 0.0
    %1941 = vmatpush1.xpose.msra.mxu0 0.0
    %1942 = vmatprep.subr.mxu0 0.0
    %1943 = vmatpush1.xpose.msra.mxu0 0.0
    %1944 = vmatprep.subr.mxu0 0.0
    %1945 = vmatpush1.xpose.msra.mxu0 0.0
    %1946 = vmatprep.subr.mxu0 0.0
    %1947 = vmatpush1.xpose.msra.mxu0 0.0
    %1948 = vmatprep.subr.mxu0 0.0
    %1949 = vmatpush1.xpose.msra.mxu0 0.0
    %1950 = vmatprep.subr.mxu0 0.0
    %1951 = vmatpush1.xpose.msra.mxu0 0.0
    %1952 = vmatprep.subr.mxu0 0.0
    %1953 = vmatpush1.xpose.msra.mxu0 0.0
    %1954 = vmatprep.subr.mxu0 0.0
    %1955 = vmatpush1.xpose.msra.mxu0 0.0
    %1956 = vmatprep.subr.mxu0 0.0
    %1957 = vmatpush1.xpose.msra.mxu0 0.0
    %1958 = vmatprep.subr.mxu0 0.0
    %1959 = vmatpush1.xpose.msra.mxu0 0.0
    %1960 = vmatprep.subr.mxu0 0.0
    %1961 = vmatpush1.xpose.msra.mxu0 0.0
    %1962 = vmatprep.subr.mxu0 0.0
    %1963 = vmatpush1.xpose.msra.mxu0 0.0
    %1964 = vmatprep.subr.mxu0 0.0
    %1965 = vmatpush1.xpose.msra.mxu0 0.0
    %1966 = vmatprep.subr.mxu0 0.0
    %1967 = vmatpush1.xpose.msra.mxu0 0.0
    %1968 = vmatprep.subr.mxu0 0.0
    %1969 = vmatpush1.xpose.msra.mxu0 0.0
    %1970 = vmatprep.subr.mxu0 0.0
    %1971 = vmatpush1.xpose.msra.mxu0 0.0
    %1972 = vmatprep.subr.mxu0 0.0
    %1973 = vmatpush1.xpose.msra.mxu0 0.0
    %1974 = vmatprep.subr.mxu0 0.0
    %1975 = vmatpush1.xpose.msra.mxu0 0.0
    %1976 = vmatprep.subr.mxu0 0.0
    %1977 = vmatpush1.xpose.msra.mxu0 0.0
    %1978 = vmatprep.subr.mxu0 0.0
    %1979 = vmatpush1.xpose.msra.mxu0 0.0
    %1980 = vmatprep.subr.mxu0 0.0
    %1981 = vmatpush1.xpose.msra.mxu0 0.0
    %1982 = vmatprep.subr.mxu0 0.0
    %1983 = vmatpush1.xpose.msra.mxu0 0.0
    %1984 = vmatprep.subr.mxu0 0.0
    %1985 = vmatpush1.xpose.msra.mxu0 0.0
    %1986 = vmatprep.subr.mxu0 0.0
    %1987 = vmatpush1.xpose.msra.mxu0 0.0
    %1988 = vmatprep.subr.mxu0 0.0
    %1989 = vmatpush1.xpose.msra.mxu0 0.0
    %1990 = vmatprep.subr.mxu0 0.0
    %1991 = vmatpush1.xpose.msra.mxu0 0.0
    %1992 = vmatprep.subr.mxu0 0.0
    %1993 = vmatpush1.xpose.msra.mxu0 0.0
    %1994 = vmatprep.subr.mxu0 0.0
    %1995 = vmatpush1.xpose.msra.mxu0 0.0
    %1996 = vmatprep.subr.mxu0 0.0
    %1997 = vmatpush1.xpose.msra.mxu0 0.0
    %1998 = vmatprep.subr.mxu0 0.0
    %1999 = vmatpush1.xpose.msra.mxu0 0.0
    %2000 = vmatprep.subr.mxu0 0.0
    %2001 = vmatpush1.xpose.msra.mxu0 0.0
    %2002 = vmatprep.mubr.f32.mxu0 0.0
    %2003 = vmatmul.mubr.f32.gmra.mrb[0].mxu0 %v1933
    %v2004 = vpop.f32.mrb[0].mxu0
    %v2005 = vadd.f32 0.0, %v2004
    %v2006 = vpop.f32.mrb[0].mxu0
    %2007 = vdwg.mxu0
    %v2009 = vsel %vm1855, %v669, 0
    %v2012 = vsel %vm1855, %v1259, 0
    %2014 = vmatprep.subr.mxu0 0.0
    %2015 = vmatpush1.xpose.msra.mxu0 %v2012
    %2016 = vmatprep.subr.mxu0 0.0
    %2017 = vmatpush1.xpose.msra.mxu0 0.0
    %2018 = vmatprep.subr.mxu0 0.0
    %2019 = vmatpush1.xpose.msra.mxu0 0.0
    %2020 = vmatprep.subr.mxu0 0.0
    %2021 = vmatpush1.xpose.msra.mxu0 0.0
    %2022 = vmatprep.subr.mxu0 0.0
    %2023 = vmatpush1.xpose.msra.mxu0 0.0
    %2024 = vmatprep.subr.mxu0 0.0
    %2025 = vmatpush1.xpose.msra.mxu0 0.0
    %2026 = vmatprep.subr.mxu0 0.0
    %2027 = vmatpush1.xpose.msra.mxu0 0.0
    %2028 = vmatprep.subr.mxu0 0.0
    %2029 = vmatpush1.xpose.msra.mxu0 0.0
    %2030 = vmatprep.subr.mxu0 0.0
    %2031 = vmatpush1.xpose.msra.mxu0 0.0
    %2032 = vmatprep.subr.mxu0 0.0
    %2033 = vmatpush1.xpose.msra.mxu0 0.0
    %2034 = vmatprep.subr.mxu0 0.0
    %2035 = vmatpush1.xpose.msra.mxu0 0.0
    %2036 = vmatprep.subr.mxu0 0.0
    %2037 = vmatpush1.xpose.msra.mxu0 0.0
    %2038 = vmatprep.subr.mxu0 0.0
    %2039 = vmatpush1.xpose.msra.mxu0 0.0
    %2040 = vmatprep.subr.mxu0 0.0
    %2041 = vmatpush1.xpose.msra.mxu0 0.0
    %2042 = vmatprep.subr.mxu0 0.0
    %2043 = vmatpush1.xpose.msra.mxu0 0.0
    %2044 = vmatprep.subr.mxu0 0.0
    %2045 = vmatpush1.xpose.msra.mxu0 0.0
    %2046 = vmatprep.subr.mxu0 0.0
    %2047 = vmatpush1.xpose.msra.mxu0 0.0
    %2048 = vmatprep.subr.mxu0 0.0
    %2049 = vmatpush1.xpose.msra.mxu0 0.0
    %2050 = vmatprep.subr.mxu0 0.0
    %2051 = vmatpush1.xpose.msra.mxu0 0.0
    %2052 = vmatprep.subr.mxu0 0.0
    %2053 = vmatpush1.xpose.msra.mxu0 0.0
    %2054 = vmatprep.subr.mxu0 0.0
    %2055 = vmatpush1.xpose.msra.mxu0 0.0
    %2056 = vmatprep.subr.mxu0 0.0
    %2057 = vmatpush1.xpose.msra.mxu0 0.0
    %2058 = vmatprep.subr.mxu0 0.0
    %2059 = vmatpush1.xpose.msra.mxu0 0.0
    %2060 = vmatprep.subr.mxu0 0.0
    %2061 = vmatpush1.xpose.msra.mxu0 0.0
    %2062 = vmatprep.subr.mxu0 0.0
    %2063 = vmatpush1.xpose.msra.mxu0 0.0
    %2064 = vmatprep.subr.mxu0 0.0
    %2065 = vmatpush1.xpose.msra.mxu0 0.0
    %2066 = vmatprep.subr.mxu0 0.0
    %2067 = vmatpush1.xpose.msra.mxu0 0.0
    %2068 = vmatprep.subr.mxu0 0.0
    %2069 = vmatpush1.xpose.msra.mxu0 0.0
    %2070 = vmatprep.subr.mxu0 0.0
    %2071 = vmatpush1.xpose.msra.mxu0 0.0
    %2072 = vmatprep.subr.mxu0 0.0
    %2073 = vmatpush1.xpose.msra.mxu0 0.0
    %2074 = vmatprep.subr.mxu0 0.0
    %2075 = vmatpush1.xpose.msra.mxu0 0.0
    %2076 = vmatprep.subr.mxu0 0.0
    %2077 = vmatpush1.xpose.msra.mxu0 0.0
    %2078 = vmatprep.mubr.f32.mxu0 0.0
    %2079 = vmatmul.mubr.f32.gmra.mrb[0].mxu0 %v2009
    %v2080 = vpop.f32.mrb[0].mxu0
    %v2081 = vadd.f32 0.0, %v2080
    %v2082 = vpop.f32.mrb[0].mxu0
    %2083 = vdwg.mxu0
    %v2085 = vsel %vm1855, %v670, 0
    %v2088 = vsel %vm1855, %v1260, 0
    %2090 = vmatprep.subr.mxu0 0.0
    %2091 = vmatpush1.xpose.msra.mxu0 %v2088
    %2092 = vmatprep.subr.mxu0 0.0
    %2093 = vmatpush1.xpose.msra.mxu0 0.0
    %2094 = vmatprep.subr.mxu0 0.0
    %2095 = vmatpush1.xpose.msra.mxu0 0.0
    %2096 = vmatprep.subr.mxu0 0.0
    %2097 = vmatpush1.xpose.msra.mxu0 0.0
    %2098 = vmatprep.subr.mxu0 0.0
    %2099 = vmatpush1.xpose.msra.mxu0 0.0
    %2100 = vmatprep.subr.mxu0 0.0
    %2101 = vmatpush1.xpose.msra.mxu0 0.0
    %2102 = vmatprep.subr.mxu0 0.0
    %2103 = vmatpush1.xpose.msra.mxu0 0.0
    %2104 = vmatprep.subr.mxu0 0.0
    %2105 = vmatpush1.xpose.msra.mxu0 0.0
    %2106 = vmatprep.subr.mxu0 0.0
    %2107 = vmatpush1.xpose.msra.mxu0 0.0
    %2108 = vmatprep.subr.mxu0 0.0
    %2109 = vmatpush1.xpose.msra.mxu0 0.0
    %2110 = vmatprep.subr.mxu0 0.0
    %2111 = vmatpush1.xpose.msra.mxu0 0.0
    %2112 = vmatprep.subr.mxu0 0.0
    %2113 = vmatpush1.xpose.msra.mxu0 0.0
    %2114 = vmatprep.subr.mxu0 0.0
    %2115 = vmatpush1.xpose.msra.mxu0 0.0
    %2116 = vmatprep.subr.mxu0 0.0
    %2117 = vmatpush1.xpose.msra.mxu0 0.0
    %2118 = vmatprep.subr.mxu0 0.0
    %2119 = vmatpush1.xpose.msra.mxu0 0.0
    %2120 = vmatprep.subr.mxu0 0.0
    %2121 = vmatpush1.xpose.msra.mxu0 0.0
    %2122 = vmatprep.subr.mxu0 0.0
    %2123 = vmatpush1.xpose.msra.mxu0 0.0
    %2124 = vmatprep.subr.mxu0 0.0
    %2125 = vmatpush1.xpose.msra.mxu0 0.0
    %2126 = vmatprep.subr.mxu0 0.0
    %2127 = vmatpush1.xpose.msra.mxu0 0.0
    %2128 = vmatprep.subr.mxu0 0.0
    %2129 = vmatpush1.xpose.msra.mxu0 0.0
    %2130 = vmatprep.subr.mxu0 0.0
    %2131 = vmatpush1.xpose.msra.mxu0 0.0
    %2132 = vmatprep.subr.mxu0 0.0
    %2133 = vmatpush1.xpose.msra.mxu0 0.0
    %2134 = vmatprep.subr.mxu0 0.0
    %2135 = vmatpush1.xpose.msra.mxu0 0.0
    %2136 = vmatprep.subr.mxu0 0.0
    %2137 = vmatpush1.xpose.msra.mxu0 0.0
    %2138 = vmatprep.subr.mxu0 0.0
    %2139 = vmatpush1.xpose.msra.mxu0 0.0
    %2140 = vmatprep.subr.mxu0 0.0
    %2141 = vmatpush1.xpose.msra.mxu0 0.0
    %2142 = vmatprep.subr.mxu0 0.0
    %2143 = vmatpush1.xpose.msra.mxu0 0.0
    %2144 = vmatprep.subr.mxu0 0.0
    %2145 = vmatpush1.xpose.msra.mxu0 0.0
    %2146 = vmatprep.subr.mxu0 0.0
    %2147 = vmatpush1.xpose.msra.mxu0 0.0
    %2148 = vmatprep.subr.mxu0 0.0
    %2149 = vmatpush1.xpose.msra.mxu0 0.0
    %2150 = vmatprep.subr.mxu0 0.0
    %2151 = vmatpush1.xpose.msra.mxu0 0.0
    %2152 = vmatprep.subr.mxu0 0.0
    %2153 = vmatpush1.xpose.msra.mxu0 0.0
    %2154 = vmatprep.mubr.f32.mxu0 0.0
    %2155 = vmatmul.mubr.f32.gmra.mrb[0].mxu0 %v2085
    %v2156 = vpop.f32.mrb[0].mxu0
    %v2157 = vadd.f32 0.0, %v2156
    %v2158 = vpop.f32.mrb[0].mxu0
    %2159 = vdwg.mxu0
    %v2161 = vsel %vm1855, %v671, 0
    %v2164 = vsel %vm1855, %v1261, 0
    %2166 = vmatprep.subr.mxu0 0.0
    %2167 = vmatpush1.xpose.msra.mxu0 %v2164
    %2168 = vmatprep.subr.mxu0 0.0
    %2169 = vmatpush1.xpose.msra.mxu0 0.0
    %2170 = vmatprep.subr.mxu0 0.0
    %2171 = vmatpush1.xpose.msra.mxu0 0.0
    %2172 = vmatprep.subr.mxu0 0.0
    %2173 = vmatpush1.xpose.msra.mxu0 0.0
    %2174 = vmatprep.subr.mxu0 0.0
    %2175 = vmatpush1.xpose.msra.mxu0 0.0
    %2176 = vmatprep.subr.mxu0 0.0
    %2177 = vmatpush1.xpose.msra.mxu0 0.0
    %2178 = vmatprep.subr.mxu0 0.0
    %2179 = vmatpush1.xpose.msra.mxu0 0.0
    %2180 = vmatprep.subr.mxu0 0.0
    %2181 = vmatpush1.xpose.msra.mxu0 0.0
    %2182 = vmatprep.subr.mxu0 0.0
    %2183 = vmatpush1.xpose.msra.mxu0 0.0
    %2184 = vmatprep.subr.mxu0 0.0
    %2185 = vmatpush1.xpose.msra.mxu0 0.0
    %2186 = vmatprep.subr.mxu0 0.0
    %2187 = vmatpush1.xpose.msra.mxu0 0.0
    %2188 = vmatprep.subr.mxu0 0.0
    %2189 = vmatpush1.xpose.msra.mxu0 0.0
    %2190 = vmatprep.subr.mxu0 0.0
    %2191 = vmatpush1.xpose.msra.mxu0 0.0
    %2192 = vmatprep.subr.mxu0 0.0
    %2193 = vmatpush1.xpose.msra.mxu0 0.0
    %2194 = vmatprep.subr.mxu0 0.0
    %2195 = vmatpush1.xpose.msra.mxu0 0.0
    %2196 = vmatprep.subr.mxu0 0.0
    %2197 = vmatpush1.xpose.msra.mxu0 0.0
    %2198 = vmatprep.subr.mxu0 0.0
    %2199 = vmatpush1.xpose.msra.mxu0 0.0
    %2200 = vmatprep.subr.mxu0 0.0
    %2201 = vmatpush1.xpose.msra.mxu0 0.0
    %2202 = vmatprep.subr.mxu0 0.0
    %2203 = vmatpush1.xpose.msra.mxu0 0.0
    %2204 = vmatprep.subr.mxu0 0.0
    %2205 = vmatpush1.xpose.msra.mxu0 0.0
    %2206 = vmatprep.subr.mxu0 0.0
    %2207 = vmatpush1.xpose.msra.mxu0 0.0
    %2208 = vmatprep.subr.mxu0 0.0
    %2209 = vmatpush1.xpose.msra.mxu0 0.0
    %2210 = vmatprep.subr.mxu0 0.0
    %2211 = vmatpush1.xpose.msra.mxu0 0.0
    %2212 = vmatprep.subr.mxu0 0.0
    %2213 = vmatpush1.xpose.msra.mxu0 0.0
    %2214 = vmatprep.subr.mxu0 0.0
    %2215 = vmatpush1.xpose.msra.mxu0 0.0
    %2216 = vmatprep.subr.mxu0 0.0
    %2217 = vmatpush1.xpose.msra.mxu0 0.0
    %2218 = vmatprep.subr.mxu0 0.0
    %2219 = vmatpush1.xpose.msra.mxu0 0.0
    %2220 = vmatprep.subr.mxu0 0.0
    %2221 = vmatpush1.xpose.msra.mxu0 0.0
    %2222 = vmatprep.subr.mxu0 0.0
    %2223 = vmatpush1.xpose.msra.mxu0 0.0
    %2224 = vmatprep.subr.mxu0 0.0
    %2225 = vmatpush1.xpose.msra.mxu0 0.0
    %2226 = vmatprep.subr.mxu0 0.0
    %2227 = vmatpush1.xpose.msra.mxu0 0.0
    %2228 = vmatprep.subr.mxu0 0.0
    %2229 = vmatpush1.xpose.msra.mxu0 0.0
    %2230 = vmatprep.mubr.f32.mxu0 0.0
    %2231 = vmatmul.mubr.f32.gmra.mrb[0].mxu0 %v2161
    %v2232 = vpop.f32.mrb[0].mxu0
    %v2233 = vadd.f32 0.0, %v2232
    %v2234 = vpop.f32.mrb[0].mxu0
    %2235 = vdwg.mxu0
    %v2237 = vsel %vm1855, %v672, 0
    %v2240 = vsel %vm1855, %v1262, 0
    %2242 = vmatprep.subr.mxu0 0.0
    %2243 = vmatpush1.xpose.msra.mxu0 %v2240
    %2244 = vmatprep.subr.mxu0 0.0
    %2245 = vmatpush1.xpose.msra.mxu0 0.0
    %2246 = vmatprep.subr.mxu0 0.0
    %2247 = vmatpush1.xpose.msra.mxu0 0.0
    %2248 = vmatprep.subr.mxu0 0.0
    %2249 = vmatpush1.xpose.msra.mxu0 0.0
    %2250 = vmatprep.subr.mxu0 0.0
    %2251 = vmatpush1.xpose.msra.mxu0 0.0
    %2252 = vmatprep.subr.mxu0 0.0
    %2253 = vmatpush1.xpose.msra.mxu0 0.0
    %2254 = vmatprep.subr.mxu0 0.0
    %2255 = vmatpush1.xpose.msra.mxu0 0.0
    %2256 = vmatprep.subr.mxu0 0.0
    %2257 = vmatpush1.xpose.msra.mxu0 0.0
    %2258 = vmatprep.subr.mxu0 0.0
    %2259 = vmatpush1.xpose.msra.mxu0 0.0
    %2260 = vmatprep.subr.mxu0 0.0
    %2261 = vmatpush1.xpose.msra.mxu0 0.0
    %2262 = vmatprep.subr.mxu0 0.0
    %2263 = vmatpush1.xpose.msra.mxu0 0.0
    %2264 = vmatprep.subr.mxu0 0.0
    %2265 = vmatpush1.xpose.msra.mxu0 0.0
    %2266 = vmatprep.subr.mxu0 0.0
    %2267 = vmatpush1.xpose.msra.mxu0 0.0
    %2268 = vmatprep.subr.mxu0 0.0
    %2269 = vmatpush1.xpose.msra.mxu0 0.0
    %2270 = vmatprep.subr.mxu0 0.0
    %2271 = vmatpush1.xpose.msra.mxu0 0.0
    %2272 = vmatprep.subr.mxu0 0.0
    %2273 = vmatpush1.xpose.msra.mxu0 0.0
    %2274 = vmatprep.subr.mxu0 0.0
    %2275 = vmatpush1.xpose.msra.mxu0 0.0
    %2276 = vmatprep.subr.mxu0 0.0
    %2277 = vmatpush1.xpose.msra.mxu0 0.0
    %2278 = vmatprep.subr.mxu0 0.0
    %2279 = vmatpush1.xpose.msra.mxu0 0.0
    %2280 = vmatprep.subr.mxu0 0.0
    %2281 = vmatpush1.xpose.msra.mxu0 0.0
    %2282 = vmatprep.subr.mxu0 0.0
    %2283 = vmatpush1.xpose.msra.mxu0 0.0
    %2284 = vmatprep.subr.mxu0 0.0
    %2285 = vmatpush1.xpose.msra.mxu0 0.0
    %2286 = vmatprep.subr.mxu0 0.0
    %2287 = vmatpush1.xpose.msra.mxu0 0.0
    %2288 = vmatprep.subr.mxu0 0.0
    %2289 = vmatpush1.xpose.msra.mxu0 0.0
    %2290 = vmatprep.subr.mxu0 0.0
    %2291 = vmatpush1.xpose.msra.mxu0 0.0
    %2292 = vmatprep.subr.mxu0 0.0
    %2293 = vmatpush1.xpose.msra.mxu0 0.0
    %2294 = vmatprep.subr.mxu0 0.0
    %2295 = vmatpush1.xpose.msra.mxu0 0.0
    %2296 = vmatprep.subr.mxu0 0.0
    %2297 = vmatpush1.xpose.msra.mxu0 0.0
    %2298 = vmatprep.subr.mxu0 0.0
    %2299 = vmatpush1.xpose.msra.mxu0 0.0
    %2300 = vmatprep.subr.mxu0 0.0
    %2301 = vmatpush1.xpose.msra.mxu0 0.0
    %2302 = vmatprep.subr.mxu0 0.0
    %2303 = vmatpush1.xpose.msra.mxu0 0.0
    %2304 = vmatprep.subr.mxu0 0.0
    %2305 = vmatpush1.xpose.msra.mxu0 0.0
    %2306 = vmatprep.mubr.f32.mxu0 0.0
    %2307 = vmatmul.mubr.f32.gmra.mrb[0].mxu0 %v2237
    %v2308 = vpop.f32.mrb[0].mxu0
    %v2309 = vadd.f32 0.0, %v2308
    %v2310 = vpop.f32.mrb[0].mxu0
    %2311 = vdwg.mxu0
    %v2313 = vsel %vm1855, %v673, 0
    %v2316 = vsel %vm1855, %v1263, 0
    %2318 = vmatprep.subr.mxu0 0.0
    %2319 = vmatpush1.xpose.msra.mxu0 %v2316
    %2320 = vmatprep.subr.mxu0 0.0
    %2321 = vmatpush1.xpose.msra.mxu0 0.0
    %2322 = vmatprep.subr.mxu0 0.0
    %2323 = vmatpush1.xpose.msra.mxu0 0.0
    %2324 = vmatprep.subr.mxu0 0.0
    %2325 = vmatpush1.xpose.msra.mxu0 0.0
    %2326 = vmatprep.subr.mxu0 0.0
    %2327 = vmatpush1.xpose.msra.mxu0 0.0
    %2328 = vmatprep.subr.mxu0 0.0
    %2329 = vmatpush1.xpose.msra.mxu0 0.0
    %2330 = vmatprep.subr.mxu0 0.0
    %2331 = vmatpush1.xpose.msra.mxu0 0.0
    %2332 = vmatprep.subr.mxu0 0.0
    %2333 = vmatpush1.xpose.msra.mxu0 0.0
    %2334 = vmatprep.subr.mxu0 0.0
    %2335 = vmatpush1.xpose.msra.mxu0 0.0
    %2336 = vmatprep.subr.mxu0 0.0
    %2337 = vmatpush1.xpose.msra.mxu0 0.0
    %2338 = vmatprep.subr.mxu0 0.0
    %2339 = vmatpush1.xpose.msra.mxu0 0.0
    %2340 = vmatprep.subr.mxu0 0.0
    %2341 = vmatpush1.xpose.msra.mxu0 0.0
    %2342 = vmatprep.subr.mxu0 0.0
    %2343 = vmatpush1.xpose.msra.mxu0 0.0
    %2344 = vmatprep.subr.mxu0 0.0
    %2345 = vmatpush1.xpose.msra.mxu0 0.0
    %2346 = vmatprep.subr.mxu0 0.0
    %2347 = vmatpush1.xpose.msra.mxu0 0.0
    %2348 = vmatprep.subr.mxu0 0.0
    %2349 = vmatpush1.xpose.msra.mxu0 0.0
    %2350 = vmatprep.subr.mxu0 0.0
    %2351 = vmatpush1.xpose.msra.mxu0 0.0
    %2352 = vmatprep.subr.mxu0 0.0
    %2353 = vmatpush1.xpose.msra.mxu0 0.0
    %2354 = vmatprep.subr.mxu0 0.0
    %2355 = vmatpush1.xpose.msra.mxu0 0.0
    %2356 = vmatprep.subr.mxu0 0.0
    %2357 = vmatpush1.xpose.msra.mxu0 0.0
    %2358 = vmatprep.subr.mxu0 0.0
    %2359 = vmatpush1.xpose.msra.mxu0 0.0
    %2360 = vmatprep.subr.mxu0 0.0
    %2361 = vmatpush1.xpose.msra.mxu0 0.0
    %2362 = vmatprep.subr.mxu0 0.0
    %2363 = vmatpush1.xpose.msra.mxu0 0.0
    %2364 = vmatprep.subr.mxu0 0.0
    %2365 = vmatpush1.xpose.msra.mxu0 0.0
    %2366 = vmatprep.subr.mxu0 0.0
    %2367 = vmatpush1.xpose.msra.mxu0 0.0
    %2368 = vmatprep.subr.mxu0 0.0
    %2369 = vmatpush1.xpose.msra.mxu0 0.0
    %2370 = vmatprep.subr.mxu0 0.0
    %2371 = vmatpush1.xpose.msra.mxu0 0.0
    %2372 = vmatprep.subr.mxu0 0.0
    %2373 = vmatpush1.xpose.msra.mxu0 0.0
    %2374 = vmatprep.subr.mxu0 0.0
    %2375 = vmatpush1.xpose.msra.mxu0 0.0
    %2376 = vmatprep.subr.mxu0 0.0
    %2377 = vmatpush1.xpose.msra.mxu0 0.0
    %2378 = vmatprep.subr.mxu0 0.0
    %2379 = vmatpush1.xpose.msra.mxu0 0.0
    %2380 = vmatprep.subr.mxu0 0.0
    %2381 = vmatpush1.xpose.msra.mxu0 0.0
    %2382 = vmatprep.mubr.f32.mxu0 0.0
    %2383 = vmatmul.mubr.f32.gmra.mrb[0].mxu0 %v2313
    %v2384 = vpop.f32.mrb[0].mxu0
    %v2385 = vadd.f32 0.0, %v2384
    %v2386 = vpop.f32.mrb[0].mxu0
    %2387 = vdwg.mxu0
    %v2389 = vsel %vm1855, %v674, 0
    %v2392 = vsel %vm1855, %v1264, 0
    %2394 = vmatprep.subr.mxu0 0.0
    %2395 = vmatpush1.xpose.msra.mxu0 %v2392
    %2396 = vmatprep.subr.mxu0 0.0
    %2397 = vmatpush1.xpose.msra.mxu0 0.0
    %2398 = vmatprep.subr.mxu0 0.0
    %2399 = vmatpush1.xpose.msra.mxu0 0.0
    %2400 = vmatprep.subr.mxu0 0.0
    %2401 = vmatpush1.xpose.msra.mxu0 0.0
    %2402 = vmatprep.subr.mxu0 0.0
    %2403 = vmatpush1.xpose.msra.mxu0 0.0
    %2404 = vmatprep.subr.mxu0 0.0
    %2405 = vmatpush1.xpose.msra.mxu0 0.0
    %2406 = vmatprep.subr.mxu0 0.0
    %2407 = vmatpush1.xpose.msra.mxu0 0.0
    %2408 = vmatprep.subr.mxu0 0.0
    %2409 = vmatpush1.xpose.msra.mxu0 0.0
    %2410 = vmatprep.subr.mxu0 0.0
    %2411 = vmatpush1.xpose.msra.mxu0 0.0
    %2412 = vmatprep.subr.mxu0 0.0
    %2413 = vmatpush1.xpose.msra.mxu0 0.0
    %2414 = vmatprep.subr.mxu0 0.0
    %2415 = vmatpush1.xpose.msra.mxu0 0.0
    %2416 = vmatprep.subr.mxu0 0.0
    %2417 = vmatpush1.xpose.msra.mxu0 0.0
    %2418 = vmatprep.subr.mxu0 0.0
    %2419 = vmatpush1.xpose.msra.mxu0 0.0
    %2420 = vmatprep.subr.mxu0 0.0
    %2421 = vmatpush1.xpose.msra.mxu0 0.0
    %2422 = vmatprep.subr.mxu0 0.0
    %2423 = vmatpush1.xpose.msra.mxu0 0.0
    %2424 = vmatprep.subr.mxu0 0.0
    %2425 = vmatpush1.xpose.msra.mxu0 0.0
    %2426 = vmatprep.subr.mxu0 0.0
    %2427 = vmatpush1.xpose.msra.mxu0 0.0
    %2428 = vmatprep.subr.mxu0 0.0
    %2429 = vmatpush1.xpose.msra.mxu0 0.0
    %2430 = vmatprep.subr.mxu0 0.0
    %2431 = vmatpush1.xpose.msra.mxu0 0.0
    %2432 = vmatprep.subr.mxu0 0.0
    %2433 = vmatpush1.xpose.msra.mxu0 0.0
    %2434 = vmatprep.subr.mxu0 0.0
    %2435 = vmatpush1.xpose.msra.mxu0 0.0
    %2436 = vmatprep.subr.mxu0 0.0
    %2437 = vmatpush1.xpose.msra.mxu0 0.0
    %2438 = vmatprep.subr.mxu0 0.0
    %2439 = vmatpush1.xpose.msra.mxu0 0.0
    %2440 = vmatprep.subr.mxu0 0.0
    %2441 = vmatpush1.xpose.msra.mxu0 0.0
    %2442 = vmatprep.subr.mxu0 0.0
    %2443 = vmatpush1.xpose.msra.mxu0 0.0
    %2444 = vmatprep.subr.mxu0 0.0
    %2445 = vmatpush1.xpose.msra.mxu0 0.0
    %2446 = vmatprep.subr.mxu0 0.0
    %2447 = vmatpush1.xpose.msra.mxu0 0.0
    %2448 = vmatprep.subr.mxu0 0.0
    %2449 = vmatpush1.xpose.msra.mxu0 0.0
    %2450 = vmatprep.subr.mxu0 0.0
    %2451 = vmatpush1.xpose.msra.mxu0 0.0
    %2452 = vmatprep.subr.mxu0 0.0
    %2453 = vmatpush1.xpose.msra.mxu0 0.0
    %2454 = vmatprep.subr.mxu0 0.0
    %2455 = vmatpush1.xpose.msra.mxu0 0.0
    %2456 = vmatprep.subr.mxu0 0.0
    %2457 = vmatpush1.xpose.msra.mxu0 0.0
    %2458 = vmatprep.mubr.f32.mxu0 0.0
    %2459 = vmatmul.mubr.f32.gmra.mrb[0].mxu0 %v2389
    %v2460 = vpop.f32.mrb[0].mxu0
    %v2461 = vadd.f32 0.0, %v2460
    %v2462 = vpop.f32.mrb[0].mxu0
    %2463 = vdwg.mxu0
    %v2464 = vld [vmem:[%s1] sm:$0xff]
    %v2465 = vld [vmem:[%s1 + $0x8] sm:$0xff]
    %vm2466 = vcmp.ne.f32.partialorder %v2464, 0.0
    %vm2467 = vcmp.ne.f32.partialorder %v2465, 0.0
    %v2468 = vsel %vm2466, %v1929, -1e+09
    %v2469 = vsel %vm2467, %v2005, -1e+09
    %v2470 = vsel %vm2466, %v2081, -1e+09
    %v2471 = vsel %vm2467, %v2157, -1e+09
    %v2472 = vsel %vm2466, %v2233, -1e+09
    %v2473 = vsel %vm2467, %v2309, -1e+09
    %v2474 = vsel %vm2466, %v2385, -1e+09
    %v2475 = vsel %vm2467, %v2461, -1e+09
    %v2476 = vsel %vm1855, %v2468, -inf
    %2477 = vmax.xlane.f32.xlu0 %v2476
    %v2478 = vpop.xlane.xlu0 %2477
    %v2479 = vsel %vm1855, %v2469, -inf
    %2480 = vmax.xlane.f32.xlu0 %v2479
    %v2481 = vpop.xlane.xlu0 %2480
    %v2482 = vsel %vm1855, %v2470, -inf
    %2483 = vmax.xlane.f32.xlu0 %v2482
    %v2484 = vpop.xlane.xlu0 %2483
    %v2485 = vsel %vm1855, %v2471, -inf
    %2486 = vmax.xlane.f32.xlu0 %v2485
    %v2487 = vpop.xlane.xlu0 %2486
    %v2488 = vsel %vm1855, %v2472, -inf
    %2489 = vmax.xlane.f32.xlu0 %v2488
    %v2490 = vpop.xlane.xlu0 %2489
    %v2491 = vsel %vm1855, %v2473, -inf
    %2492 = vmax.xlane.f32.xlu0 %v2491
    %v2493 = vpop.xlane.xlu0 %2492
    %v2494 = vsel %vm1855, %v2474, -inf
    %2495 = vmax.xlane.f32.xlu0 %v2494
    %v2496 = vpop.xlane.xlu0 %2495
    %v2497 = vsel %vm1855, %v2475, -inf
    %2498 = vmax.xlane.f32.xlu0 %v2497
    %v2499 = vpop.xlane.xlu0 %2498
    %v2500 = vsub.f32 %v2468, %v2478
    %v2501 = vsub.f32 %v2469, %v2481
    %v2502 = vsub.f32 %v2470, %v2484
    %v2503 = vsub.f32 %v2471, %v2487
    %v2504 = vsub.f32 %v2472, %v2490
    %v2505 = vsub.f32 %v2473, %v2493
    %v2506 = vsub.f32 %v2474, %v2496
    %v2507 = vsub.f32 %v2475, %v2499
    %v2508 = vmul.f32 %v2500, 1.442695
    %v2509 = vpow.pop %v2508
    %v2510 = vmul.f32 %v2501, 1.442695
    %v2511 = vpow.pop %v2510
    %v2512 = vmul.f32 %v2502, 1.442695
    %v2513 = vpow.pop %v2512
    %v2514 = vmul.f32 %v2503, 1.442695
    %v2515 = vpow.pop %v2514
    %v2516 = vmul.f32 %v2504, 1.442695
    %v2517 = vpow.pop %v2516
    %v2518 = vmul.f32 %v2505, 1.442695
    %v2519 = vpow.pop %v2518
    %v2520 = vmul.f32 %v2506, 1.442695
    %v2521 = vpow.pop %v2520
    %v2522 = vmul.f32 %v2507, 1.442695
    %v2523 = vpow.pop %v2522
    %v2524 = vsel %vm1855, %v2509, 0.0
    %2525 = vadd.xlane.f32.xlu0 %v2524
    %v2526 = vpop.xlane.xlu0 %2525
    %v2527 = vsel %vm1855, %v2511, 0.0
    %2528 = vadd.xlane.f32.xlu0 %v2527
    %v2529 = vpop.xlane.xlu0 %2528
    %v2530 = vsel %vm1855, %v2513, 0.0
    %2531 = vadd.xlane.f32.xlu0 %v2530
    %v2532 = vpop.xlane.xlu0 %2531
    %v2533 = vsel %vm1855, %v2515, 0.0
    %2534 = vadd.xlane.f32.xlu0 %v2533
    %v2535 = vpop.xlane.xlu0 %2534
    %v2536 = vsel %vm1855, %v2517, 0.0
    %2537 = vadd.xlane.f32.xlu0 %v2536
    %v2538 = vpop.xlane.xlu0 %2537
    %v2539 = vsel %vm1855, %v2519, 0.0
    %2540 = vadd.xlane.f32.xlu0 %v2539
    %v2541 = vpop.xlane.xlu0 %2540
    %v2542 = vsel %vm1855, %v2521, 0.0
    %2543 = vadd.xlane.f32.xlu0 %v2542
    %v2544 = vpop.xlane.xlu0 %2543
    %v2545 = vsel %vm1855, %v2523, 0.0
    %2546 = vadd.xlane.f32.xlu0 %v2545
    %v2547 = vpop.xlane.xlu0 %2546
    %v2548 = vrcp.pop %v2526
    %v2549 = vrcp.pop %v2529
    %v2550 = vrcp.pop %v2532
    %v2551 = vrcp.pop %v2535
    %v2552 = vrcp.pop %v2538
    %v2553 = vrcp.pop %v2541
    %v2554 = vrcp.pop %v2544
    %v2555 = vrcp.pop %v2547
    %v2556 = vmul.f32 %v2526, %v2548
    %v2557 = vmul.f32 %v2529, %v2549
    %v2558 = vmul.f32 %v2532, %v2550
    %v2559 = vmul.f32 %v2535, %v2551
    %v2560 = vmul.f32 %v2538, %v2552
    %v2561 = vmul.f32 %v2541, %v2553
    %v2562 = vmul.f32 %v2544, %v2554
    %v2563 = vmul.f32 %v2547, %v2555
    %v2564 = vsub.f32 2.0, %v2556
    %v2565 = vsub.f32 2.0, %v2557
    %v2566 = vsub.f32 2.0, %v2558
    %v2567 = vsub.f32 2.0, %v2559
    %v2568 = vsub.f32 2.0, %v2560
    %v2569 = vsub.f32 2.0, %v2561
    %v2570 = vsub.f32 2.0, %v2562
    %v2571 = vsub.f32 2.0, %v2563
    %v2572 = vmul.f32 %v2548, %v2564
    %v2573 = vmul.f32 %v2549, %v2565
    %v2574 = vmul.f32 %v2550, %v2566
    %v2575 = vmul.f32 %v2551, %v2567
    %v2576 = vmul.f32 %v2552, %v2568
    %v2577 = vmul.f32 %v2553, %v2569
    %v2578 = vmul.f32 %v2554, %v2570
    %v2579 = vmul.f32 %v2555, %v2571
    %v2580 = vmul.f32 %v2509, %v2572
    %v2581 = vmul.f32 %v2511, %v2573
    %v2582 = vmul.f32 %v2513, %v2574
    %v2583 = vmul.f32 %v2515, %v2575
    %v2584 = vmul.f32 %v2517, %v2576
    %v2585 = vmul.f32 %v2519, %v2577
    %v2586 = vmul.f32 %v2521, %v2578
    %v2587 = vmul.f32 %v2523, %v2579
    %v2589 = vsel %vm1855, %v2580, 0
    %2591 = vmatprep.subr.mxu0 0.0
    %2592 = vmatpush1.msra.mxu0 %v1847
    %2593 = vmatprep.subr.mxu0 0.0
    %2594 = vmatpush1.msra.mxu0 0.0
    %2595 = vmatprep.subr.mxu0 0.0
    %2596 = vmatpush1.msra.mxu0 0.0
    %2597 = vmatprep.subr.mxu0 0.0
    %2598 = vmatpush1.msra.mxu0 0.0
    %2599 = vmatprep.subr.mxu0 0.0
    %2600 = vmatpush1.msra.mxu0 0.0
    %2601 = vmatprep.subr.mxu0 0.0
    %2602 = vmatpush1.msra.mxu0 0.0
    %2603 = vmatprep.subr.mxu0 0.0
    %2604 = vmatpush1.msra.mxu0 0.0
    %2605 = vmatprep.subr.mxu0 0.0
    %2606 = vmatpush1.msra.mxu0 0.0
    %2607 = vmatprep.subr.mxu0 0.0
    %2608 = vmatpush1.msra.mxu0 0.0
    %2609 = vmatprep.subr.mxu0 0.0
    %2610 = vmatpush1.msra.mxu0 0.0
    %2611 = vmatprep.subr.mxu0 0.0
    %2612 = vmatpush1.msra.mxu0 0.0
    %2613 = vmatprep.subr.mxu0 0.0
    %2614 = vmatpush1.msra.mxu0 0.0
    %2615 = vmatprep.subr.mxu0 0.0
    %2616 = vmatpush1.msra.mxu0 0.0
    %2617 = vmatprep.subr.mxu0 0.0
    %2618 = vmatpush1.msra.mxu0 0.0
    %2619 = vmatprep.subr.mxu0 0.0
    %2620 = vmatpush1.msra.mxu0 0.0
    %2621 = vmatprep.subr.mxu0 0.0
    %2622 = vmatpush1.msra.mxu0 0.0
    %2623 = vmatprep.subr.mxu0 0.0
    %2624 = vmatpush1.msra.mxu0 0.0
    %2625 = vmatprep.subr.mxu0 0.0
    %2626 = vmatpush1.msra.mxu0 0.0
    %2627 = vmatprep.subr.mxu0 0.0
    %2628 = vmatpush1.msra.mxu0 0.0
    %2629 = vmatprep.subr.mxu0 0.0
    %2630 = vmatpush1.msra.mxu0 0.0
    %2631 = vmatprep.subr.mxu0 0.0
    %2632 = vmatpush1.msra.mxu0 0.0
    %2633 = vmatprep.subr.mxu0 0.0
    %2634 = vmatpush1.msra.mxu0 0.0
    %2635 = vmatprep.subr.mxu0 0.0
    %2636 = vmatpush1.msra.mxu0 0.0
    %2637 = vmatprep.subr.mxu0 0.0
    %2638 = vmatpush1.msra.mxu0 0.0
    %2639 = vmatprep.subr.mxu0 0.0
    %2640 = vmatpush1.msra.mxu0 0.0
    %2641 = vmatprep.subr.mxu0 0.0
    %2642 = vmatpush1.msra.mxu0 0.0
    %2643 = vmatprep.subr.mxu0 0.0
    %2644 = vmatpush1.msra.mxu0 0.0
    %2645 = vmatprep.subr.mxu0 0.0
    %2646 = vmatpush1.msra.mxu0 0.0
    %2647 = vmatprep.subr.mxu0 0.0
    %2648 = vmatpush1.msra.mxu0 0.0
    %2649 = vmatprep.subr.mxu0 0.0
    %2650 = vmatpush1.msra.mxu0 0.0
    %2651 = vmatprep.subr.mxu0 0.0
    %2652 = vmatpush1.msra.mxu0 0.0
    %2653 = vmatprep.subr.mxu0 0.0
    %2654 = vmatpush1.msra.mxu0 0.0
    %2655 = vmatprep.mubr.f32.mxu0 0.0
    %2656 = vmatmul.mubr.f32.gmra.mrb[0].mxu0 %v2589
    %v2657 = vpop.f32.mrb[0].mxu0
    %v2658 = vadd.f32 0.0, %v2657
    %v2659 = vpop.f32.mrb[0].mxu0
    %2660 = vdwg.mxu0
    %v2662 = vsel %vm1855, %v2581, 0
    %2664 = vmatprep.subr.mxu0 0.0
    %2665 = vmatpush1.msra.mxu0 %v1848
    %2666 = vmatprep.subr.mxu0 0.0
    %2667 = vmatpush1.msra.mxu0 0.0
    %2668 = vmatprep.subr.mxu0 0.0
    %2669 = vmatpush1.msra.mxu0 0.0
    %2670 = vmatprep.subr.mxu0 0.0
    %2671 = vmatpush1.msra.mxu0 0.0
    %2672 = vmatprep.subr.mxu0 0.0
    %2673 = vmatpush1.msra.mxu0 0.0
    %2674 = vmatprep.subr.mxu0 0.0
    %2675 = vmatpush1.msra.mxu0 0.0
    %2676 = vmatprep.subr.mxu0 0.0
    %2677 = vmatpush1.msra.mxu0 0.0
    %2678 = vmatprep.subr.mxu0 0.0
    %2679 = vmatpush1.msra.mxu0 0.0
    %2680 = vmatprep.subr.mxu0 0.0
    %2681 = vmatpush1.msra.mxu0 0.0
    %2682 = vmatprep.subr.mxu0 0.0
    %2683 = vmatpush1.msra.mxu0 0.0
    %2684 = vmatprep.subr.mxu0 0.0
    %2685 = vmatpush1.msra.mxu0 0.0
    %2686 = vmatprep.subr.mxu0 0.0
    %2687 = vmatpush1.msra.mxu0 0.0
    %2688 = vmatprep.subr.mxu0 0.0
    %2689 = vmatpush1.msra.mxu0 0.0
    %2690 = vmatprep.subr.mxu0 0.0
    %2691 = vmatpush1.msra.mxu0 0.0
    %2692 = vmatprep.subr.mxu0 0.0
    %2693 = vmatpush1.msra.mxu0 0.0
    %2694 = vmatprep.subr.mxu0 0.0
    %2695 = vmatpush1.msra.mxu0 0.0
    %2696 = vmatprep.subr.mxu0 0.0
    %2697 = vmatpush1.msra.mxu0 0.0
    %2698 = vmatprep.subr.mxu0 0.0
    %2699 = vmatpush1.msra.mxu0 0.0
    %2700 = vmatprep.subr.mxu0 0.0
    %2701 = vmatpush1.msra.mxu0 0.0
    %2702 = vmatprep.subr.mxu0 0.0
    %2703 = vmatpush1.msra.mxu0 0.0
    %2704 = vmatprep.subr.mxu0 0.0
    %2705 = vmatpush1.msra.mxu0 0.0
    %2706 = vmatprep.subr.mxu0 0.0
    %2707 = vmatpush1.msra.mxu0 0.0
    %2708 = vmatprep.subr.mxu0 0.0
    %2709 = vmatpush1.msra.mxu0 0.0
    %2710 = vmatprep.subr.mxu0 0.0
    %2711 = vmatpush1.msra.mxu0 0.0
    %2712 = vmatprep.subr.mxu0 0.0
    %2713 = vmatpush1.msra.mxu0 0.0
    %2714 = vmatprep.subr.mxu0 0.0
    %2715 = vmatpush1.msra.mxu0 0.0
    %2716 = vmatprep.subr.mxu0 0.0
    %2717 = vmatpush1.msra.mxu0 0.0
    %2718 = vmatprep.subr.mxu0 0.0
    %2719 = vmatpush1.msra.mxu0 0.0
    %2720 = vmatprep.subr.mxu0 0.0
    %2721 = vmatpush1.msra.mxu0 0.0
    %2722 = vmatprep.subr.mxu0 0.0
    %2723 = vmatpush1.msra.mxu0 0.0
    %2724 = vmatprep.subr.mxu0 0.0
    %2725 = vmatpush1.msra.mxu0 0.0
    %2726 = vmatprep.subr.mxu0 0.0
    %2727 = vmatpush1.msra.mxu0 0.0
    %2728 = vmatprep.mubr.f32.mxu0 0.0
    %2729 = vmatmul.mubr.f32.gmra.mrb[0].mxu0 %v2662
    %v2730 = vpop.f32.mrb[0].mxu0
    %v2731 = vadd.f32 0.0, %v2730
    %v2732 = vpop.f32.mrb[0].mxu0
    %2733 = vdwg.mxu0
    %v2735 = vsel %vm1855, %v2582, 0
    %2737 = vmatprep.subr.mxu0 0.0
    %2738 = vmatpush1.msra.mxu0 %v1849
    %2739 = vmatprep.subr.mxu0 0.0
    %2740 = vmatpush1.msra.mxu0 0.0
    %2741 = vmatprep.subr.mxu0 0.0
    %2742 = vmatpush1.msra.mxu0 0.0
    %2743 = vmatprep.subr.mxu0 0.0
    %2744 = vmatpush1.msra.mxu0 0.0
    %2745 = vmatprep.subr.mxu0 0.0
    %2746 = vmatpush1.msra.mxu0 0.0
    %2747 = vmatprep.subr.mxu0 0.0
    %2748 = vmatpush1.msra.mxu0 0.0
    %2749 = vmatprep.subr.mxu0 0.0
    %2750 = vmatpush1.msra.mxu0 0.0
    %2751 = vmatprep.subr.mxu0 0.0
    %2752 = vmatpush1.msra.mxu0 0.0
    %2753 = vmatprep.subr.mxu0 0.0
    %2754 = vmatpush1.msra.mxu0 0.0
    %2755 = vmatprep.subr.mxu0 0.0
    %2756 = vmatpush1.msra.mxu0 0.0
    %2757 = vmatprep.subr.mxu0 0.0
    %2758 = vmatpush1.msra.mxu0 0.0
    %2759 = vmatprep.subr.mxu0 0.0
    %2760 = vmatpush1.msra.mxu0 0.0
    %2761 = vmatprep.subr.mxu0 0.0
    %2762 = vmatpush1.msra.mxu0 0.0
    %2763 = vmatprep.subr.mxu0 0.0
    %2764 = vmatpush1.msra.mxu0 0.0
    %2765 = vmatprep.subr.mxu0 0.0
    %2766 = vmatpush1.msra.mxu0 0.0
    %2767 = vmatprep.subr.mxu0 0.0
    %2768 = vmatpush1.msra.mxu0 0.0
    %2769 = vmatprep.subr.mxu0 0.0
    %2770 = vmatpush1.msra.mxu0 0.0
    %2771 = vmatprep.subr.mxu0 0.0
    %2772 = vmatpush1.msra.mxu0 0.0
    %2773 = vmatprep.subr.mxu0 0.0
    %2774 = vmatpush1.msra.mxu0 0.0
    %2775 = vmatprep.subr.mxu0 0.0
    %2776 = vmatpush1.msra.mxu0 0.0
    %2777 = vmatprep.subr.mxu0 0.0
    %2778 = vmatpush1.msra.mxu0 0.0
    %2779 = vmatprep.subr.mxu0 0.0
    %2780 = vmatpush1.msra.mxu0 0.0
    %2781 = vmatprep.subr.mxu0 0.0
    %2782 = vmatpush1.msra.mxu0 0.0
    %2783 = vmatprep.subr.mxu0 0.0
    %2784 = vmatpush1.msra.mxu0 0.0
    %2785 = vmatprep.subr.mxu0 0.0
    %2786 = vmatpush1.msra.mxu0 0.0
    %2787 = vmatprep.subr.mxu0 0.0
    %2788 = vmatpush1.msra.mxu0 0.0
    %2789 = vmatprep.subr.mxu0 0.0
    %2790 = vmatpush1.msra.mxu0 0.0
    %2791 = vmatprep.subr.mxu0 0.0
    %2792 = vmatpush1.msra.mxu0 0.0
    %2793 = vmatprep.subr.mxu0 0.0
    %2794 = vmatpush1.msra.mxu0 0.0
    %2795 = vmatprep.subr.mxu0 0.0
    %2796 = vmatpush1.msra.mxu0 0.0
    %2797 = vmatprep.subr.mxu0 0.0
    %2798 = vmatpush1.msra.mxu0 0.0
    %2799 = vmatprep.subr.mxu0 0.0
    %2800 = vmatpush1.msra.mxu0 0.0
    %2801 = vmatprep.mubr.f32.mxu0 0.0
    %2802 = vmatmul.mubr.f32.gmra.mrb[0].mxu0 %v2735
    %v2803 = vpop.f32.mrb[0].mxu0
    %v2804 = vadd.f32 0.0, %v2803
    %v2805 = vpop.f32.mrb[0].mxu0
    %2806 = vdwg.mxu0
    %v2808 = vsel %vm1855, %v2583, 0
    %2810 = vmatprep.subr.mxu0 0.0
    %2811 = vmatpush1.msra.mxu0 %v1850
    %2812 = vmatprep.subr.mxu0 0.0
    %2813 = vmatpush1.msra.mxu0 0.0
    %2814 = vmatprep.subr.mxu0 0.0
    %2815 = vmatpush1.msra.mxu0 0.0
    %2816 = vmatprep.subr.mxu0 0.0
    %2817 = vmatpush1.msra.mxu0 0.0
    %2818 = vmatprep.subr.mxu0 0.0
    %2819 = vmatpush1.msra.mxu0 0.0
    %2820 = vmatprep.subr.mxu0 0.0
    %2821 = vmatpush1.msra.mxu0 0.0
    %2822 = vmatprep.subr.mxu0 0.0
    %2823 = vmatpush1.msra.mxu0 0.0
    %2824 = vmatprep.subr.mxu0 0.0
    %2825 = vmatpush1.msra.mxu0 0.0
    %2826 = vmatprep.subr.mxu0 0.0
    %2827 = vmatpush1.msra.mxu0 0.0
    %2828 = vmatprep.subr.mxu0 0.0
    %2829 = vmatpush1.msra.mxu0 0.0
    %2830 = vmatprep.subr.mxu0 0.0
    %2831 = vmatpush1.msra.mxu0 0.0
    %2832 = vmatprep.subr.mxu0 0.0
    %2833 = vmatpush1.msra.mxu0 0.0
    %2834 = vmatprep.subr.mxu0 0.0
    %2835 = vmatpush1.msra.mxu0 0.0
    %2836 = vmatprep.subr.mxu0 0.0
    %2837 = vmatpush1.msra.mxu0 0.0
    %2838 = vmatprep.subr.mxu0 0.0
    %2839 = vmatpush1.msra.mxu0 0.0
    %2840 = vmatprep.subr.mxu0 0.0
    %2841 = vmatpush1.msra.mxu0 0.0
    %2842 = vmatprep.subr.mxu0 0.0
    %2843 = vmatpush1.msra.mxu0 0.0
    %2844 = vmatprep.subr.mxu0 0.0
    %2845 = vmatpush1.msra.mxu0 0.0
    %2846 = vmatprep.subr.mxu0 0.0
    %2847 = vmatpush1.msra.mxu0 0.0
    %2848 = vmatprep.subr.mxu0 0.0
    %2849 = vmatpush1.msra.mxu0 0.0
    %2850 = vmatprep.subr.mxu0 0.0
    %2851 = vmatpush1.msra.mxu0 0.0
    %2852 = vmatprep.subr.mxu0 0.0
    %2853 = vmatpush1.msra.mxu0 0.0
    %2854 = vmatprep.subr.mxu0 0.0
    %2855 = vmatpush1.msra.mxu0 0.0
    %2856 = vmatprep.subr.mxu0 0.0
    %2857 = vmatpush1.msra.mxu0 0.0
    %2858 = vmatprep.subr.mxu0 0.0
    %2859 = vmatpush1.msra.mxu0 0.0
    %2860 = vmatprep.subr.mxu0 0.0
    %2861 = vmatpush1.msra.mxu0 0.0
    %2862 = vmatprep.subr.mxu0 0.0
    %2863 = vmatpush1.msra.mxu0 0.0
    %2864 = vmatprep.subr.mxu0 0.0
    %2865 = vmatpush1.msra.mxu0 0.0
    %2866 = vmatprep.subr.mxu0 0.0
    %2867 = vmatpush1.msra.mxu0 0.0
    %2868 = vmatprep.subr.mxu0 0.0
    %2869 = vmatpush1.msra.mxu0 0.0
    %2870 = vmatprep.subr.mxu0 0.0
    %2871 = vmatpush1.msra.mxu0 0.0
    %2872 = vmatprep.subr.mxu0 0.0
    %2873 = vmatpush1.msra.mxu0 0.0
    %2874 = vmatprep.mubr.f32.mxu0 0.0
    %2875 = vmatmul.mubr.f32.gmra.mrb[0].mxu0 %v2808
    %v2876 = vpop.f32.mrb[0].mxu0
    %v2877 = vadd.f32 0.0, %v2876
    %v2878 = vpop.f32.mrb[0].mxu0
    %2879 = vdwg.mxu0
    %v2881 = vsel %vm1855, %v2584, 0
    %2883 = vmatprep.subr.mxu0 0.0
    %2884 = vmatpush1.msra.mxu0 %v1851
    %2885 = vmatprep.subr.mxu0 0.0
    %2886 = vmatpush1.msra.mxu0 0.0
    %2887 = vmatprep.subr.mxu0 0.0
    %2888 = vmatpush1.msra.mxu0 0.0
    %2889 = vmatprep.subr.mxu0 0.0
    %2890 = vmatpush1.msra.mxu0 0.0
    %2891 = vmatprep.subr.mxu0 0.0
    %2892 = vmatpush1.msra.mxu0 0.0
    %2893 = vmatprep.subr.mxu0 0.0
    %2894 = vmatpush1.msra.mxu0 0.0
    %2895 = vmatprep.subr.mxu0 0.0
    %2896 = vmatpush1.msra.mxu0 0.0
    %2897 = vmatprep.subr.mxu0 0.0
    %2898 = vmatpush1.msra.mxu0 0.0
    %2899 = vmatprep.subr.mxu0 0.0
    %2900 = vmatpush1.msra.mxu0 0.0
    %2901 = vmatprep.subr.mxu0 0.0
    %2902 = vmatpush1.msra.mxu0 0.0
    %2903 = vmatprep.subr.mxu0 0.0
    %2904 = vmatpush1.msra.mxu0 0.0
    %2905 = vmatprep.subr.mxu0 0.0
    %2906 = vmatpush1.msra.mxu0 0.0
    %2907 = vmatprep.subr.mxu0 0.0
    %2908 = vmatpush1.msra.mxu0 0.0
    %2909 = vmatprep.subr.mxu0 0.0
    %2910 = vmatpush1.msra.mxu0 0.0
    %2911 = vmatprep.subr.mxu0 0.0
    %2912 = vmatpush1.msra.mxu0 0.0
    %2913 = vmatprep.subr.mxu0 0.0
    %2914 = vmatpush1.msra.mxu0 0.0
    %2915 = vmatprep.subr.mxu0 0.0
    %2916 = vmatpush1.msra.mxu0 0.0
    %2917 = vmatprep.subr.mxu0 0.0
    %2918 = vmatpush1.msra.mxu0 0.0
    %2919 = vmatprep.subr.mxu0 0.0
    %2920 = vmatpush1.msra.mxu0 0.0
    %2921 = vmatprep.subr.mxu0 0.0
    %2922 = vmatpush1.msra.mxu0 0.0
    %2923 = vmatprep.subr.mxu0 0.0
    %2924 = vmatpush1.msra.mxu0 0.0
    %2925 = vmatprep.subr.mxu0 0.0
    %2926 = vmatpush1.msra.mxu0 0.0
    %2927 = vmatprep.subr.mxu0 0.0
    %2928 = vmatpush1.msra.mxu0 0.0
    %2929 = vmatprep.subr.mxu0 0.0
    %2930 = vmatpush1.msra.mxu0 0.0
    %2931 = vmatprep.subr.mxu0 0.0
    %2932 = vmatpush1.msra.mxu0 0.0
    %2933 = vmatprep.subr.mxu0 0.0
    %2934 = vmatpush1.msra.mxu0 0.0
    %2935 = vmatprep.subr.mxu0 0.0
    %2936 = vmatpush1.msra.mxu0 0.0
    %2937 = vmatprep.subr.mxu0 0.0
    %2938 = vmatpush1.msra.mxu0 0.0
    %2939 = vmatprep.subr.mxu0 0.0
    %2940 = vmatpush1.msra.mxu0 0.0
    %2941 = vmatprep.subr.mxu0 0.0
    %2942 = vmatpush1.msra.mxu0 0.0
    %2943 = vmatprep.subr.mxu0 0.0
    %2944 = vmatpush1.msra.mxu0 0.0
    %2945 = vmatprep.subr.mxu0 0.0
    %2946 = vmatpush1.msra.mxu0 0.0
    %2947 = vmatprep.mubr.f32.mxu0 0.0
    %2948 = vmatmul.mubr.f32.gmra.mrb[0].mxu0 %v2881
    %v2949 = vpop.f32.mrb[0].mxu0
    %v2950 = vadd.f32 0.0, %v2949
    %v2951 = vpop.f32.mrb[0].mxu0
    %2952 = vdwg.mxu0
    %v2954 = vsel %vm1855, %v2585, 0
    %2956 = vmatprep.subr.mxu0 0.0
    %2957 = vmatpush1.msra.mxu0 %v1852
    %2958 = vmatprep.subr.mxu0 0.0
    %2959 = vmatpush1.msra.mxu0 0.0
    %2960 = vmatprep.subr.mxu0 0.0
    %2961 = vmatpush1.msra.mxu0 0.0
    %2962 = vmatprep.subr.mxu0 0.0
    %2963 = vmatpush1.msra.mxu0 0.0
    %2964 = vmatprep.subr.mxu0 0.0
    %2965 = vmatpush1.msra.mxu0 0.0
    %2966 = vmatprep.subr.mxu0 0.0
    %2967 = vmatpush1.msra.mxu0 0.0
    %2968 = vmatprep.subr.mxu0 0.0
    %2969 = vmatpush1.msra.mxu0 0.0
    %2970 = vmatprep.subr.mxu0 0.0
    %2971 = vmatpush1.msra.mxu0 0.0
    %2972 = vmatprep.subr.mxu0 0.0
    %2973 = vmatpush1.msra.mxu0 0.0
    %2974 = vmatprep.subr.mxu0 0.0
    %2975 = vmatpush1.msra.mxu0 0.0
    %2976 = vmatprep.subr.mxu0 0.0
    %2977 = vmatpush1.msra.mxu0 0.0
    %2978 = vmatprep.subr.mxu0 0.0
    %2979 = vmatpush1.msra.mxu0 0.0
    %2980 = vmatprep.subr.mxu0 0.0
    %2981 = vmatpush1.msra.mxu0 0.0
    %2982 = vmatprep.subr.mxu0 0.0
    %2983 = vmatpush1.msra.mxu0 0.0
    %2984 = vmatprep.subr.mxu0 0.0
    %2985 = vmatpush1.msra.mxu0 0.0
    %2986 = vmatprep.subr.mxu0 0.0
    %2987 = vmatpush1.msra.mxu0 0.0
    %2988 = vmatprep.subr.mxu0 0.0
    %2989 = vmatpush1.msra.mxu0 0.0
    %2990 = vmatprep.subr.mxu0 0.0
    %2991 = vmatpush1.msra.mxu0 0.0
    %2992 = vmatprep.subr.mxu0 0.0
    %2993 = vmatpush1.msra.mxu0 0.0
    %2994 = vmatprep.subr.mxu0 0.0
    %2995 = vmatpush1.msra.mxu0 0.0
    %2996 = vmatprep.subr.mxu0 0.0
    %2997 = vmatpush1.msra.mxu0 0.0
    %2998 = vmatprep.subr.mxu0 0.0
    %2999 = vmatpush1.msra.mxu0 0.0
    %3000 = vmatprep.subr.mxu0 0.0
    %3001 = vmatpush1.msra.mxu0 0.0
    %3002 = vmatprep.subr.mxu0 0.0
    %3003 = vmatpush1.msra.mxu0 0.0
    %3004 = vmatprep.subr.mxu0 0.0
    %3005 = vmatpush1.msra.mxu0 0.0
    %3006 = vmatprep.subr.mxu0 0.0
    %3007 = vmatpush1.msra.mxu0 0.0
    %3008 = vmatprep.subr.mxu0 0.0
    %3009 = vmatpush1.msra.mxu0 0.0
    %3010 = vmatprep.subr.mxu0 0.0
    %3011 = vmatpush1.msra.mxu0 0.0
    %3012 = vmatprep.subr.mxu0 0.0
    %3013 = vmatpush1.msra.mxu0 0.0
    %3014 = vmatprep.subr.mxu0 0.0
    %3015 = vmatpush1.msra.mxu0 0.0
    %3016 = vmatprep.subr.mxu0 0.0
    %3017 = vmatpush1.msra.mxu0 0.0
    %3018 = vmatprep.subr.mxu0 0.0
    %3019 = vmatpush1.msra.mxu0 0.0
    %3020 = vmatprep.mubr.f32.mxu0 0.0
    %3021 = vmatmul.mubr.f32.gmra.mrb[0].mxu0 %v2954
    %v3022 = vpop.f32.mrb[0].mxu0
    %v3023 = vadd.f32 0.0, %v3022
    %v3024 = vpop.f32.mrb[0].mxu0
    %3025 = vdwg.mxu0
    %v3027 = vsel %vm1855, %v2586, 0
    %3029 = vmatprep.subr.mxu0 0.0
    %3030 = vmatpush1.msra.mxu0 %v1853
    %3031 = vmatprep.subr.mxu0 0.0
    %3032 = vmatpush1.msra.mxu0 0.0
    %3033 = vmatprep.subr.mxu0 0.0
    %3034 = vmatpush1.msra.mxu0 0.0
    %3035 = vmatprep.subr.mxu0 0.0
    %3036 = vmatpush1.msra.mxu0 0.0
    %3037 = vmatprep.subr.mxu0 0.0
    %3038 = vmatpush1.msra.mxu0 0.0
    %3039 = vmatprep.subr.mxu0 0.0
    %3040 = vmatpush1.msra.mxu0 0.0
    %3041 = vmatprep.subr.mxu0 0.0
    %3042 = vmatpush1.msra.mxu0 0.0
    %3043 = vmatprep.subr.mxu0 0.0
    %3044 = vmatpush1.msra.mxu0 0.0
    %3045 = vmatprep.subr.mxu0 0.0
    %3046 = vmatpush1.msra.mxu0 0.0
    %3047 = vmatprep.subr.mxu0 0.0
    %3048 = vmatpush1.msra.mxu0 0.0
    %3049 = vmatprep.subr.mxu0 0.0
    %3050 = vmatpush1.msra.mxu0 0.0
    %3051 = vmatprep.subr.mxu0 0.0
    %3052 = vmatpush1.msra.mxu0 0.0
    %3053 = vmatprep.subr.mxu0 0.0
    %3054 = vmatpush1.msra.mxu0 0.0
    %3055 = vmatprep.subr.mxu0 0.0
    %3056 = vmatpush1.msra.mxu0 0.0
    %3057 = vmatprep.subr.mxu0 0.0
    %3058 = vmatpush1.msra.mxu0 0.0
    %3059 = vmatprep.subr.mxu0 0.0
    %3060 = vmatpush1.msra.mxu0 0.0
    %3061 = vmatprep.subr.mxu0 0.0
    %3062 = vmatpush1.msra.mxu0 0.0
    %3063 = vmatprep.subr.mxu0 0.0
    %3064 = vmatpush1.msra.mxu0 0.0
    %3065 = vmatprep.subr.mxu0 0.0
    %3066 = vmatpush1.msra.mxu0 0.0
    %3067 = vmatprep.subr.mxu0 0.0
    %3068 = vmatpush1.msra.mxu0 0.0
    %3069 = vmatprep.subr.mxu0 0.0
    %3070 = vmatpush1.msra.mxu0 0.0
    %3071 = vmatprep.subr.mxu0 0.0
    %3072 = vmatpush1.msra.mxu0 0.0
    %3073 = vmatprep.subr.mxu0 0.0
    %3074 = vmatpush1.msra.mxu0 0.0
    %3075 = vmatprep.subr.mxu0 0.0
    %3076 = vmatpush1.msra.mxu0 0.0
    %3077 = vmatprep.subr.mxu0 0.0
    %3078 = vmatpush1.msra.mxu0 0.0
    %3079 = vmatprep.subr.mxu0 0.0
    %3080 = vmatpush1.msra.mxu0 0.0
    %3081 = vmatprep.subr.mxu0 0.0
    %3082 = vmatpush1.msra.mxu0 0.0
    %3083 = vmatprep.subr.mxu0 0.0
    %3084 = vmatpush1.msra.mxu0 0.0
    %3085 = vmatprep.subr.mxu0 0.0
    %3086 = vmatpush1.msra.mxu0 0.0
    %3087 = vmatprep.subr.mxu0 0.0
    %3088 = vmatpush1.msra.mxu0 0.0
    %3089 = vmatprep.subr.mxu0 0.0
    %3090 = vmatpush1.msra.mxu0 0.0
    %3091 = vmatprep.subr.mxu0 0.0
    %3092 = vmatpush1.msra.mxu0 0.0
    %3093 = vmatprep.mubr.f32.mxu0 0.0
    %3094 = vmatmul.mubr.f32.gmra.mrb[0].mxu0 %v3027
    %v3095 = vpop.f32.mrb[0].mxu0
    %v3096 = vadd.f32 0.0, %v3095
    %v3097 = vpop.f32.mrb[0].mxu0
    %3098 = vdwg.mxu0
    %v3100 = vsel %vm1855, %v2587, 0
    %3102 = vmatprep.subr.mxu0 0.0
    %3103 = vmatpush1.msra.mxu0 %v1854
    %3104 = vmatprep.subr.mxu0 0.0
    %3105 = vmatpush1.msra.mxu0 0.0
    %3106 = vmatprep.subr.mxu0 0.0
    %3107 = vmatpush1.msra.mxu0 0.0
    %3108 = vmatprep.subr.mxu0 0.0
    %3109 = vmatpush1.msra.mxu0 0.0
    %3110 = vmatprep.subr.mxu0 0.0
    %3111 = vmatpush1.msra.mxu0 0.0
    %3112 = vmatprep.subr.mxu0 0.0
    %3113 = vmatpush1.msra.mxu0 0.0
    %3114 = vmatprep.subr.mxu0 0.0
    %3115 = vmatpush1.msra.mxu0 0.0
    %3116 = vmatprep.subr.mxu0 0.0
    %3117 = vmatpush1.msra.mxu0 0.0
    %3118 = vmatprep.subr.mxu0 0.0
    %3119 = vmatpush1.msra.mxu0 0.0
    %3120 = vmatprep.subr.mxu0 0.0
    %3121 = vmatpush1.msra.mxu0 0.0
    %3122 = vmatprep.subr.mxu0 0.0
    %3123 = vmatpush1.msra.mxu0 0.0
    %3124 = vmatprep.subr.mxu0 0.0
    %3125 = vmatpush1.msra.mxu0 0.0
    %3126 = vmatprep.subr.mxu0 0.0
    %3127 = vmatpush1.msra.mxu0 0.0
    %3128 = vmatprep.subr.mxu0 0.0
    %3129 = vmatpush1.msra.mxu0 0.0
    %3130 = vmatprep.subr.mxu0 0.0
    %3131 = vmatpush1.msra.mxu0 0.0
    %3132 = vmatprep.subr.mxu0 0.0
    %3133 = vmatpush1.msra.mxu0 0.0
    %3134 = vmatprep.subr.mxu0 0.0
    %3135 = vmatpush1.msra.mxu0 0.0
    %3136 = vmatprep.subr.mxu0 0.0
    %3137 = vmatpush1.msra.mxu0 0.0
    %3138 = vmatprep.subr.mxu0 0.0
    %3139 = vmatpush1.msra.mxu0 0.0
    %3140 = vmatprep.subr.mxu0 0.0
    %3141 = vmatpush1.msra.mxu0 0.0
    %3142 = vmatprep.subr.mxu0 0.0
    %3143 = vmatpush1.msra.mxu0 0.0
    %3144 = vmatprep.subr.mxu0 0.0
    %3145 = vmatpush1.msra.mxu0 0.0
    %3146 = vmatprep.subr.mxu0 0.0
    %3147 = vmatpush1.msra.mxu0 0.0
    %3148 = vmatprep.subr.mxu0 0.0
    %3149 = vmatpush1.msra.mxu0 0.0
    %3150 = vmatprep.subr.mxu0 0.0
    %3151 = vmatpush1.msra.mxu0 0.0
    %3152 = vmatprep.subr.mxu0 0.0
    %3153 = vmatpush1.msra.mxu0 0.0
    %3154 = vmatprep.subr.mxu0 0.0
    %3155 = vmatpush1.msra.mxu0 0.0
    %3156 = vmatprep.subr.mxu0 0.0
    %3157 = vmatpush1.msra.mxu0 0.0
    %3158 = vmatprep.subr.mxu0 0.0
    %3159 = vmatpush1.msra.mxu0 0.0
    %3160 = vmatprep.subr.mxu0 0.0
    %3161 = vmatpush1.msra.mxu0 0.0
    %3162 = vmatprep.subr.mxu0 0.0
    %3163 = vmatpush1.msra.mxu0 0.0
    %3164 = vmatprep.subr.mxu0 0.0
    %3165 = vmatpush1.msra.mxu0 0.0
    %3166 = vmatprep.mubr.f32.mxu0 0.0
    %3167 = vmatmul.mubr.f32.gmra.mrb[0].mxu0 %v3100
    %v3168 = vpop.f32.mrb[0].mxu0
    %v3169 = vadd.f32 0.0, %v3168
    %v3170 = vpop.f32.mrb[0].mxu0
    %3171 = vdwg.mxu0
    %v3172 = vld [vmem:[%s3] sm:$0xff]
    %v3173 = vld [vmem:[%s3 + $0x8] sm:$0xff]
    %v3174 = vld [vmem:[%s3 + $0x10] sm:$0xff]
    %v3175 = vld [vmem:[%s3 + $0x18] sm:$0xff]
    %v3176 = vld [vmem:[%s3 + $0x20] sm:$0xff]
    %v3178 = vsel %vm1855, %v2658, 0
    %3180 = vmatprep.subr.mxu0 0.0
    %3181 = vmatpush1.msra.mxu0 %v3172
    %3182 = vmatprep.subr.mxu0 0.0
    %3183 = vmatpush1.msra.mxu0 0.0
    %3184 = vmatprep.subr.mxu0 0.0
    %3185 = vmatpush1.msra.mxu0 0.0
    %3186 = vmatprep.subr.mxu0 0.0
    %3187 = vmatpush1.msra.mxu0 0.0
    %3188 = vmatprep.subr.mxu0 0.0
    %3189 = vmatpush1.msra.mxu0 0.0
    %3190 = vmatprep.subr.mxu0 0.0
    %3191 = vmatpush1.msra.mxu0 0.0
    %3192 = vmatprep.subr.mxu0 0.0
    %3193 = vmatpush1.msra.mxu0 0.0
    %3194 = vmatprep.subr.mxu0 0.0
    %3195 = vmatpush1.msra.mxu0 0.0
    %3196 = vmatprep.subr.mxu0 0.0
    %3197 = vmatpush1.msra.mxu0 0.0
    %3198 = vmatprep.subr.mxu0 0.0
    %3199 = vmatpush1.msra.mxu0 0.0
    %3200 = vmatprep.subr.mxu0 0.0
    %3201 = vmatpush1.msra.mxu0 0.0
    %3202 = vmatprep.subr.mxu0 0.0
    %3203 = vmatpush1.msra.mxu0 0.0
    %3204 = vmatprep.subr.mxu0 0.0
    %3205 = vmatpush1.msra.mxu0 0.0
    %3206 = vmatprep.subr.mxu0 0.0
    %3207 = vmatpush1.msra.mxu0 0.0
    %3208 = vmatprep.subr.mxu0 0.0
    %3209 = vmatpush1.msra.mxu0 0.0
    %3210 = vmatprep.subr.mxu0 0.0
    %3211 = vmatpush1.msra.mxu0 0.0
    %3212 = vmatprep.subr.mxu0 0.0
    %3213 = vmatpush1.msra.mxu0 0.0
    %3214 = vmatprep.subr.mxu0 0.0
    %3215 = vmatpush1.msra.mxu0 0.0
    %3216 = vmatprep.subr.mxu0 0.0
    %3217 = vmatpush1.msra.mxu0 0.0
    %3218 = vmatprep.subr.mxu0 0.0
    %3219 = vmatpush1.msra.mxu0 0.0
    %3220 = vmatprep.subr.mxu0 0.0
    %3221 = vmatpush1.msra.mxu0 0.0
    %3222 = vmatprep.subr.mxu0 0.0
    %3223 = vmatpush1.msra.mxu0 0.0
    %3224 = vmatprep.subr.mxu0 0.0
    %3225 = vmatpush1.msra.mxu0 0.0
    %3226 = vmatprep.subr.mxu0 0.0
    %3227 = vmatpush1.msra.mxu0 0.0
    %3228 = vmatprep.subr.mxu0 0.0
    %3229 = vmatpush1.msra.mxu0 0.0
    %3230 = vmatprep.subr.mxu0 0.0
    %3231 = vmatpush1.msra.mxu0 0.0
    %3232 = vmatprep.subr.mxu0 0.0
    %3233 = vmatpush1.msra.mxu0 0.0
    %3234 = vmatprep.subr.mxu0 0.0
    %3235 = vmatpush1.msra.mxu0 0.0
    %3236 = vmatprep.subr.mxu0 0.0
    %3237 = vmatpush1.msra.mxu0 0.0
    %3238 = vmatprep.subr.mxu0 0.0
    %3239 = vmatpush1.msra.mxu0 0.0
    %3240 = vmatprep.subr.mxu0 0.0
    %3241 = vmatpush1.msra.mxu0 0.0
    %3242 = vmatprep.subr.mxu0 0.0
    %3243 = vmatpush1.msra.mxu0 0.0
    %3244 = vmatprep.mubr.f32.mxu0 0.0
    %3245 = vmatmul.mubr.f32.gmra.mrb[0].mxu0 %v3178
    %v3246 = vpop.f32.mrb[0].mxu0
    %v3247 = vadd.f32 0.0, %v3246
    %v3248 = vpop.f32.mrb[0].mxu0
    %3249 = vdwg.mxu0
    %v3251 = vsel %vm1855, %v2731, 0
    %3253 = vmatprep.subr.mxu0 0.0
    %3254 = vmatpush1.msra.mxu0 %v3172
    %3255 = vmatprep.subr.mxu0 0.0
    %3256 = vmatpush1.msra.mxu0 0.0
    %3257 = vmatprep.subr.mxu0 0.0
    %3258 = vmatpush1.msra.mxu0 0.0
    %3259 = vmatprep.subr.mxu0 0.0
    %3260 = vmatpush1.msra.mxu0 0.0
    %3261 = vmatprep.subr.mxu0 0.0
    %3262 = vmatpush1.msra.mxu0 0.0
    %3263 = vmatprep.subr.mxu0 0.0
    %3264 = vmatpush1.msra.mxu0 0.0
    %3265 = vmatprep.subr.mxu0 0.0
    %3266 = vmatpush1.msra.mxu0 0.0
    %3267 = vmatprep.subr.mxu0 0.0
    %3268 = vmatpush1.msra.mxu0 0.0
    %3269 = vmatprep.subr.mxu0 0.0
    %3270 = vmatpush1.msra.mxu0 0.0
    %3271 = vmatprep.subr.mxu0 0.0
    %3272 = vmatpush1.msra.mxu0 0.0
    %3273 = vmatprep.subr.mxu0 0.0
    %3274 = vmatpush1.msra.mxu0 0.0
    %3275 = vmatprep.subr.mxu0 0.0
    %3276 = vmatpush1.msra.mxu0 0.0
    %3277 = vmatprep.subr.mxu0 0.0
    %3278 = vmatpush1.msra.mxu0 0.0
    %3279 = vmatprep.subr.mxu0 0.0
    %3280 = vmatpush1.msra.mxu0 0.0
    %3281 = vmatprep.subr.mxu0 0.0
    %3282 = vmatpush1.msra.mxu0 0.0
    %3283 = vmatprep.subr.mxu0 0.0
    %3284 = vmatpush1.msra.mxu0 0.0
    %3285 = vmatprep.subr.mxu0 0.0
    %3286 = vmatpush1.msra.mxu0 0.0
    %3287 = vmatprep.subr.mxu0 0.0
    %3288 = vmatpush1.msra.mxu0 0.0
    %3289 = vmatprep.subr.mxu0 0.0
    %3290 = vmatpush1.msra.mxu0 0.0
    %3291 = vmatprep.subr.mxu0 0.0
    %3292 = vmatpush1.msra.mxu0 0.0
    %3293 = vmatprep.subr.mxu0 0.0
    %3294 = vmatpush1.msra.mxu0 0.0
    %3295 = vmatprep.subr.mxu0 0.0
    %3296 = vmatpush1.msra.mxu0 0.0
    %3297 = vmatprep.subr.mxu0 0.0
    %3298 = vmatpush1.msra.mxu0 0.0
    %3299 = vmatprep.subr.mxu0 0.0
    %3300 = vmatpush1.msra.mxu0 0.0
    %3301 = vmatprep.subr.mxu0 0.0
    %3302 = vmatpush1.msra.mxu0 0.0
    %3303 = vmatprep.subr.mxu0 0.0
    %3304 = vmatpush1.msra.mxu0 0.0
    %3305 = vmatprep.subr.mxu0 0.0
    %3306 = vmatpush1.msra.mxu0 0.0
    %3307 = vmatprep.subr.mxu0 0.0
    %3308 = vmatpush1.msra.mxu0 0.0
    %3309 = vmatprep.subr.mxu0 0.0
    %3310 = vmatpush1.msra.mxu0 0.0
    %3311 = vmatprep.subr.mxu0 0.0
    %3312 = vmatpush1.msra.mxu0 0.0
    %3313 = vmatprep.subr.mxu0 0.0
    %3314 = vmatpush1.msra.mxu0 0.0
    %3315 = vmatprep.subr.mxu0 0.0
    %3316 = vmatpush1.msra.mxu0 0.0
    %3317 = vmatprep.mubr.f32.mxu0 0.0
    %3318 = vmatmul.mubr.f32.gmra.mrb[0].mxu0 %v3251
    %v3319 = vpop.f32.mrb[0].mxu0
    %v3320 = vadd.f32 0.0, %v3319
    %v3321 = vpop.f32.mrb[0].mxu0
    %3322 = vdwg.mxu0
    %v3324 = vsel %vm1855, %v2804, 0
    %3326 = vmatprep.subr.mxu0 0.0
    %3327 = vmatpush1.msra.mxu0 %v3173
    %3328 = vmatprep.subr.mxu0 0.0
    %3329 = vmatpush1.msra.mxu0 0.0
    %3330 = vmatprep.subr.mxu0 0.0
    %3331 = vmatpush1.msra.mxu0 0.0
    %3332 = vmatprep.subr.mxu0 0.0
    %3333 = vmatpush1.msra.mxu0 0.0
    %3334 = vmatprep.subr.mxu0 0.0
    %3335 = vmatpush1.msra.mxu0 0.0
    %3336 = vmatprep.subr.mxu0 0.0
    %3337 = vmatpush1.msra.mxu0 0.0
    %3338 = vmatprep.subr.mxu0 0.0
    %3339 = vmatpush1.msra.mxu0 0.0
    %3340 = vmatprep.subr.mxu0 0.0
    %3341 = vmatpush1.msra.mxu0 0.0
    %3342 = vmatprep.subr.mxu0 0.0
    %3343 = vmatpush1.msra.mxu0 0.0
    %3344 = vmatprep.subr.mxu0 0.0
    %3345 = vmatpush1.msra.mxu0 0.0
    %3346 = vmatprep.subr.mxu0 0.0
    %3347 = vmatpush1.msra.mxu0 0.0
    %3348 = vmatprep.subr.mxu0 0.0
    %3349 = vmatpush1.msra.mxu0 0.0
    %3350 = vmatprep.subr.mxu0 0.0
    %3351 = vmatpush1.msra.mxu0 0.0
    %3352 = vmatprep.subr.mxu0 0.0
    %3353 = vmatpush1.msra.mxu0 0.0
    %3354 = vmatprep.subr.mxu0 0.0
    %3355 = vmatpush1.msra.mxu0 0.0
    %3356 = vmatprep.subr.mxu0 0.0
    %3357 = vmatpush1.msra.mxu0 0.0
    %3358 = vmatprep.subr.mxu0 0.0
    %3359 = vmatpush1.msra.mxu0 0.0
    %3360 = vmatprep.subr.mxu0 0.0
    %3361 = vmatpush1.msra.mxu0 0.0
    %3362 = vmatprep.subr.mxu0 0.0
    %3363 = vmatpush1.msra.mxu0 0.0
    %3364 = vmatprep.subr.mxu0 0.0
    %3365 = vmatpush1.msra.mxu0 0.0
    %3366 = vmatprep.subr.mxu0 0.0
    %3367 = vmatpush1.msra.mxu0 0.0
    %3368 = vmatprep.subr.mxu0 0.0
    %3369 = vmatpush1.msra.mxu0 0.0
    %3370 = vmatprep.subr.mxu0 0.0
    %3371 = vmatpush1.msra.mxu0 0.0
    %3372 = vmatprep.subr.mxu0 0.0
    %3373 = vmatpush1.msra.mxu0 0.0
    %3374 = vmatprep.subr.mxu0 0.0
    %3375 = vmatpush1.msra.mxu0 0.0
    %3376 = vmatprep.subr.mxu0 0.0
    %3377 = vmatpush1.msra.mxu0 0.0
    %3378 = vmatprep.subr.mxu0 0.0
    %3379 = vmatpush1.msra.mxu0 0.0
    %3380 = vmatprep.subr.mxu0 0.0
    %3381 = vmatpush1.msra.mxu0 0.0
    %3382 = vmatprep.subr.mxu0 0.0
    %3383 = vmatpush1.msra.mxu0 0.0
    %3384 = vmatprep.subr.mxu0 0.0
    %3385 = vmatpush1.msra.mxu0 0.0
    %3386 = vmatprep.subr.mxu0 0.0
    %3387 = vmatpush1.msra.mxu0 0.0
    %3388 = vmatprep.subr.mxu0 0.0
    %3389 = vmatpush1.msra.mxu0 0.0
    %3390 = vmatprep.mubr.f32.mxu0 0.0
    %3391 = vmatmul.mubr.f32.gmra.mrb[0].mxu0 %v3324
    %v3392 = vpop.f32.mrb[0].mxu0
    %v3393 = vadd.f32 0.0, %v3392
    %v3394 = vpop.f32.mrb[0].mxu0
    %3395 = vdwg.mxu0
    %v3397 = vsel %vm1855, %v2877, 0
    %3399 = vmatprep.subr.mxu0 0.0
    %3400 = vmatpush1.msra.mxu0 %v3173
    %3401 = vmatprep.subr.mxu0 0.0
    %3402 = vmatpush1.msra.mxu0 0.0
    %3403 = vmatprep.subr.mxu0 0.0
    %3404 = vmatpush1.msra.mxu0 0.0
    %3405 = vmatprep.subr.mxu0 0.0
    %3406 = vmatpush1.msra.mxu0 0.0
    %3407 = vmatprep.subr.mxu0 0.0
    %3408 = vmatpush1.msra.mxu0 0.0
    %3409 = vmatprep.subr.mxu0 0.0
    %3410 = vmatpush1.msra.mxu0 0.0
    %3411 = vmatprep.subr.mxu0 0.0
    %3412 = vmatpush1.msra.mxu0 0.0
    %3413 = vmatprep.subr.mxu0 0.0
    %3414 = vmatpush1.msra.mxu0 0.0
    %3415 = vmatprep.subr.mxu0 0.0
    %3416 = vmatpush1.msra.mxu0 0.0
    %3417 = vmatprep.subr.mxu0 0.0
    %3418 = vmatpush1.msra.mxu0 0.0
    %3419 = vmatprep.subr.mxu0 0.0
    %3420 = vmatpush1.msra.mxu0 0.0
    %3421 = vmatprep.subr.mxu0 0.0
    %3422 = vmatpush1.msra.mxu0 0.0
    %3423 = vmatprep.subr.mxu0 0.0
    %3424 = vmatpush1.msra.mxu0 0.0
    %3425 = vmatprep.subr.mxu0 0.0
    %3426 = vmatpush1.msra.mxu0 0.0
    %3427 = vmatprep.subr.mxu0 0.0
    %3428 = vmatpush1.msra.mxu0 0.0
    %3429 = vmatprep.subr.mxu0 0.0
    %3430 = vmatpush1.msra.mxu0 0.0
    %3431 = vmatprep.subr.mxu0 0.0
    %3432 = vmatpush1.msra.mxu0 0.0
    %3433 = vmatprep.subr.mxu0 0.0
    %3434 = vmatpush1.msra.mxu0 0.0
    %3435 = vmatprep.subr.mxu0 0.0
    %3436 = vmatpush1.msra.mxu0 0.0
    %3437 = vmatprep.subr.mxu0 0.0
    %3438 = vmatpush1.msra.mxu0 0.0
    %3439 = vmatprep.subr.mxu0 0.0
    %3440 = vmatpush1.msra.mxu0 0.0
    %3441 = vmatprep.subr.mxu0 0.0
    %3442 = vmatpush1.msra.mxu0 0.0
    %3443 = vmatprep.subr.mxu0 0.0
    %3444 = vmatpush1.msra.mxu0 0.0
    %3445 = vmatprep.subr.mxu0 0.0
    %3446 = vmatpush1.msra.mxu0 0.0
    %3447 = vmatprep.subr.mxu0 0.0
    %3448 = vmatpush1.msra.mxu0 0.0
    %3449 = vmatprep.subr.mxu0 0.0
    %3450 = vmatpush1.msra.mxu0 0.0
    %3451 = vmatprep.subr.mxu0 0.0
    %3452 = vmatpush1.msra.mxu0 0.0
    %3453 = vmatprep.subr.mxu0 0.0
    %3454 = vmatpush1.msra.mxu0 0.0
    %3455 = vmatprep.subr.mxu0 0.0
    %3456 = vmatpush1.msra.mxu0 0.0
    %3457 = vmatprep.subr.mxu0 0.0
    %3458 = vmatpush1.msra.mxu0 0.0
    %3459 = vmatprep.subr.mxu0 0.0
    %3460 = vmatpush1.msra.mxu0 0.0
    %3461 = vmatprep.subr.mxu0 0.0
    %3462 = vmatpush1.msra.mxu0 0.0
    %3463 = vmatprep.mubr.f32.mxu0 0.0
    %3464 = vmatmul.mubr.f32.gmra.mrb[0].mxu0 %v3397
    %v3465 = vpop.f32.mrb[0].mxu0
    %v3466 = vadd.f32 0.0, %v3465
    %v3467 = vpop.f32.mrb[0].mxu0
    %3468 = vdwg.mxu0
    %v3470 = vsel %vm1855, %v2950, 0
    %3472 = vmatprep.subr.mxu0 0.0
    %3473 = vmatpush1.msra.mxu0 %v3174
    %3474 = vmatprep.subr.mxu0 0.0
    %3475 = vmatpush1.msra.mxu0 0.0
    %3476 = vmatprep.subr.mxu0 0.0
    %3477 = vmatpush1.msra.mxu0 0.0
    %3478 = vmatprep.subr.mxu0 0.0
    %3479 = vmatpush1.msra.mxu0 0.0
    %3480 = vmatprep.subr.mxu0 0.0
    %3481 = vmatpush1.msra.mxu0 0.0
    %3482 = vmatprep.subr.mxu0 0.0
    %3483 = vmatpush1.msra.mxu0 0.0
    %3484 = vmatprep.subr.mxu0 0.0
    %3485 = vmatpush1.msra.mxu0 0.0
    %3486 = vmatprep.subr.mxu0 0.0
    %3487 = vmatpush1.msra.mxu0 0.0
    %3488 = vmatprep.subr.mxu0 0.0
    %3489 = vmatpush1.msra.mxu0 0.0
    %3490 = vmatprep.subr.mxu0 0.0
    %3491 = vmatpush1.msra.mxu0 0.0
    %3492 = vmatprep.subr.mxu0 0.0
    %3493 = vmatpush1.msra.mxu0 0.0
    %3494 = vmatprep.subr.mxu0 0.0
    %3495 = vmatpush1.msra.mxu0 0.0
    %3496 = vmatprep.subr.mxu0 0.0
    %3497 = vmatpush1.msra.mxu0 0.0
    %3498 = vmatprep.subr.mxu0 0.0
    %3499 = vmatpush1.msra.mxu0 0.0
    %3500 = vmatprep.subr.mxu0 0.0
    %3501 = vmatpush1.msra.mxu0 0.0
    %3502 = vmatprep.subr.mxu0 0.0
    %3503 = vmatpush1.msra.mxu0 0.0
    %3504 = vmatprep.subr.mxu0 0.0
    %3505 = vmatpush1.msra.mxu0 0.0
    %3506 = vmatprep.subr.mxu0 0.0
    %3507 = vmatpush1.msra.mxu0 0.0
    %3508 = vmatprep.subr.mxu0 0.0
    %3509 = vmatpush1.msra.mxu0 0.0
    %3510 = vmatprep.subr.mxu0 0.0
    %3511 = vmatpush1.msra.mxu0 0.0
    %3512 = vmatprep.subr.mxu0 0.0
    %3513 = vmatpush1.msra.mxu0 0.0
    %3514 = vmatprep.subr.mxu0 0.0
    %3515 = vmatpush1.msra.mxu0 0.0
    %3516 = vmatprep.subr.mxu0 0.0
    %3517 = vmatpush1.msra.mxu0 0.0
    %3518 = vmatprep.subr.mxu0 0.0
    %3519 = vmatpush1.msra.mxu0 0.0
    %3520 = vmatprep.subr.mxu0 0.0
    %3521 = vmatpush1.msra.mxu0 0.0
    %3522 = vmatprep.subr.mxu0 0.0
    %3523 = vmatpush1.msra.mxu0 0.0
    %3524 = vmatprep.subr.mxu0 0.0
    %3525 = vmatpush1.msra.mxu0 0.0
    %3526 = vmatprep.subr.mxu0 0.0
    %3527 = vmatpush1.msra.mxu0 0.0
    %3528 = vmatprep.subr.mxu0 0.0
    %3529 = vmatpush1.msra.mxu0 0.0
    %3530 = vmatprep.subr.mxu0 0.0
    %3531 = vmatpush1.msra.mxu0 0.0
    %3532 = vmatprep.subr.mxu0 0.0
    %3533 = vmatpush1.msra.mxu0 0.0
    %3534 = vmatprep.subr.mxu0 0.0
    %3535 = vmatpush1.msra.mxu0 0.0
    %3536 = vmatprep.mubr.f32.mxu0 0.0
    %3537 = vmatmul.mubr.f32.gmra.mrb[0].mxu0 %v3470
    %v3538 = vpop.f32.mrb[0].mxu0
    %v3539 = vadd.f32 0.0, %v3538
    %v3540 = vpop.f32.mrb[0].mxu0
    %3541 = vdwg.mxu0
    %v3543 = vsel %vm1855, %v3023, 0
    %3545 = vmatprep.subr.mxu0 0.0
    %3546 = vmatpush1.msra.mxu0 %v3174
    %3547 = vmatprep.subr.mxu0 0.0
    %3548 = vmatpush1.msra.mxu0 0.0
    %3549 = vmatprep.subr.mxu0 0.0
    %3550 = vmatpush1.msra.mxu0 0.0
    %3551 = vmatprep.subr.mxu0 0.0
    %3552 = vmatpush1.msra.mxu0 0.0
    %3553 = vmatprep.subr.mxu0 0.0
    %3554 = vmatpush1.msra.mxu0 0.0
    %3555 = vmatprep.subr.mxu0 0.0
    %3556 = vmatpush1.msra.mxu0 0.0
    %3557 = vmatprep.subr.mxu0 0.0
    %3558 = vmatpush1.msra.mxu0 0.0
    %3559 = vmatprep.subr.mxu0 0.0
    %3560 = vmatpush1.msra.mxu0 0.0
    %3561 = vmatprep.subr.mxu0 0.0
    %3562 = vmatpush1.msra.mxu0 0.0
    %3563 = vmatprep.subr.mxu0 0.0
    %3564 = vmatpush1.msra.mxu0 0.0
    %3565 = vmatprep.subr.mxu0 0.0
    %3566 = vmatpush1.msra.mxu0 0.0
    %3567 = vmatprep.subr.mxu0 0.0
    %3568 = vmatpush1.msra.mxu0 0.0
    %3569 = vmatprep.subr.mxu0 0.0
    %3570 = vmatpush1.msra.mxu0 0.0
    %3571 = vmatprep.subr.mxu0 0.0
    %3572 = vmatpush1.msra.mxu0 0.0
    %3573 = vmatprep.subr.mxu0 0.0
    %3574 = vmatpush1.msra.mxu0 0.0
    %3575 = vmatprep.subr.mxu0 0.0
    %3576 = vmatpush1.msra.mxu0 0.0
    %3577 = vmatprep.subr.mxu0 0.0
    %3578 = vmatpush1.msra.mxu0 0.0
    %3579 = vmatprep.subr.mxu0 0.0
    %3580 = vmatpush1.msra.mxu0 0.0
    %3581 = vmatprep.subr.mxu0 0.0
    %3582 = vmatpush1.msra.mxu0 0.0
    %3583 = vmatprep.subr.mxu0 0.0
    %3584 = vmatpush1.msra.mxu0 0.0
    %3585 = vmatprep.subr.mxu0 0.0
    %3586 = vmatpush1.msra.mxu0 0.0
    %3587 = vmatprep.subr.mxu0 0.0
    %3588 = vmatpush1.msra.mxu0 0.0
    %3589 = vmatprep.subr.mxu0 0.0
    %3590 = vmatpush1.msra.mxu0 0.0
    %3591 = vmatprep.subr.mxu0 0.0
    %3592 = vmatpush1.msra.mxu0 0.0
    %3593 = vmatprep.subr.mxu0 0.0
    %3594 = vmatpush1.msra.mxu0 0.0
    %3595 = vmatprep.subr.mxu0 0.0
    %3596 = vmatpush1.msra.mxu0 0.0
    %3597 = vmatprep.subr.mxu0 0.0
    %3598 = vmatpush1.msra.mxu0 0.0
    %3599 = vmatprep.subr.mxu0 0.0
    %3600 = vmatpush1.msra.mxu0 0.0
    %3601 = vmatprep.subr.mxu0 0.0
    %3602 = vmatpush1.msra.mxu0 0.0
    %3603 = vmatprep.subr.mxu0 0.0
    %3604 = vmatpush1.msra.mxu0 0.0
    %3605 = vmatprep.subr.mxu0 0.0
    %3606 = vmatpush1.msra.mxu0 0.0
    %3607 = vmatprep.subr.mxu0 0.0
    %3608 = vmatpush1.msra.mxu0 0.0
    %3609 = vmatprep.mubr.f32.mxu0 0.0
    %3610 = vmatmul.mubr.f32.gmra.mrb[0].mxu0 %v3543
    %v3611 = vpop.f32.mrb[0].mxu0
    %v3612 = vadd.f32 0.0, %v3611
    %v3613 = vpop.f32.mrb[0].mxu0
    %3614 = vdwg.mxu0
    %v3616 = vsel %vm1855, %v3096, 0
    %3618 = vmatprep.subr.mxu0 0.0
    %3619 = vmatpush1.msra.mxu0 %v3175
    %3620 = vmatprep.subr.mxu0 0.0
    %3621 = vmatpush1.msra.mxu0 0.0
    %3622 = vmatprep.subr.mxu0 0.0
    %3623 = vmatpush1.msra.mxu0 0.0
    %3624 = vmatprep.subr.mxu0 0.0
    %3625 = vmatpush1.msra.mxu0 0.0
    %3626 = vmatprep.subr.mxu0 0.0
    %3627 = vmatpush1.msra.mxu0 0.0
    %3628 = vmatprep.subr.mxu0 0.0
    %3629 = vmatpush1.msra.mxu0 0.0
    %3630 = vmatprep.subr.mxu0 0.0
    %3631 = vmatpush1.msra.mxu0 0.0
    %3632 = vmatprep.subr.mxu0 0.0
    %3633 = vmatpush1.msra.mxu0 0.0
    %3634 = vmatprep.subr.mxu0 0.0
    %3635 = vmatpush1.msra.mxu0 0.0
    %3636 = vmatprep.subr.mxu0 0.0
    %3637 = vmatpush1.msra.mxu0 0.0
    %3638 = vmatprep.subr.mxu0 0.0
    %3639 = vmatpush1.msra.mxu0 0.0
    %3640 = vmatprep.subr.mxu0 0.0
    %3641 = vmatpush1.msra.mxu0 0.0
    %3642 = vmatprep.subr.mxu0 0.0
    %3643 = vmatpush1.msra.mxu0 0.0
    %3644 = vmatprep.subr.mxu0 0.0
    %3645 = vmatpush1.msra.mxu0 0.0
    %3646 = vmatprep.subr.mxu0 0.0
    %3647 = vmatpush1.msra.mxu0 0.0
    %3648 = vmatprep.subr.mxu0 0.0
    %3649 = vmatpush1.msra.mxu0 0.0
    %3650 = vmatprep.subr.mxu0 0.0
    %3651 = vmatpush1.msra.mxu0 0.0
    %3652 = vmatprep.subr.mxu0 0.0
    %3653 = vmatpush1.msra.mxu0 0.0
    %3654 = vmatprep.subr.mxu0 0.0
    %3655 = vmatpush1.msra.mxu0 0.0
    %3656 = vmatprep.subr.mxu0 0.0
    %3657 = vmatpush1.msra.mxu0 0.0
    %3658 = vmatprep.subr.mxu0 0.0
    %3659 = vmatpush1.msra.mxu0 0.0
    %3660 = vmatprep.subr.mxu0 0.0
    %3661 = vmatpush1.msra.mxu0 0.0
    %3662 = vmatprep.subr.mxu0 0.0
    %3663 = vmatpush1.msra.mxu0 0.0
    %3664 = vmatprep.subr.mxu0 0.0
    %3665 = vmatpush1.msra.mxu0 0.0
    %3666 = vmatprep.subr.mxu0 0.0
    %3667 = vmatpush1.msra.mxu0 0.0
    %3668 = vmatprep.subr.mxu0 0.0
    %3669 = vmatpush1.msra.mxu0 0.0
    %3670 = vmatprep.subr.mxu0 0.0
    %3671 = vmatpush1.msra.mxu0 0.0
    %3672 = vmatprep.subr.mxu0 0.0
    %3673 = vmatpush1.msra.mxu0 0.0
    %3674 = vmatprep.subr.mxu0 0.0
    %3675 = vmatpush1.msra.mxu0 0.0
    %3676 = vmatprep.subr.mxu0 0.0
    %3677 = vmatpush1.msra.mxu0 0.0
    %3678 = vmatprep.subr.mxu0 0.0
    %3679 = vmatpush1.msra.mxu0 0.0
    %3680 = vmatprep.subr.mxu0 0.0
    %3681 = vmatpush1.msra.mxu0 0.0
    %3682 = vmatprep.mubr.f32.mxu0 0.0
    %3683 = vmatmul.mubr.f32.gmra.mrb[0].mxu0 %v3616
    %v3684 = vpop.f32.mrb[0].mxu0
    %v3685 = vadd.f32 0.0, %v3684
    %v3686 = vpop.f32.mrb[0].mxu0
    %3687 = vdwg.mxu0
    %v3689 = vsel %vm1855, %v3169, 0
    %3691 = vmatprep.subr.mxu0 0.0
    %3692 = vmatpush1.msra.mxu0 %v3175
    %3693 = vmatprep.subr.mxu0 0.0
    %3694 = vmatpush1.msra.mxu0 0.0
    %3695 = vmatprep.subr.mxu0 0.0
    %3696 = vmatpush1.msra.mxu0 0.0
    %3697 = vmatprep.subr.mxu0 0.0
    %3698 = vmatpush1.msra.mxu0 0.0
    %3699 = vmatprep.subr.mxu0 0.0
    %3700 = vmatpush1.msra.mxu0 0.0
    %3701 = vmatprep.subr.mxu0 0.0
    %3702 = vmatpush1.msra.mxu0 0.0
    %3703 = vmatprep.subr.mxu0 0.0
    %3704 = vmatpush1.msra.mxu0 0.0
    %3705 = vmatprep.subr.mxu0 0.0
    %3706 = vmatpush1.msra.mxu0 0.0
    %3707 = vmatprep.subr.mxu0 0.0
    %3708 = vmatpush1.msra.mxu0 0.0
    %3709 = vmatprep.subr.mxu0 0.0
    %3710 = vmatpush1.msra.mxu0 0.0
    %3711 = vmatprep.subr.mxu0 0.0
    %3712 = vmatpush1.msra.mxu0 0.0
    %3713 = vmatprep.subr.mxu0 0.0
    %3714 = vmatpush1.msra.mxu0 0.0
    %3715 = vmatprep.subr.mxu0 0.0
    %3716 = vmatpush1.msra.mxu0 0.0
    %3717 = vmatprep.subr.mxu0 0.0
    %3718 = vmatpush1.msra.mxu0 0.0
    %3719 = vmatprep.subr.mxu0 0.0
    %3720 = vmatpush1.msra.mxu0 0.0
    %3721 = vmatprep.subr.mxu0 0.0
    %3722 = vmatpush1.msra.mxu0 0.0
    %3723 = vmatprep.subr.mxu0 0.0
    %3724 = vmatpush1.msra.mxu0 0.0
    %3725 = vmatprep.subr.mxu0 0.0
    %3726 = vmatpush1.msra.mxu0 0.0
    %3727 = vmatprep.subr.mxu0 0.0
    %3728 = vmatpush1.msra.mxu0 0.0
    %3729 = vmatprep.subr.mxu0 0.0
    %3730 = vmatpush1.msra.mxu0 0.0
    %3731 = vmatprep.subr.mxu0 0.0
    %3732 = vmatpush1.msra.mxu0 0.0
    %3733 = vmatprep.subr.mxu0 0.0
    %3734 = vmatpush1.msra.mxu0 0.0
    %3735 = vmatprep.subr.mxu0 0.0
    %3736 = vmatpush1.msra.mxu0 0.0
    %3737 = vmatprep.subr.mxu0 0.0
    %3738 = vmatpush1.msra.mxu0 0.0
    %3739 = vmatprep.subr.mxu0 0.0
    %3740 = vmatpush1.msra.mxu0 0.0
    %3741 = vmatprep.subr.mxu0 0.0
    %3742 = vmatpush1.msra.mxu0 0.0
    %3743 = vmatprep.subr.mxu0 0.0
    %3744 = vmatpush1.msra.mxu0 0.0
    %3745 = vmatprep.subr.mxu0 0.0
    %3746 = vmatpush1.msra.mxu0 0.0
    %3747 = vmatprep.subr.mxu0 0.0
    %3748 = vmatpush1.msra.mxu0 0.0
    %3749 = vmatprep.subr.mxu0 0.0
    %3750 = vmatpush1.msra.mxu0 0.0
    %3751 = vmatprep.subr.mxu0 0.0
    %3752 = vmatpush1.msra.mxu0 0.0
    %3753 = vmatprep.subr.mxu0 0.0
    %3754 = vmatpush1.msra.mxu0 0.0
    %3755 = vmatprep.mubr.f32.mxu0 0.0
    %3756 = vmatmul.mubr.f32.gmra.mrb[0].mxu0 %v3689
    %v3757 = vpop.f32.mrb[0].mxu0
    %v3758 = vadd.f32 0.0, %v3757
    %v3759 = vpop.f32.mrb[0].mxu0
    %3760 = vdwg.mxu0
    %v3761 = vsel %vm84, %v3247, 0.0
    %v3762 = vsel %vm84, %v3393, 0.0
    %v3763 = vadd.f32 %v3761, %v3762
    %v3764 = vsel %vm84, %v3539, 0.0
    %v3765 = vadd.f32 %v3763, %v3764
    %v3766 = vsel %vm84, %v3685, 0.0
    %v3767 = vadd.f32 %v3765, %v3766
    %v3768 = vsel %vm84, %v3320, 0.0
    %v3769 = vsel %vm84, %v3466, 0.0
    %v3770 = vadd.f32 %v3768, %v3769
    %v3771 = vsel %vm84, %v3612, 0.0
    %v3772 = vadd.f32 %v3770, %v3771
    %v3773 = vsel %vm84, %v3758, 0.0
    %v3774 = vadd.f32 %v3772, %v3773
    %v3775 = vlaneseq
    %v3776 = vshrl.u32 %v3775, 7
    %v3777 = vsub.s32 0, %v3776
    %v3778 = vrot.slane %v3176, %v3777
    %v3779 = vadd.f32 %v3767, %v3778
    %v3780 = vadd.f32 %v3774, %v3778
    %3781 = vst.msk [vmem:[#allocation2] sm:$0xff] %vm84, %v3779
    %3782 = vst.msk [vmem:[#allocation2 + $0x8] sm:$0xff] %vm84, %v3780
    // Predicated region
    $region18: #{mha_forward.1} parent=1 // pred_check
      _
    $region19: #{mha_forward.1} parent=1 // pred_check_branch
      %3784 = sbr.rel (0) target = $region21
    $region20: #{mha_forward.1} parent=1 // pred_region
      %s3786 = ssub.s32 256, 256
      %3787 = vsyncadd [#allocation3], %s3786
      %s3788 = sshll.u32 [#allocation2], 4
      %s3789 = int_to_ptr.vmem [resolvable:$true] %s3788
      %3794 = dma.vmem_to_hbm [thread:$0]  %s3789, 256, %s4, [#allocation3], 128, 128, 8
    $region21: #{mha_forward.1} parent=1 // pred_fallthru
      _
    // Predicated region
    $region22: #{mha_forward.1} parent=1 // pred_check
      _
    $region23: #{mha_forward.1} parent=1 // pred_check_branch
      %3796 = sbr.rel (0) target = $region25
    $region24: #{mha_forward.1} parent=1 // pred_region
      %3797 = dma.done [#allocation3], 256
    $region25: #{mha_forward.1} parent=1 // pred_fallthru
      _
    %3798 = vsyncpa [#allocation3], 1

</llo_original>
